<compile_context>
chip_gen: v7x
topology: tpu7x:2x2x1
jax: 0.10.0
libtpu: 0.0.40
codegen_flags: <defaults>
</compile_context>

<pallas_src>
import jax
import jax.numpy as jnp
from jax.experimental import pallas as pl
from jax.experimental.pallas import tpu as pltpu

IN_FEATURES = 28 * 28     # 784
HIDDEN = 1000
OUT_FEATURES = 10

HIDDEN_PAD = 1024         # 1000 -> 1024 (lane-aligned K for the 2nd matmul)
OUT_PAD = 128             # 10   -> 128  (lane-dense output stores)

MAX_TILE = 1024           # per-step VMEM ~18 MiB incl. f32 h intermediate


def _round_up(x, m):
    return (x + m - 1) // m * m


def mlp_kernel(x_ref, w1_ref, b1_ref, w2_ref, b2_ref, o_ref):
    # x_ref : (bt, 784)        f32   (cast to bf16 in-kernel)
    # w1_ref: (784, 1024)      bf16
    # b1_ref: (1, 1024)        f32
    # w2_ref: (1024, 128)      bf16
    # b2_ref: (1, 128)         f32
    # o_ref : (bt, 128)        f32
    x = x_ref[...].astype(jnp.bfloat16)
    h = jnp.dot(x, w1_ref[...], preferred_element_type=jnp.float32)
    h = jnp.maximum(h + b1_ref[...], 0.0)                      # bias + ReLU on the VPU
    y = jnp.dot(h.astype(jnp.bfloat16), w2_ref[...],
                preferred_element_type=jnp.float32)
    o_ref[...] = (y + b2_ref[...]).astype(o_ref.dtype)


def prepare_params(w1, b1, w2, b2):
    """Pad/cast parameters once (at model load); reuse the result across calls.

    w1: (784, 1000), b1: (1000,) or (1, 1000), w2: (1000, 10), b2: (10,) or (1, 10).
    Zero padding is mathematically inert (ReLU(0+0)=0, padded output lanes sliced off).
    """
    w1p = jnp.zeros((IN_FEATURES, HIDDEN_PAD), jnp.bfloat16)
    w1p = w1p.at[:, :HIDDEN].set(w1.astype(jnp.bfloat16))
    b1p = jnp.zeros((1, HIDDEN_PAD), jnp.float32)
    b1p = b1p.at[:, :HIDDEN].set(b1.astype(jnp.float32).reshape(1, HIDDEN))
    w2p = jnp.zeros((HIDDEN_PAD, OUT_PAD), jnp.bfloat16)
    w2p = w2p.at[:HIDDEN, :OUT_FEATURES].set(w2.astype(jnp.bfloat16))
    b2p = jnp.zeros((1, OUT_PAD), jnp.float32)
    b2p = b2p.at[:, :OUT_FEATURES].set(b2.astype(jnp.float32).reshape(1, OUT_FEATURES))
    return w1p, b1p, w2p, b2p


def _choose_batch_tile(B):
    # >=2 steps (and an even count) so v7x's two TensorCores both get work;
    # tile derived from B so no padded rows are ever computed.
    n_steps = max(2, pl.cdiv(B, MAX_TILE))
    if n_steps % 2:
        n_steps += 1
    bt = _round_up(pl.cdiv(B, n_steps), 8)   # sublane-aligned
    return max(8, min(bt, MAX_TILE))


def fashion_mnist_forward(x, params):
    """x: (B, 784) f32. params: output of prepare_params(). Returns (B, 10) f32."""
    w1p, b1p, w2p, b2p = params
    B = x.shape[0]
    bt = _choose_batch_tile(B)
    grid = (pl.cdiv(B, bt),)   # partial last block handled by masked writes

    out_padded = pl.pallas_call(
        mlp_kernel,
        out_shape=jax.ShapeDtypeStruct((B, OUT_PAD), jnp.float32),
        grid_spec=pltpu.PrefetchScalarGridSpec(
            num_scalar_prefetch=0,
            grid=grid,
            in_specs=[
                # activations: tiled over batch, streamed as f32, cast in-kernel
                pl.BlockSpec((bt, IN_FEATURES), lambda i: (i, 0)),
                # weights / biases: constant index map -> resident in VMEM across steps
                pl.BlockSpec((IN_FEATURES, HIDDEN_PAD), lambda i: (0, 0)),
                pl.BlockSpec((1, HIDDEN_PAD), lambda i: (0, 0)),
                pl.BlockSpec((HIDDEN_PAD, OUT_PAD), lambda i: (0, 0)),
                pl.BlockSpec((1, OUT_PAD), lambda i: (0, 0)),
            ],
            out_specs=pl.BlockSpec((bt, OUT_PAD), lambda i: (i, 0)),
        ),
        compiler_params=pltpu.CompilerParams(
            dimension_semantics=("parallel",),        # megacore-shard batch steps (v7x)
            vmem_limit_bytes=48 * 1024 * 1024,        # explicit; safe on v5e/v6e/v7x
        ),
    )(x, w1p, b1p, w2p, b2p)

    # slice off the zero-padded output lanes
    return out_padded[:, :OUT_FEATURES]


if __name__ == "__main__":
    key = jax.random.PRNGKey(0)
    kx, kw1, kb1, kw2, kb2 = jax.random.split(key, 5)

    # small batch chosen so the wrapper exercises a 2-step parallel grid with a
    # masked partial last block (bt=104, grid=2)
    batch = 200
    x = jax.random.normal(kx, (batch, IN_FEATURES), dtype=jnp.float32)
    w1 = jax.random.normal(kw1, (IN_FEATURES, HIDDEN), dtype=jnp.float32) * 0.02
    b1 = jax.random.normal(kb1, (1, HIDDEN), dtype=jnp.float32) * 0.01
    w2 = jax.random.normal(kw2, (HIDDEN, OUT_FEATURES), dtype=jnp.float32) * 0.02
    b2 = jax.random.normal(kb2, (1, OUT_FEATURES), dtype=jnp.float32) * 0.01

    params = prepare_params(w1, b1, w2, b2)      # hoisted out of the per-call forward
    out = jax.block_until_ready(fashion_mnist_forward(x, params))

    # Pure-JAX f32 reference (same math as the PyTorch forward).
    ref = jnp.maximum(x @ w1 + b1, 0.0) @ w2 + b2
    assert out.shape == (batch, OUT_FEATURES)
    # bf16 matmul inputs with f32 accumulation -> loose tolerance vs f32 reference
    assert jnp.allclose(out, ref, atol=2e-2, rtol=2e-2), float(jnp.max(jnp.abs(out - ref)))

    print("KERNEL_OK")
</pallas_src>

<mosaic_0001>
module attributes {stable_mosaic.version = 11 : i64} {
  func.func @mlp_kernel(%arg0: i32, %arg1: memref<104x784xf32, #tpu.memory_space<vmem>>, %arg2: memref<784x1024xbf16, #tpu.memory_space<vmem>>, %arg3: memref<1x1024xf32, #tpu.memory_space<vmem>>, %arg4: memref<1024x128xbf16, #tpu.memory_space<vmem>>, %arg5: memref<1x128xf32, #tpu.memory_space<vmem>>, %arg6: memref<104x128xf32, #tpu.memory_space<vmem>>) attributes {dimension_semantics = [#tpu.dimension_semantics<parallel>], iteration_bounds = array<i64: 2>, scalar_prefetch = 0 : i64, scratch_operands = 0 : i64, tpu.core_type = #tpu.core_type<tc>, window_params = [{transform_indices = @transform_0, window_bounds = array<i64: 104, 784>}, {pipeline_mode = #tpu.pipeline_mode<synchronous>, transform_indices = @transform_1, window_bounds = array<i64: 784, 1024>}, {pipeline_mode = #tpu.pipeline_mode<synchronous>, transform_indices = @transform_2, window_bounds = array<i64: 1, 1024>}, {pipeline_mode = #tpu.pipeline_mode<synchronous>, transform_indices = @transform_3, window_bounds = array<i64: 1024, 128>}, {pipeline_mode = #tpu.pipeline_mode<synchronous>, transform_indices = @transform_4, window_bounds = array<i64: 1, 128>}, {transform_indices = @transform_5, window_bounds = array<i64: 104, 128>}]} {
    %c0 = arith.constant 0 : index
    %c0_0 = arith.constant 0 : index
    %0 = vector.load %arg1[%c0, %c0_0] : memref<104x784xf32, #tpu.memory_space<vmem>>, vector<104x784xf32>
    %1 = arith.truncf %0 : vector<104x784xf32> to vector<104x784xbf16>
    %c0_1 = arith.constant 0 : index
    %c0_2 = arith.constant 0 : index
    %2 = vector.load %arg2[%c0_1, %c0_2] : memref<784x1024xbf16, #tpu.memory_space<vmem>>, vector<784x1024xbf16>
    %cst = arith.constant dense<0.000000e+00> : vector<104x1024xf32>
    %3 = tpu.matmul %1, %2, %cst {dimension_numbers = #tpu.dot_dimension_numbers<[1], [0], [0], [1], [0, 0, 1, 1], [], []>} : vector<104x784xbf16>, vector<784x1024xbf16>, vector<104x1024xf32> -> vector<104x1024xf32>
    %c0_3 = arith.constant 0 : index
    %c0_4 = arith.constant 0 : index
    %4 = vector.load %arg3[%c0_3, %c0_4] : memref<1x1024xf32, #tpu.memory_space<vmem>>, vector<1x1024xf32>
    %5 = vector.broadcast %4 : vector<1x1024xf32> to vector<104x1024xf32>
    %6 = arith.addf %3, %5 : vector<104x1024xf32>
    %cst_5 = arith.constant 0.000000e+00 : f32
    %7 = vector.broadcast %cst_5 : f32 to vector<104x1024xf32>
    %8 = arith.maximumf %6, %7 : vector<104x1024xf32>
    %9 = arith.truncf %8 : vector<104x1024xf32> to vector<104x1024xbf16>
    %c0_6 = arith.constant 0 : index
    %c0_7 = arith.constant 0 : index
    %10 = vector.load %arg4[%c0_6, %c0_7] : memref<1024x128xbf16, #tpu.memory_space<vmem>>, vector<1024x128xbf16>
    %cst_8 = arith.constant dense<0.000000e+00> : vector<104x128xf32>
    %11 = tpu.matmul %9, %10, %cst_8 {dimension_numbers = #tpu.dot_dimension_numbers<[1], [0], [0], [1], [0, 0, 1, 1], [], []>} : vector<104x1024xbf16>, vector<1024x128xbf16>, vector<104x128xf32> -> vector<104x128xf32>
    %c0_9 = arith.constant 0 : index
    %c0_10 = arith.constant 0 : index
    %12 = vector.load %arg5[%c0_9, %c0_10] : memref<1x128xf32, #tpu.memory_space<vmem>>, vector<1x128xf32>
    %13 = vector.broadcast %12 : vector<1x128xf32> to vector<104x128xf32>
    %14 = arith.addf %11, %13 : vector<104x128xf32>
    %c0_11 = arith.constant 0 : index
    %c0_12 = arith.constant 0 : index
    %15 = vector.load %arg6[%c0_11, %c0_12] : memref<104x128xf32, #tpu.memory_space<vmem>>, vector<104x128xf32>
    tpu.vector_store %arg6[%c0_11, %c0_12], %14 {strides = array<i32>} : memref<104x128xf32, #tpu.memory_space<vmem>>, vector<104x128xf32>,
    return
  }
  func.func @transform_0(%arg0: i32) -> (i32, i32) {
    %c0_i32 = arith.constant 0 : i32
    %c0_i32_0 = arith.constant 0 : i32
    return %arg0, %c0_i32 : i32, i32
  }
  func.func @transform_1(%arg0: i32) -> (i32, i32) {
    %c0_i32 = arith.constant 0 : i32
    %c0_i32_0 = arith.constant 0 : i32
    %c0_i32_1 = arith.constant 0 : i32
    return %c0_i32, %c0_i32_0 : i32, i32
  }
  func.func @transform_2(%arg0: i32) -> (i32, i32) {
    %c0_i32 = arith.constant 0 : i32
    %c0_i32_0 = arith.constant 0 : i32
    %c0_i32_1 = arith.constant 0 : i32
    return %c0_i32, %c0_i32_0 : i32, i32
  }
  func.func @transform_3(%arg0: i32) -> (i32, i32) {
    %c0_i32 = arith.constant 0 : i32
    %c0_i32_0 = arith.constant 0 : i32
    %c0_i32_1 = arith.constant 0 : i32
    return %c0_i32, %c0_i32_0 : i32, i32
  }
  func.func @transform_4(%arg0: i32) -> (i32, i32) {
    %c0_i32 = arith.constant 0 : i32
    %c0_i32_0 = arith.constant 0 : i32
    %c0_i32_1 = arith.constant 0 : i32
    return %c0_i32, %c0_i32_0 : i32, i32
  }
  func.func @transform_5(%arg0: i32) -> (i32, i32) {
    %c0_i32 = arith.constant 0 : i32
    %c0_i32_0 = arith.constant 0 : i32
    return %arg0, %c0_i32 : i32, i32
  }
}

</mosaic_0001>

<llo_original>
// kernel: tpu_custom_call.1
$region0: #{tpu_custom_call.1}
  #allocation0 [shape = 'u32[]', space=smem, size = 0x4, offset = 0x4, fixed_abs, tag = 'smem constant byte address 0x4 - core index']
  #allocation1 [shape = 'u32[144,128]{1,0:T(1,128)}', space=vmem, size = 0x12000, scoped, tag = 'internal scratch']
  %s0 = inlined_call_operand.hbm [shape: f32[200,784], index: 0, kind: input, shape index: {}]
  %s1 = inlined_call_operand.hbm [shape: bf16[784,1024], index: 1, kind: input, shape index: {}]
  %s2 = inlined_call_operand.hbm [shape: f32[1,1024], index: 2, kind: input, shape index: {}]
  %s3 = inlined_call_operand.hbm [shape: bf16[1024,128], index: 3, kind: input, shape index: {}]
  %s4 = inlined_call_operand.hbm [shape: f32[1,128], index: 4, kind: input, shape index: {}]
  %s5 = inlined_call_operand.hbm [shape: f32[200,128], index: 5, kind: output, shape index: {}]
  %s6 = sld [smem:[#allocation0]]
  $region73: #{tpu_custom_call.1} parent=0
    _
  %s8 = ssub.s32 1, %s6
  %s9 = scalar_select 0, %s8, %s6
  $region1: #{tpu_custom_call.1} parent=0
    #allocation2 [shape = 'u8[745472]{0}', space=vmem, size = 0xb6000, scoped, tag = 'input window, operand 0']
    #allocation3 [shape = 's32[2]{0}', space=sflag, size = 0x8, scoped, tag = 'scoped memory for tpu_custom_call.1']
    #allocation4 [shape = 's32[2]{0}', space=sflag, size = 0x8, scoped, tag = 'scoped memory for tpu_custom_call.1']
    #allocation5 [shape = 'u8[1605632]{0}', space=vmem, size = 0x188000, scoped, tag = 'input window, operand 1, single buffered']
    #allocation6 [shape = 's32[1]{0}', space=sflag, size = 0x4, scoped, tag = 'scoped memory for tpu_custom_call.1']
    #allocation7 [shape = 'u8[4096]{0}', space=vmem, size = 0x1000, scoped, tag = 'input window, operand 2, single buffered']
    #allocation8 [shape = 'u8[262144]{0}', space=vmem, size = 0x40000, scoped, tag = 'input window, operand 3, single buffered']
    #allocation9 [shape = 's32[1]{0}', space=sflag, size = 0x4, scoped, tag = 'scoped memory for tpu_custom_call.1']
    #allocation10 [shape = 'u8[512]{0}', space=vmem, size = 0x400, scoped, tag = 'input window, operand 4, single buffered']
    #allocation11 [shape = 'u8[106496]{0}', space=vmem, size = 0x1a000, scoped, tag = 'output window, operand 0']
    %10 = vsyncpa [#allocation3], 0
    %s11 = scalar_lea.sflag [#allocation3], 1
    %12 = vsyncpa %s11, 0
    %13 = vsyncpa [#allocation6], 0
    %14 = vsyncpa [#allocation9], 0
    %15 = vsyncpa [#allocation4], 0
    %s16 = scalar_lea.sflag [#allocation4], 1
    %17 = vsyncpa %s16, 0
    loop: start=0, step=1, limit=4
    $region2: #{tpu_custom_call.1} parent=1 // loop_pre_header
      _
    $region3: #{tpu_custom_call.1} parent=1 // loop_header
      %s19 = sphi 0, %s23
      %p20 = scmp.ge.s32.totalorder %s19, 4
      %s29 = sphi 0, %s31
      %s32 = sphi 0, %s29
      %s33 = sphi 0, %s32
      %s49 = sphi 0, %s33
      %s53 = sphi 0, %s53
      %s55 = sphi 0, %s53
      %s56 = sphi 0, %s55
      %s70 = sphi 0, %s56
      %s74 = sphi 0, %s74
      %s76 = sphi 0, %s74
      %s77 = sphi 0, %s76
      %s91 = sphi 0, %s77
      %s95 = sphi 0, %s95
      %s97 = sphi 0, %s95
      %s98 = sphi 0, %s97
      %s112 = sphi 0, %s98
      %s116 = sphi 0, %s116
      %s118 = sphi 0, %s116
      %s119 = sphi 0, %s118
      %s133 = sphi 0, %s119
      %s139 = sphi 0, %s141
      %s142 = sphi 0, %s139
      %s143 = sphi 0, %s142
      %s159 = sphi 0, %s143
    $region4: #{tpu_custom_call.1} parent=1 // loop_header_branch
      %22 = sbr.rel (%p20) target = $region8
    $region5: #{tpu_custom_call.1} parent=1 // loop_body
      %s24 = ssub.s32 %s19, 1
      %s25 = ssub.s32 %s19, 2
      %s26 = sadd.s32 %s19, 1
      %s27 = ssub.s32 %s19, %s26
      %p28 = scmp.eq.s32.totalorder %s27, 0
      %s30 = sadd.s32 %s29, 1
      %s31 = scalar_select %p28, %s29, %s30
      %p34 = pneg %p28
      %p35 = scmp.eq.s32.totalorder %s19, 1
      %p36 = por %p34, %p35
      %p37 = scmp.ne.s32.totalorder %s29, %s32
      %p38 = scmp.eq.s32.totalorder %s19, 0
      %p39 = por %p37, %p38
      %p40 = scmp.ne.s32.totalorder %s29, %s32
      %p41 = scmp.eq.s32.totalorder %s24, 1
      %p42 = por %p40, %p41
      %p43 = scmp.ne.s32.totalorder %s32, %s33
      %p44 = scmp.eq.s32.totalorder %s24, 0
      %p45 = por %p43, %p44
      %p46 = scmp.ne.s32.totalorder %s32, %s33
      %p47 = scmp.eq.s32.totalorder %s25, 1
      %p48 = por %p46, %p47
      %p50 = scmp.ne.s32.totalorder %s33, %s49
      %p51 = scmp.eq.s32.totalorder %s25, 0
      %p52 = por %p50, %p51
      %s54 = sadd.s32 %s53, 1
      %p57 = scmp.eq.s32.totalorder %s19, 1
      %p58 = scmp.ne.s32.totalorder %s53, %s55
      %p59 = scmp.eq.s32.totalorder %s19, 0
      %p60 = por %p58, %p59
      %p61 = scmp.ne.s32.totalorder %s53, %s55
      %p62 = scmp.eq.s32.totalorder %s24, 1
      %p63 = por %p61, %p62
      %p64 = scmp.ne.s32.totalorder %s55, %s56
      %p65 = scmp.eq.s32.totalorder %s24, 0
      %p66 = por %p64, %p65
      %p67 = scmp.ne.s32.totalorder %s55, %s56
      %p68 = scmp.eq.s32.totalorder %s25, 1
      %p69 = por %p67, %p68
      %p71 = scmp.ne.s32.totalorder %s56, %s70
      %p72 = scmp.eq.s32.totalorder %s25, 0
      %p73 = por %p71, %p72
      %s75 = sadd.s32 %s74, 1
      %p78 = scmp.eq.s32.totalorder %s19, 1
      %p79 = scmp.ne.s32.totalorder %s74, %s76
      %p80 = scmp.eq.s32.totalorder %s19, 0
      %p81 = por %p79, %p80
      %p82 = scmp.ne.s32.totalorder %s74, %s76
      %p83 = scmp.eq.s32.totalorder %s24, 1
      %p84 = por %p82, %p83
      %p85 = scmp.ne.s32.totalorder %s76, %s77
      %p86 = scmp.eq.s32.totalorder %s24, 0
      %p87 = por %p85, %p86
      %p88 = scmp.ne.s32.totalorder %s76, %s77
      %p89 = scmp.eq.s32.totalorder %s25, 1
      %p90 = por %p88, %p89
      %p92 = scmp.ne.s32.totalorder %s77, %s91
      %p93 = scmp.eq.s32.totalorder %s25, 0
      %p94 = por %p92, %p93
      %s96 = sadd.s32 %s95, 1
      %p99 = scmp.eq.s32.totalorder %s19, 1
      %p100 = scmp.ne.s32.totalorder %s95, %s97
      %p101 = scmp.eq.s32.totalorder %s19, 0
      %p102 = por %p100, %p101
      %p103 = scmp.ne.s32.totalorder %s95, %s97
      %p104 = scmp.eq.s32.totalorder %s24, 1
      %p105 = por %p103, %p104
      %p106 = scmp.ne.s32.totalorder %s97, %s98
      %p107 = scmp.eq.s32.totalorder %s24, 0
      %p108 = por %p106, %p107
      %p109 = scmp.ne.s32.totalorder %s97, %s98
      %p110 = scmp.eq.s32.totalorder %s25, 1
      %p111 = por %p109, %p110
      %p113 = scmp.ne.s32.totalorder %s98, %s112
      %p114 = scmp.eq.s32.totalorder %s25, 0
      %p115 = por %p113, %p114
      %s117 = sadd.s32 %s116, 1
      %p120 = scmp.eq.s32.totalorder %s19, 1
      %p121 = scmp.ne.s32.totalorder %s116, %s118
      %p122 = scmp.eq.s32.totalorder %s19, 0
      %p123 = por %p121, %p122
      %p124 = scmp.ne.s32.totalorder %s116, %s118
      %p125 = scmp.eq.s32.totalorder %s24, 1
      %p126 = por %p124, %p125
      %p127 = scmp.ne.s32.totalorder %s118, %s119
      %p128 = scmp.eq.s32.totalorder %s24, 0
      %p129 = por %p127, %p128
      %p130 = scmp.ne.s32.totalorder %s118, %s119
      %p131 = scmp.eq.s32.totalorder %s25, 1
      %p132 = por %p130, %p131
      %p134 = scmp.ne.s32.totalorder %s119, %s133
      %p135 = scmp.eq.s32.totalorder %s25, 0
      %p136 = por %p134, %p135
      %s137 = ssub.s32 %s19, %s26
      %p138 = scmp.eq.s32.totalorder %s137, 0
      %s140 = sadd.s32 %s139, 1
      %s141 = scalar_select %p138, %s139, %s140
      %p144 = pneg %p138
      %p145 = scmp.eq.s32.totalorder %s19, 1
      %p146 = por %p144, %p145
      %p147 = scmp.ne.s32.totalorder %s139, %s142
      %p148 = scmp.eq.s32.totalorder %s19, 0
      %p149 = por %p147, %p148
      %p150 = scmp.ne.s32.totalorder %s139, %s142
      %p151 = scmp.eq.s32.totalorder %s24, 1
      %p152 = por %p150, %p151
      %p153 = scmp.ne.s32.totalorder %s142, %s143
      %p154 = scmp.eq.s32.totalorder %s24, 0
      %p155 = por %p153, %p154
      %p156 = scmp.ne.s32.totalorder %s142, %s143
      %p157 = scmp.eq.s32.totalorder %s25, 1
      %p158 = por %p156, %p157
      %p160 = scmp.ne.s32.totalorder %s143, %s159
      %p161 = scmp.eq.s32.totalorder %s25, 0
      %p162 = por %p160, %p161
      %p163 = scmp.le.s32.totalorder 1, %s19
      %p164 = scmp.lt.s32.totalorder %s19, 3
      %p165 = pnand %p163, %p164
      %p166 = pneg %p165
      // Predicated region
      $region9: #{tpu_custom_call.1} parent=5 // pred_check
        _
      $region10: #{tpu_custom_call.1} parent=5 // pred_check_branch
        %168 = sbr.rel (%p165) target = $region12
      $region11: #{tpu_custom_call.1} parent=5 // pred_region
        %s169 = ssub.s32 %s19, 1
        // Predicated region
        $region13: #{tpu_custom_call.1} parent=11 // pred_check
          %p170 = pneg %p66
        $region14: #{tpu_custom_call.1} parent=11 // pred_check_branch
          %172 = sbr.rel (%p170) target = $region16
        $region15: #{tpu_custom_call.1} parent=11 // pred_region
          %s174 = ssub.s32 50176, 50176
          %175 = vsyncadd [#allocation6], %s174
          %s176 = sshll.u32 [#allocation5], 4
          %s177 = int_to_ptr.vmem [resolvable:$true] %s176
          %182 = dma.hbm_to_vmem [thread:$0]  %s1, 50176, %s177, [#allocation6], 512, 512, 32
        $region16: #{tpu_custom_call.1} parent=11 // pred_fallthru
          _
        // Predicated region
        $region17: #{tpu_custom_call.1} parent=11 // pred_check
          %p183 = pneg %p87
        $region18: #{tpu_custom_call.1} parent=11 // pred_check_branch
          %185 = sbr.rel (%p183) target = $region20
        $region19: #{tpu_custom_call.1} parent=11 // pred_region
          %s187 = ssub.s32 128, 128
          %188 = vsyncadd [#allocation6], %s187
          %s190 = sshll.u32 [#allocation7], 4
          %s191 = int_to_ptr.vmem [resolvable:$true] %s190
          %193 = dma.hbm_to_vmem [thread:$0]  %s2, 128, %s191, [#allocation6]
        $region20: #{tpu_custom_call.1} parent=11 // pred_fallthru
          _
        // Predicated region
        $region21: #{tpu_custom_call.1} parent=11 // pred_check
          %p194 = pneg %p108
        $region22: #{tpu_custom_call.1} parent=11 // pred_check_branch
          %196 = sbr.rel (%p194) target = $region24
        $region23: #{tpu_custom_call.1} parent=11 // pred_region
          %s198 = ssub.s32 8192, 8192
          %199 = vsyncadd [#allocation9], %s198
          %s200 = sshll.u32 [#allocation8], 4
          %s201 = int_to_ptr.vmem [resolvable:$true] %s200
          %206 = dma.hbm_to_vmem [thread:$0]  %s3, 8192, %s201, [#allocation9], 64, 64, 4
        $region24: #{tpu_custom_call.1} parent=11 // pred_fallthru
          _
        // Predicated region
        $region25: #{tpu_custom_call.1} parent=11 // pred_check
          %p207 = pneg %p129
        $region26: #{tpu_custom_call.1} parent=11 // pred_check_branch
          %209 = sbr.rel (%p207) target = $region28
        $region27: #{tpu_custom_call.1} parent=11 // pred_region
          %s211 = ssub.s32 16, 16
          %212 = vsyncadd [#allocation9], %s211
          %s214 = sshll.u32 [#allocation10], 4
          %s215 = int_to_ptr.vmem [resolvable:$true] %s214
          %217 = dma.hbm_to_vmem [thread:$0]  %s4, 16, %s215, [#allocation9]
        $region28: #{tpu_custom_call.1} parent=11 // pred_fallthru
          _
      $region12: #{tpu_custom_call.1} parent=5 // pred_fallthru
        _
      %p218 = scmp.lt.s32.totalorder %s19, 2
      // Predicated region
      $region29: #{tpu_custom_call.1} parent=5 // pred_check
        %p219 = pneg %p218
      $region30: #{tpu_custom_call.1} parent=5 // pred_check_branch
        %221 = sbr.rel (%p219) target = $region32
      $region31: #{tpu_custom_call.1} parent=5 // pred_region
        // Predicated region
        $region33: #{tpu_custom_call.1} parent=31 // pred_check
          %p222 = pneg %p39
        $region34: #{tpu_custom_call.1} parent=31 // pred_check_branch
          %224 = sbr.rel (%p222) target = $region36
        $region35: #{tpu_custom_call.1} parent=31 // pred_region
          %s225 = sand.u32 %s29, 1
          %s226 = scalar_lea.sflag [#allocation3], %s225
          %s227 = sand.u32 %s29, 1
          %s228 = smul.addr %s227, 728
          %s229 = scalar_lea.vmem [#allocation2], %s228
          %s230 = smul.u32 13, %s19
          %s231 = ssub.s32 25, %s230
          %p232 = scmp.lt.s32.totalorder %s231, 13
          %s233 = scalar_select %p232, %s231, 13
          %s234 = smul.u32 128, %s233
          %s235 = smul.u32 %s234, 7
          %s237 = ssub.s32 11648, %s235
          %238 = vsyncadd %s226, %s237
          %p239 = scmp.ne.s32.totalorder 0, %s235
          %s240 = smul.addr %s230, 7
          %s241 = smul.addr %s240, 128
          %s242 = scalar_lea.hbm %s0, %s241
          %s243 = smul.u32 56, %s233
          %s244 = sshll.u32 %s229, 4
          %s245 = int_to_ptr.vmem [resolvable:$true] %s244
          %s246 = sshll.u32 %s243, 4
          %250 = dma.hbm_to_vmem [thread:$0]  (%p239), %s242, %s246, %s245, %s226, 896, 896, 56
        $region36: #{tpu_custom_call.1} parent=31 // pred_fallthru
          _
      $region32: #{tpu_custom_call.1} parent=5 // pred_fallthru
        _
      %p251 = scmp.le.s32.totalorder 1, %s19
      %p252 = scmp.lt.s32.totalorder %s19, 3
      %p253 = pnand %p251, %p252
      %p254 = pneg %p253
      // Predicated region
      $region37: #{tpu_custom_call.1} parent=5 // pred_check
        _
      $region38: #{tpu_custom_call.1} parent=5 // pred_check_branch
        %256 = sbr.rel (%p253) target = $region40
      $region39: #{tpu_custom_call.1} parent=5 // pred_region
        %s257 = ssub.s32 %s19, 1
        %s258 = sand.u32 %s32, 1
        %s259 = scalar_lea.sflag [#allocation3], %s258
        %s260 = sand.u32 %s32, 1
        %s261 = smul.addr %s260, 728
        %s262 = scalar_lea.vmem [#allocation2], %s261
        // Predicated region
        $region41: #{tpu_custom_call.1} parent=39 // pred_check
          %p263 = pneg %p45
        $region42: #{tpu_custom_call.1} parent=39 // pred_check_branch
          %265 = sbr.rel (%p263) target = $region44
        $region43: #{tpu_custom_call.1} parent=39 // pred_region
          %266 = dma.done %s259, 11648
        $region44: #{tpu_custom_call.1} parent=39 // pred_fallthru
          _
        // Predicated region
        $region45: #{tpu_custom_call.1} parent=39 // pred_check
          %p267 = pneg %p66
        $region46: #{tpu_custom_call.1} parent=39 // pred_check_branch
          %269 = sbr.rel (%p267) target = $region48
        $region47: #{tpu_custom_call.1} parent=39 // pred_region
          %270 = dma.done [#allocation6], 50176
        $region48: #{tpu_custom_call.1} parent=39 // pred_fallthru
          _
        // Predicated region
        $region49: #{tpu_custom_call.1} parent=39 // pred_check
          %p271 = pneg %p87
        $region50: #{tpu_custom_call.1} parent=39 // pred_check_branch
          %273 = sbr.rel (%p271) target = $region52
        $region51: #{tpu_custom_call.1} parent=39 // pred_region
          %274 = dma.done [#allocation6], 128
        $region52: #{tpu_custom_call.1} parent=39 // pred_fallthru
          _
        // Predicated region
        $region53: #{tpu_custom_call.1} parent=39 // pred_check
          %p275 = pneg %p108
        $region54: #{tpu_custom_call.1} parent=39 // pred_check_branch
          %277 = sbr.rel (%p275) target = $region56
        $region55: #{tpu_custom_call.1} parent=39 // pred_region
          %278 = dma.done [#allocation9], 8192
        $region56: #{tpu_custom_call.1} parent=39 // pred_fallthru
          _
        // Predicated region
        $region57: #{tpu_custom_call.1} parent=39 // pred_check
          %p279 = pneg %p129
        $region58: #{tpu_custom_call.1} parent=39 // pred_check_branch
          %281 = sbr.rel (%p279) target = $region60
        $region59: #{tpu_custom_call.1} parent=39 // pred_region
          %282 = dma.done [#allocation9], 16
        $region60: #{tpu_custom_call.1} parent=39 // pred_fallthru
          _
        %s283 = sand.u32 %s32, 1
        %s284 = scalar_lea.sflag [#allocation3], %s283
        %s285 = sand.u32 %s32, 1
        %s286 = smul.addr %s285, 728
        %s287 = scalar_lea.vmem [#allocation2], %s286
        %p288 = pneg %p45
        %p289 = pneg %p42
        %p290 = pneg %p66
        %p291 = pneg %p63
        %p292 = pneg %p87
        %p293 = pneg %p84
        %p294 = pneg %p108
        %p295 = pneg %p105
        %p296 = pneg %p129
        %p297 = pneg %p126
        %p298 = pneg %p155
        %p299 = pneg %p152
        %s300 = sand.u32 %s142, 1
        %s301 = scalar_lea.sflag [#allocation4], %s300
        %s302 = sand.u32 %s142, 1
        %s303 = smul.addr %s302, 104
        %s304 = scalar_lea.vmem [#allocation11], %s303
        %s305 = smul.u32 13, %s24
        %s306 = ssub.s32 25, %s305
        %p307 = scmp.lt.s32.totalorder %s306, 13
        %s308 = scalar_select %p307, %s306, 13
        %s309 = smul.u32 128, %s308
        %s310 = smul.u32 %s309, 7
        %s311 = smul.u32 13, %s24
        %s312 = ssub.s32 25, %s311
        %p313 = scmp.lt.s32.totalorder %s312, 13
        %s314 = scalar_select %p313, %s312, 13
        %s315 = smul.u32 128, %s314
        %v317 = vld [vmem:[%s262] sm:$0xff]
        %v318 = vld [vmem:[%s262 + $0x8] sm:$0xff]
        %v319 = vld [vmem:[%s262 + $0x10] sm:$0xff]
        %v320 = vld [vmem:[%s262 + $0x18] sm:$0xff]
        %v321 = vld [vmem:[%s262 + $0x20] sm:$0xff]
        %v322 = vld [vmem:[%s262 + $0x28] sm:$0xff]
        %v323 = vld [vmem:[%s262 + $0x30] sm:$0xff]
        %v324 = vld [vmem:[%s262 + $0x38] sm:$0xff]
        %v325 = vld [vmem:[%s262 + $0x40] sm:$0xff]
        %v326 = vld [vmem:[%s262 + $0x48] sm:$0xff]
        %v327 = vld [vmem:[%s262 + $0x50] sm:$0xff]
        %v328 = vld [vmem:[%s262 + $0x58] sm:$0xff]
        %v329 = vld [vmem:[%s262 + $0x60] sm:$0xff]
        %v330 = vld [vmem:[%s262 + $0x68] sm:$0xff]
        %v331 = vld [vmem:[%s262 + $0x70] sm:$0xff]
        %v332 = vld [vmem:[%s262 + $0x78] sm:$0xff]
        %v333 = vld [vmem:[%s262 + $0x80] sm:$0xff]
        %v334 = vld [vmem:[%s262 + $0x88] sm:$0xff]
        %v335 = vld [vmem:[%s262 + $0x90] sm:$0xff]
        %v336 = vld [vmem:[%s262 + $0x98] sm:$0xff]
        %v337 = vld [vmem:[%s262 + $0xa0] sm:$0xff]
        %v338 = vld [vmem:[%s262 + $0xa8] sm:$0xff]
        %v339 = vld [vmem:[%s262 + $0xb0] sm:$0xff]
        %v340 = vld [vmem:[%s262 + $0xb8] sm:$0xff]
        %v341 = vld [vmem:[%s262 + $0xc0] sm:$0xff]
        %v342 = vld [vmem:[%s262 + $0xc8] sm:$0xff]
        %v343 = vld [vmem:[%s262 + $0xd0] sm:$0xff]
        %v344 = vld [vmem:[%s262 + $0xd8] sm:$0xff]
        %v345 = vld [vmem:[%s262 + $0xe0] sm:$0xff]
        %v346 = vld [vmem:[%s262 + $0xe8] sm:$0xff]
        %v347 = vld [vmem:[%s262 + $0xf0] sm:$0xff]
        %v348 = vld [vmem:[%s262 + $0xf8] sm:$0xff]
        %v349 = vld [vmem:[%s262 + $0x100] sm:$0xff]
        %v350 = vld [vmem:[%s262 + $0x108] sm:$0xff]
        %v351 = vld [vmem:[%s262 + $0x110] sm:$0xff]
        %v352 = vld [vmem:[%s262 + $0x118] sm:$0xff]
        %v353 = vld [vmem:[%s262 + $0x120] sm:$0xff]
        %v354 = vld [vmem:[%s262 + $0x128] sm:$0xff]
        %v355 = vld [vmem:[%s262 + $0x130] sm:$0xff]
        %v356 = vld [vmem:[%s262 + $0x138] sm:$0xff]
        %v357 = vld [vmem:[%s262 + $0x140] sm:$0xff]
        %v358 = vld [vmem:[%s262 + $0x148] sm:$0xff]
        %v359 = vld [vmem:[%s262 + $0x150] sm:$0xff]
        %v360 = vld [vmem:[%s262 + $0x158] sm:$0xff]
        %v361 = vld [vmem:[%s262 + $0x160] sm:$0xff]
        %v362 = vld [vmem:[%s262 + $0x168] sm:$0xff]
        %v363 = vld [vmem:[%s262 + $0x170] sm:$0xff]
        %v364 = vld [vmem:[%s262 + $0x178] sm:$0xff]
        %v365 = vld [vmem:[%s262 + $0x180] sm:$0xff]
        %v366 = vld [vmem:[%s262 + $0x188] sm:$0xff]
        %v367 = vld [vmem:[%s262 + $0x190] sm:$0xff]
        %v368 = vld [vmem:[%s262 + $0x198] sm:$0xff]
        %v369 = vld [vmem:[%s262 + $0x1a0] sm:$0xff]
        %v370 = vld [vmem:[%s262 + $0x1a8] sm:$0xff]
        %v371 = vld [vmem:[%s262 + $0x1b0] sm:$0xff]
        %v372 = vld [vmem:[%s262 + $0x1b8] sm:$0xff]
        %v373 = vld [vmem:[%s262 + $0x1c0] sm:$0xff]
        %v374 = vld [vmem:[%s262 + $0x1c8] sm:$0xff]
        %v375 = vld [vmem:[%s262 + $0x1d0] sm:$0xff]
        %v376 = vld [vmem:[%s262 + $0x1d8] sm:$0xff]
        %v377 = vld [vmem:[%s262 + $0x1e0] sm:$0xff]
        %v378 = vld [vmem:[%s262 + $0x1e8] sm:$0xff]
        %v379 = vld [vmem:[%s262 + $0x1f0] sm:$0xff]
        %v380 = vld [vmem:[%s262 + $0x1f8] sm:$0xff]
        %v381 = vld [vmem:[%s262 + $0x200] sm:$0xff]
        %v382 = vld [vmem:[%s262 + $0x208] sm:$0xff]
        %v383 = vld [vmem:[%s262 + $0x210] sm:$0xff]
        %v384 = vld [vmem:[%s262 + $0x218] sm:$0xff]
        %v385 = vld [vmem:[%s262 + $0x220] sm:$0xff]
        %v386 = vld [vmem:[%s262 + $0x228] sm:$0xff]
        %v387 = vld [vmem:[%s262 + $0x230] sm:$0xff]
        %v388 = vld [vmem:[%s262 + $0x238] sm:$0xff]
        %v389 = vld [vmem:[%s262 + $0x240] sm:$0xff]
        %v390 = vld [vmem:[%s262 + $0x248] sm:$0xff]
        %v391 = vld [vmem:[%s262 + $0x250] sm:$0xff]
        %v392 = vld [vmem:[%s262 + $0x258] sm:$0xff]
        %v393 = vld [vmem:[%s262 + $0x260] sm:$0xff]
        %v394 = vld [vmem:[%s262 + $0x268] sm:$0xff]
        %v395 = vld [vmem:[%s262 + $0x270] sm:$0xff]
        %v396 = vld [vmem:[%s262 + $0x278] sm:$0xff]
        %v397 = vld [vmem:[%s262 + $0x280] sm:$0xff]
        %v398 = vld [vmem:[%s262 + $0x288] sm:$0xff]
        %v399 = vld [vmem:[%s262 + $0x290] sm:$0xff]
        %v400 = vld [vmem:[%s262 + $0x298] sm:$0xff]
        %v401 = vld [vmem:[%s262 + $0x2a0] sm:$0xff]
        %v402 = vld [vmem:[%s262 + $0x2a8] sm:$0xff]
        %v403 = vld [vmem:[%s262 + $0x2b0] sm:$0xff]
        %v404 = vld [vmem:[%s262 + $0x2b8] sm:$0xff]
        %v405 = vld [vmem:[%s262 + $0x2c0] sm:$0xff]
        %v406 = vld [vmem:[%s262 + $0x2c8] sm:$0xff]
        %v407 = vld [vmem:[%s262 + $0x2d0] sm:$0xff]
        %v408 = vpack.c.bf16 %v324, %v317
        %v409 = vpack.c.bf16 %v325, %v318
        %v410 = vpack.c.bf16 %v326, %v319
        %v411 = vpack.c.bf16 %v327, %v320
        %v412 = vpack.c.bf16 %v328, %v321
        %v413 = vpack.c.bf16 %v329, %v322
        %v414 = vpack.c.bf16 %v330, %v323
        %v415 = vpack.c.bf16 %v338, %v331
        %v416 = vpack.c.bf16 %v339, %v332
        %v417 = vpack.c.bf16 %v340, %v333
        %v418 = vpack.c.bf16 %v341, %v334
        %v419 = vpack.c.bf16 %v342, %v335
        %v420 = vpack.c.bf16 %v343, %v336
        %v421 = vpack.c.bf16 %v344, %v337
        %v422 = vpack.c.bf16 %v352, %v345
        %v423 = vpack.c.bf16 %v353, %v346
        %v424 = vpack.c.bf16 %v354, %v347
        %v425 = vpack.c.bf16 %v355, %v348
        %v426 = vpack.c.bf16 %v356, %v349
        %v427 = vpack.c.bf16 %v357, %v350
        %v428 = vpack.c.bf16 %v358, %v351
        %v429 = vpack.c.bf16 %v366, %v359
        %v430 = vpack.c.bf16 %v367, %v360
        %v431 = vpack.c.bf16 %v368, %v361
        %v432 = vpack.c.bf16 %v369, %v362
        %v433 = vpack.c.bf16 %v370, %v363
        %v434 = vpack.c.bf16 %v371, %v364
        %v435 = vpack.c.bf16 %v372, %v365
        %v436 = vpack.c.bf16 %v380, %v373
        %v437 = vpack.c.bf16 %v381, %v374
        %v438 = vpack.c.bf16 %v382, %v375
        %v439 = vpack.c.bf16 %v383, %v376
        %v440 = vpack.c.bf16 %v384, %v377
        %v441 = vpack.c.bf16 %v385, %v378
        %v442 = vpack.c.bf16 %v386, %v379
        %v443 = vpack.c.bf16 %v394, %v387
        %v444 = vpack.c.bf16 %v395, %v388
        %v445 = vpack.c.bf16 %v396, %v389
        %v446 = vpack.c.bf16 %v397, %v390
        %v447 = vpack.c.bf16 %v398, %v391
        %v448 = vpack.c.bf16 %v399, %v392
        %v449 = vpack.c.bf16 %v400, %v393
        %v450 = vpack.c.bf16 %v401, %v401
        %v451 = vpack.c.bf16 %v402, %v402
        %v452 = vpack.c.bf16 %v403, %v403
        %v453 = vpack.c.bf16 %v404, %v404
        %v454 = vpack.c.bf16 %v405, %v405
        %v455 = vpack.c.bf16 %v406, %v406
        %v456 = vpack.c.bf16 %v407, %v407
        %v457 = vld [vmem:[#allocation5] sm:$0xff]
        %v458 = vld [vmem:[#allocation5 + $0x8] sm:$0xff]
        %v459 = vld [vmem:[#allocation5 + $0x10] sm:$0xff]
        %v460 = vld [vmem:[#allocation5 + $0x18] sm:$0xff]
        %v461 = vld [vmem:[#allocation5 + $0x20] sm:$0xff]
        %v462 = vld [vmem:[#allocation5 + $0x28] sm:$0xff]
        %v463 = vld [vmem:[#allocation5 + $0x30] sm:$0xff]
        %v464 = vld [vmem:[#allocation5 + $0x38] sm:$0xff]
        %v465 = vld [vmem:[#allocation5 + $0x40] sm:$0xff]
        %v466 = vld [vmem:[#allocation5 + $0x48] sm:$0xff]
        %v467 = vld [vmem:[#allocation5 + $0x50] sm:$0xff]
        %v468 = vld [vmem:[#allocation5 + $0x58] sm:$0xff]
        %v469 = vld [vmem:[#allocation5 + $0x60] sm:$0xff]
        %v470 = vld [vmem:[#allocation5 + $0x68] sm:$0xff]
        %v471 = vld [vmem:[#allocation5 + $0x70] sm:$0xff]
        %v472 = vld [vmem:[#allocation5 + $0x78] sm:$0xff]
        %v473 = vld [vmem:[#allocation5 + $0x80] sm:$0xff]
        %v474 = vld [vmem:[#allocation5 + $0x88] sm:$0xff]
        %v475 = vld [vmem:[#allocation5 + $0x90] sm:$0xff]
        %v476 = vld [vmem:[#allocation5 + $0x98] sm:$0xff]
        %v477 = vld [vmem:[#allocation5 + $0xa0] sm:$0xff]
        %v478 = vld [vmem:[#allocation5 + $0xa8] sm:$0xff]
        %v479 = vld [vmem:[#allocation5 + $0xb0] sm:$0xff]
        %v480 = vld [vmem:[#allocation5 + $0xb8] sm:$0xff]
        %v481 = vld [vmem:[#allocation5 + $0xc0] sm:$0xff]
        %v482 = vld [vmem:[#allocation5 + $0xc8] sm:$0xff]
        %v483 = vld [vmem:[#allocation5 + $0xd0] sm:$0xff]
        %v484 = vld [vmem:[#allocation5 + $0xd8] sm:$0xff]
        %v485 = vld [vmem:[#allocation5 + $0xe0] sm:$0xff]
        %v486 = vld [vmem:[#allocation5 + $0xe8] sm:$0xff]
        %v487 = vld [vmem:[#allocation5 + $0xf0] sm:$0xff]
        %v488 = vld [vmem:[#allocation5 + $0xf8] sm:$0xff]
        %v489 = vld [vmem:[#allocation5 + $0x100] sm:$0xff]
        %v490 = vld [vmem:[#allocation5 + $0x108] sm:$0xff]
        %v491 = vld [vmem:[#allocation5 + $0x110] sm:$0xff]
        %v492 = vld [vmem:[#allocation5 + $0x118] sm:$0xff]
        %v493 = vld [vmem:[#allocation5 + $0x120] sm:$0xff]
        %v494 = vld [vmem:[#allocation5 + $0x128] sm:$0xff]
        %v495 = vld [vmem:[#allocation5 + $0x130] sm:$0xff]
        %v496 = vld [vmem:[#allocation5 + $0x138] sm:$0xff]
        %v497 = vld [vmem:[#allocation5 + $0x140] sm:$0xff]
        %v498 = vld [vmem:[#allocation5 + $0x148] sm:$0xff]
        %v499 = vld [vmem:[#allocation5 + $0x150] sm:$0xff]
        %v500 = vld [vmem:[#allocation5 + $0x158] sm:$0xff]
        %v501 = vld [vmem:[#allocation5 + $0x160] sm:$0xff]
        %v502 = vld [vmem:[#allocation5 + $0x168] sm:$0xff]
        %v503 = vld [vmem:[#allocation5 + $0x170] sm:$0xff]
        %v504 = vld [vmem:[#allocation5 + $0x178] sm:$0xff]
        %v505 = vld [vmem:[#allocation5 + $0x180] sm:$0xff]
        %v506 = vld [vmem:[#allocation5 + $0x188] sm:$0xff]
        %v507 = vld [vmem:[#allocation5 + $0x190] sm:$0xff]
        %v508 = vld [vmem:[#allocation5 + $0x198] sm:$0xff]
        %v509 = vld [vmem:[#allocation5 + $0x1a0] sm:$0xff]
        %v510 = vld [vmem:[#allocation5 + $0x1a8] sm:$0xff]
        %v511 = vld [vmem:[#allocation5 + $0x1b0] sm:$0xff]
        %v512 = vld [vmem:[#allocation5 + $0x1b8] sm:$0xff]
        %v513 = vld [vmem:[#allocation5 + $0x1c0] sm:$0xff]
        %v514 = vld [vmem:[#allocation5 + $0x1c8] sm:$0xff]
        %v515 = vld [vmem:[#allocation5 + $0x1d0] sm:$0xff]
        %v516 = vld [vmem:[#allocation5 + $0x1d8] sm:$0xff]
        %v517 = vld [vmem:[#allocation5 + $0x1e0] sm:$0xff]
        %v518 = vld [vmem:[#allocation5 + $0x1e8] sm:$0xff]
        %v519 = vld [vmem:[#allocation5 + $0x1f0] sm:$0xff]
        %v520 = vld [vmem:[#allocation5 + $0x1f8] sm:$0xff]
        %v521 = vld [vmem:[#allocation5 + $0x200] sm:$0xff]
        %v522 = vld [vmem:[#allocation5 + $0x208] sm:$0xff]
        %v523 = vld [vmem:[#allocation5 + $0x210] sm:$0xff]
        %v524 = vld [vmem:[#allocation5 + $0x218] sm:$0xff]
        %v525 = vld [vmem:[#allocation5 + $0x220] sm:$0xff]
        %v526 = vld [vmem:[#allocation5 + $0x228] sm:$0xff]
        %v527 = vld [vmem:[#allocation5 + $0x230] sm:$0xff]
        %v528 = vld [vmem:[#allocation5 + $0x238] sm:$0xff]
        %v529 = vld [vmem:[#allocation5 + $0x240] sm:$0xff]
        %v530 = vld [vmem:[#allocation5 + $0x248] sm:$0xff]
        %v531 = vld [vmem:[#allocation5 + $0x250] sm:$0xff]
        %v532 = vld [vmem:[#allocation5 + $0x258] sm:$0xff]
        %v533 = vld [vmem:[#allocation5 + $0x260] sm:$0xff]
        %v534 = vld [vmem:[#allocation5 + $0x268] sm:$0xff]
        %v535 = vld [vmem:[#allocation5 + $0x270] sm:$0xff]
        %v536 = vld [vmem:[#allocation5 + $0x278] sm:$0xff]
        %v537 = vld [vmem:[#allocation5 + $0x280] sm:$0xff]
        %v538 = vld [vmem:[#allocation5 + $0x288] sm:$0xff]
        %v539 = vld [vmem:[#allocation5 + $0x290] sm:$0xff]
        %v540 = vld [vmem:[#allocation5 + $0x298] sm:$0xff]
        %v541 = vld [vmem:[#allocation5 + $0x2a0] sm:$0xff]
        %v542 = vld [vmem:[#allocation5 + $0x2a8] sm:$0xff]
        %v543 = vld [vmem:[#allocation5 + $0x2b0] sm:$0xff]
        %v544 = vld [vmem:[#allocation5 + $0x2b8] sm:$0xff]
        %v545 = vld [vmem:[#allocation5 + $0x2c0] sm:$0xff]
        %v546 = vld [vmem:[#allocation5 + $0x2c8] sm:$0xff]
        %v547 = vld [vmem:[#allocation5 + $0x2d0] sm:$0xff]
        %v548 = vld [vmem:[#allocation5 + $0x2d8] sm:$0xff]
        %v549 = vld [vmem:[#allocation5 + $0x2e0] sm:$0xff]
        %v550 = vld [vmem:[#allocation5 + $0x2e8] sm:$0xff]
        %v551 = vld [vmem:[#allocation5 + $0x2f0] sm:$0xff]
        %v552 = vld [vmem:[#allocation5 + $0x2f8] sm:$0xff]
        %v553 = vld [vmem:[#allocation5 + $0x300] sm:$0xff]
        %v554 = vld [vmem:[#allocation5 + $0x308] sm:$0xff]
        %v555 = vld [vmem:[#allocation5 + $0x310] sm:$0xff]
        %v556 = vld [vmem:[#allocation5 + $0x318] sm:$0xff]
        %v557 = vld [vmem:[#allocation5 + $0x320] sm:$0xff]
        %v558 = vld [vmem:[#allocation5 + $0x328] sm:$0xff]
        %v559 = vld [vmem:[#allocation5 + $0x330] sm:$0xff]
        %v560 = vld [vmem:[#allocation5 + $0x338] sm:$0xff]
        %v561 = vld [vmem:[#allocation5 + $0x340] sm:$0xff]
        %v562 = vld [vmem:[#allocation5 + $0x348] sm:$0xff]
        %v563 = vld [vmem:[#allocation5 + $0x350] sm:$0xff]
        %v564 = vld [vmem:[#allocation5 + $0x358] sm:$0xff]
        %v565 = vld [vmem:[#allocation5 + $0x360] sm:$0xff]
        %v566 = vld [vmem:[#allocation5 + $0x368] sm:$0xff]
        %v567 = vld [vmem:[#allocation5 + $0x370] sm:$0xff]
        %v568 = vld [vmem:[#allocation5 + $0x378] sm:$0xff]
        %v569 = vld [vmem:[#allocation5 + $0x380] sm:$0xff]
        %v570 = vld [vmem:[#allocation5 + $0x388] sm:$0xff]
        %v571 = vld [vmem:[#allocation5 + $0x390] sm:$0xff]
        %v572 = vld [vmem:[#allocation5 + $0x398] sm:$0xff]
        %v573 = vld [vmem:[#allocation5 + $0x3a0] sm:$0xff]
        %v574 = vld [vmem:[#allocation5 + $0x3a8] sm:$0xff]
        %v575 = vld [vmem:[#allocation5 + $0x3b0] sm:$0xff]
        %v576 = vld [vmem:[#allocation5 + $0x3b8] sm:$0xff]
        %v577 = vld [vmem:[#allocation5 + $0x3c0] sm:$0xff]
        %v578 = vld [vmem:[#allocation5 + $0x3c8] sm:$0xff]
        %v579 = vld [vmem:[#allocation5 + $0x3d0] sm:$0xff]
        %v580 = vld [vmem:[#allocation5 + $0x3d8] sm:$0xff]
        %v581 = vld [vmem:[#allocation5 + $0x3e0] sm:$0xff]
        %v582 = vld [vmem:[#allocation5 + $0x3e8] sm:$0xff]
        %v583 = vld [vmem:[#allocation5 + $0x3f0] sm:$0xff]
        %v584 = vld [vmem:[#allocation5 + $0x3f8] sm:$0xff]
        %v585 = vld [vmem:[#allocation5 + $0x400] sm:$0xff]
        %v586 = vld [vmem:[#allocation5 + $0x408] sm:$0xff]
        %v587 = vld [vmem:[#allocation5 + $0x410] sm:$0xff]
        %v588 = vld [vmem:[#allocation5 + $0x418] sm:$0xff]
        %v589 = vld [vmem:[#allocation5 + $0x420] sm:$0xff]
        %v590 = vld [vmem:[#allocation5 + $0x428] sm:$0xff]
        %v591 = vld [vmem:[#allocation5 + $0x430] sm:$0xff]
        %v592 = vld [vmem:[#allocation5 + $0x438] sm:$0xff]
        %v593 = vld [vmem:[#allocation5 + $0x440] sm:$0xff]
        %v594 = vld [vmem:[#allocation5 + $0x448] sm:$0xff]
        %v595 = vld [vmem:[#allocation5 + $0x450] sm:$0xff]
        %v596 = vld [vmem:[#allocation5 + $0x458] sm:$0xff]
        %v597 = vld [vmem:[#allocation5 + $0x460] sm:$0xff]
        %v598 = vld [vmem:[#allocation5 + $0x468] sm:$0xff]
        %v599 = vld [vmem:[#allocation5 + $0x470] sm:$0xff]
        %v600 = vld [vmem:[#allocation5 + $0x478] sm:$0xff]
        %v601 = vld [vmem:[#allocation5 + $0x480] sm:$0xff]
        %v602 = vld [vmem:[#allocation5 + $0x488] sm:$0xff]
        %v603 = vld [vmem:[#allocation5 + $0x490] sm:$0xff]
        %v604 = vld [vmem:[#allocation5 + $0x498] sm:$0xff]
        %v605 = vld [vmem:[#allocation5 + $0x4a0] sm:$0xff]
        %v606 = vld [vmem:[#allocation5 + $0x4a8] sm:$0xff]
        %v607 = vld [vmem:[#allocation5 + $0x4b0] sm:$0xff]
        %v608 = vld [vmem:[#allocation5 + $0x4b8] sm:$0xff]
        %v609 = vld [vmem:[#allocation5 + $0x4c0] sm:$0xff]
        %v610 = vld [vmem:[#allocation5 + $0x4c8] sm:$0xff]
        %v611 = vld [vmem:[#allocation5 + $0x4d0] sm:$0xff]
        %v612 = vld [vmem:[#allocation5 + $0x4d8] sm:$0xff]
        %v613 = vld [vmem:[#allocation5 + $0x4e0] sm:$0xff]
        %v614 = vld [vmem:[#allocation5 + $0x4e8] sm:$0xff]
        %v615 = vld [vmem:[#allocation5 + $0x4f0] sm:$0xff]
        %v616 = vld [vmem:[#allocation5 + $0x4f8] sm:$0xff]
        %v617 = vld [vmem:[#allocation5 + $0x500] sm:$0xff]
        %v618 = vld [vmem:[#allocation5 + $0x508] sm:$0xff]
        %v619 = vld [vmem:[#allocation5 + $0x510] sm:$0xff]
        %v620 = vld [vmem:[#allocation5 + $0x518] sm:$0xff]
        %v621 = vld [vmem:[#allocation5 + $0x520] sm:$0xff]
        %v622 = vld [vmem:[#allocation5 + $0x528] sm:$0xff]
        %v623 = vld [vmem:[#allocation5 + $0x530] sm:$0xff]
        %v624 = vld [vmem:[#allocation5 + $0x538] sm:$0xff]
        %v625 = vld [vmem:[#allocation5 + $0x540] sm:$0xff]
        %v626 = vld [vmem:[#allocation5 + $0x548] sm:$0xff]
        %v627 = vld [vmem:[#allocation5 + $0x550] sm:$0xff]
        %v628 = vld [vmem:[#allocation5 + $0x558] sm:$0xff]
        %v629 = vld [vmem:[#allocation5 + $0x560] sm:$0xff]
        %v630 = vld [vmem:[#allocation5 + $0x568] sm:$0xff]
        %v631 = vld [vmem:[#allocation5 + $0x570] sm:$0xff]
        %v632 = vld [vmem:[#allocation5 + $0x578] sm:$0xff]
        %v633 = vld [vmem:[#allocation5 + $0x580] sm:$0xff]
        %v634 = vld [vmem:[#allocation5 + $0x588] sm:$0xff]
        %v635 = vld [vmem:[#allocation5 + $0x590] sm:$0xff]
        %v636 = vld [vmem:[#allocation5 + $0x598] sm:$0xff]
        %v637 = vld [vmem:[#allocation5 + $0x5a0] sm:$0xff]
        %v638 = vld [vmem:[#allocation5 + $0x5a8] sm:$0xff]
        %v639 = vld [vmem:[#allocation5 + $0x5b0] sm:$0xff]
        %v640 = vld [vmem:[#allocation5 + $0x5b8] sm:$0xff]
        %v641 = vld [vmem:[#allocation5 + $0x5c0] sm:$0xff]
        %v642 = vld [vmem:[#allocation5 + $0x5c8] sm:$0xff]
        %v643 = vld [vmem:[#allocation5 + $0x5d0] sm:$0xff]
        %v644 = vld [vmem:[#allocation5 + $0x5d8] sm:$0xff]
        %v645 = vld [vmem:[#allocation5 + $0x5e0] sm:$0xff]
        %v646 = vld [vmem:[#allocation5 + $0x5e8] sm:$0xff]
        %v647 = vld [vmem:[#allocation5 + $0x5f0] sm:$0xff]
        %v648 = vld [vmem:[#allocation5 + $0x5f8] sm:$0xff]
        %v649 = vld [vmem:[#allocation5 + $0x600] sm:$0xff]
        %v650 = vld [vmem:[#allocation5 + $0x608] sm:$0xff]
        %v651 = vld [vmem:[#allocation5 + $0x610] sm:$0xff]
        %v652 = vld [vmem:[#allocation5 + $0x618] sm:$0xff]
        %v653 = vld [vmem:[#allocation5 + $0x620] sm:$0xff]
        %v654 = vld [vmem:[#allocation5 + $0x628] sm:$0xff]
        %v655 = vld [vmem:[#allocation5 + $0x630] sm:$0xff]
        %v656 = vld [vmem:[#allocation5 + $0x638] sm:$0xff]
        %v657 = vld [vmem:[#allocation5 + $0x640] sm:$0xff]
        %v658 = vld [vmem:[#allocation5 + $0x648] sm:$0xff]
        %v659 = vld [vmem:[#allocation5 + $0x650] sm:$0xff]
        %v660 = vld [vmem:[#allocation5 + $0x658] sm:$0xff]
        %v661 = vld [vmem:[#allocation5 + $0x660] sm:$0xff]
        %v662 = vld [vmem:[#allocation5 + $0x668] sm:$0xff]
        %v663 = vld [vmem:[#allocation5 + $0x670] sm:$0xff]
        %v664 = vld [vmem:[#allocation5 + $0x678] sm:$0xff]
        %v665 = vld [vmem:[#allocation5 + $0x680] sm:$0xff]
        %v666 = vld [vmem:[#allocation5 + $0x688] sm:$0xff]
        %v667 = vld [vmem:[#allocation5 + $0x690] sm:$0xff]
        %v668 = vld [vmem:[#allocation5 + $0x698] sm:$0xff]
        %v669 = vld [vmem:[#allocation5 + $0x6a0] sm:$0xff]
        %v670 = vld [vmem:[#allocation5 + $0x6a8] sm:$0xff]
        %v671 = vld [vmem:[#allocation5 + $0x6b0] sm:$0xff]
        %v672 = vld [vmem:[#allocation5 + $0x6b8] sm:$0xff]
        %v673 = vld [vmem:[#allocation5 + $0x6c0] sm:$0xff]
        %v674 = vld [vmem:[#allocation5 + $0x6c8] sm:$0xff]
        %v675 = vld [vmem:[#allocation5 + $0x6d0] sm:$0xff]
        %v676 = vld [vmem:[#allocation5 + $0x6d8] sm:$0xff]
        %v677 = vld [vmem:[#allocation5 + $0x6e0] sm:$0xff]
        %v678 = vld [vmem:[#allocation5 + $0x6e8] sm:$0xff]
        %v679 = vld [vmem:[#allocation5 + $0x6f0] sm:$0xff]
        %v680 = vld [vmem:[#allocation5 + $0x6f8] sm:$0xff]
        %v681 = vld [vmem:[#allocation5 + $0x700] sm:$0xff]
        %v682 = vld [vmem:[#allocation5 + $0x708] sm:$0xff]
        %v683 = vld [vmem:[#allocation5 + $0x710] sm:$0xff]
        %v684 = vld [vmem:[#allocation5 + $0x718] sm:$0xff]
        %v685 = vld [vmem:[#allocation5 + $0x720] sm:$0xff]
        %v686 = vld [vmem:[#allocation5 + $0x728] sm:$0xff]
        %v687 = vld [vmem:[#allocation5 + $0x730] sm:$0xff]
        %v688 = vld [vmem:[#allocation5 + $0x738] sm:$0xff]
        %v689 = vld [vmem:[#allocation5 + $0x740] sm:$0xff]
        %v690 = vld [vmem:[#allocation5 + $0x748] sm:$0xff]
        %v691 = vld [vmem:[#allocation5 + $0x750] sm:$0xff]
        %v692 = vld [vmem:[#allocation5 + $0x758] sm:$0xff]
        %v693 = vld [vmem:[#allocation5 + $0x760] sm:$0xff]
        %v694 = vld [vmem:[#allocation5 + $0x768] sm:$0xff]
        %v695 = vld [vmem:[#allocation5 + $0x770] sm:$0xff]
        %v696 = vld [vmem:[#allocation5 + $0x778] sm:$0xff]
        %v697 = vld [vmem:[#allocation5 + $0x780] sm:$0xff]
        %v698 = vld [vmem:[#allocation5 + $0x788] sm:$0xff]
        %v699 = vld [vmem:[#allocation5 + $0x790] sm:$0xff]
        %v700 = vld [vmem:[#allocation5 + $0x798] sm:$0xff]
        %v701 = vld [vmem:[#allocation5 + $0x7a0] sm:$0xff]
        %v702 = vld [vmem:[#allocation5 + $0x7a8] sm:$0xff]
        %v703 = vld [vmem:[#allocation5 + $0x7b0] sm:$0xff]
        %v704 = vld [vmem:[#allocation5 + $0x7b8] sm:$0xff]
        %v705 = vld [vmem:[#allocation5 + $0x7c0] sm:$0xff]
        %v706 = vld [vmem:[#allocation5 + $0x7c8] sm:$0xff]
        %v707 = vld [vmem:[#allocation5 + $0x7d0] sm:$0xff]
        %v708 = vld [vmem:[#allocation5 + $0x7d8] sm:$0xff]
        %v709 = vld [vmem:[#allocation5 + $0x7e0] sm:$0xff]
        %v710 = vld [vmem:[#allocation5 + $0x7e8] sm:$0xff]
        %v711 = vld [vmem:[#allocation5 + $0x7f0] sm:$0xff]
        %v712 = vld [vmem:[#allocation5 + $0x7f8] sm:$0xff]
        %v713 = vld [vmem:[#allocation5 + $0x800] sm:$0xff]
        %v714 = vld [vmem:[#allocation5 + $0x808] sm:$0xff]
        %v715 = vld [vmem:[#allocation5 + $0x810] sm:$0xff]
        %v716 = vld [vmem:[#allocation5 + $0x818] sm:$0xff]
        %v717 = vld [vmem:[#allocation5 + $0x820] sm:$0xff]
        %v718 = vld [vmem:[#allocation5 + $0x828] sm:$0xff]
        %v719 = vld [vmem:[#allocation5 + $0x830] sm:$0xff]
        %v720 = vld [vmem:[#allocation5 + $0x838] sm:$0xff]
        %v721 = vld [vmem:[#allocation5 + $0x840] sm:$0xff]
        %v722 = vld [vmem:[#allocation5 + $0x848] sm:$0xff]
        %v723 = vld [vmem:[#allocation5 + $0x850] sm:$0xff]
        %v724 = vld [vmem:[#allocation5 + $0x858] sm:$0xff]
        %v725 = vld [vmem:[#allocation5 + $0x860] sm:$0xff]
        %v726 = vld [vmem:[#allocation5 + $0x868] sm:$0xff]
        %v727 = vld [vmem:[#allocation5 + $0x870] sm:$0xff]
        %v728 = vld [vmem:[#allocation5 + $0x878] sm:$0xff]
        %v729 = vld [vmem:[#allocation5 + $0x880] sm:$0xff]
        %v730 = vld [vmem:[#allocation5 + $0x888] sm:$0xff]
        %v731 = vld [vmem:[#allocation5 + $0x890] sm:$0xff]
        %v732 = vld [vmem:[#allocation5 + $0x898] sm:$0xff]
        %v733 = vld [vmem:[#allocation5 + $0x8a0] sm:$0xff]
        %v734 = vld [vmem:[#allocation5 + $0x8a8] sm:$0xff]
        %v735 = vld [vmem:[#allocation5 + $0x8b0] sm:$0xff]
        %v736 = vld [vmem:[#allocation5 + $0x8b8] sm:$0xff]
        %v737 = vld [vmem:[#allocation5 + $0x8c0] sm:$0xff]
        %v738 = vld [vmem:[#allocation5 + $0x8c8] sm:$0xff]
        %v739 = vld [vmem:[#allocation5 + $0x8d0] sm:$0xff]
        %v740 = vld [vmem:[#allocation5 + $0x8d8] sm:$0xff]
        %v741 = vld [vmem:[#allocation5 + $0x8e0] sm:$0xff]
        %v742 = vld [vmem:[#allocation5 + $0x8e8] sm:$0xff]
        %v743 = vld [vmem:[#allocation5 + $0x8f0] sm:$0xff]
        %v744 = vld [vmem:[#allocation5 + $0x8f8] sm:$0xff]
        %v745 = vld [vmem:[#allocation5 + $0x900] sm:$0xff]
        %v746 = vld [vmem:[#allocation5 + $0x908] sm:$0xff]
        %v747 = vld [vmem:[#allocation5 + $0x910] sm:$0xff]
        %v748 = vld [vmem:[#allocation5 + $0x918] sm:$0xff]
        %v749 = vld [vmem:[#allocation5 + $0x920] sm:$0xff]
        %v750 = vld [vmem:[#allocation5 + $0x928] sm:$0xff]
        %v751 = vld [vmem:[#allocation5 + $0x930] sm:$0xff]
        %v752 = vld [vmem:[#allocation5 + $0x938] sm:$0xff]
        %v753 = vld [vmem:[#allocation5 + $0x940] sm:$0xff]
        %v754 = vld [vmem:[#allocation5 + $0x948] sm:$0xff]
        %v755 = vld [vmem:[#allocation5 + $0x950] sm:$0xff]
        %v756 = vld [vmem:[#allocation5 + $0x958] sm:$0xff]
        %v757 = vld [vmem:[#allocation5 + $0x960] sm:$0xff]
        %v758 = vld [vmem:[#allocation5 + $0x968] sm:$0xff]
        %v759 = vld [vmem:[#allocation5 + $0x970] sm:$0xff]
        %v760 = vld [vmem:[#allocation5 + $0x978] sm:$0xff]
        %v761 = vld [vmem:[#allocation5 + $0x980] sm:$0xff]
        %v762 = vld [vmem:[#allocation5 + $0x988] sm:$0xff]
        %v763 = vld [vmem:[#allocation5 + $0x990] sm:$0xff]
        %v764 = vld [vmem:[#allocation5 + $0x998] sm:$0xff]
        %v765 = vld [vmem:[#allocation5 + $0x9a0] sm:$0xff]
        %v766 = vld [vmem:[#allocation5 + $0x9a8] sm:$0xff]
        %v767 = vld [vmem:[#allocation5 + $0x9b0] sm:$0xff]
        %v768 = vld [vmem:[#allocation5 + $0x9b8] sm:$0xff]
        %v769 = vld [vmem:[#allocation5 + $0x9c0] sm:$0xff]
        %v770 = vld [vmem:[#allocation5 + $0x9c8] sm:$0xff]
        %v771 = vld [vmem:[#allocation5 + $0x9d0] sm:$0xff]
        %v772 = vld [vmem:[#allocation5 + $0x9d8] sm:$0xff]
        %v773 = vld [vmem:[#allocation5 + $0x9e0] sm:$0xff]
        %v774 = vld [vmem:[#allocation5 + $0x9e8] sm:$0xff]
        %v775 = vld [vmem:[#allocation5 + $0x9f0] sm:$0xff]
        %v776 = vld [vmem:[#allocation5 + $0x9f8] sm:$0xff]
        %v777 = vld [vmem:[#allocation5 + $0xa00] sm:$0xff]
        %v778 = vld [vmem:[#allocation5 + $0xa08] sm:$0xff]
        %v779 = vld [vmem:[#allocation5 + $0xa10] sm:$0xff]
        %v780 = vld [vmem:[#allocation5 + $0xa18] sm:$0xff]
        %v781 = vld [vmem:[#allocation5 + $0xa20] sm:$0xff]
        %v782 = vld [vmem:[#allocation5 + $0xa28] sm:$0xff]
        %v783 = vld [vmem:[#allocation5 + $0xa30] sm:$0xff]
        %v784 = vld [vmem:[#allocation5 + $0xa38] sm:$0xff]
        %v785 = vld [vmem:[#allocation5 + $0xa40] sm:$0xff]
        %v786 = vld [vmem:[#allocation5 + $0xa48] sm:$0xff]
        %v787 = vld [vmem:[#allocation5 + $0xa50] sm:$0xff]
        %v788 = vld [vmem:[#allocation5 + $0xa58] sm:$0xff]
        %v789 = vld [vmem:[#allocation5 + $0xa60] sm:$0xff]
        %v790 = vld [vmem:[#allocation5 + $0xa68] sm:$0xff]
        %v791 = vld [vmem:[#allocation5 + $0xa70] sm:$0xff]
        %v792 = vld [vmem:[#allocation5 + $0xa78] sm:$0xff]
        %v793 = vld [vmem:[#allocation5 + $0xa80] sm:$0xff]
        %v794 = vld [vmem:[#allocation5 + $0xa88] sm:$0xff]
        %v795 = vld [vmem:[#allocation5 + $0xa90] sm:$0xff]
        %v796 = vld [vmem:[#allocation5 + $0xa98] sm:$0xff]
        %v797 = vld [vmem:[#allocation5 + $0xaa0] sm:$0xff]
        %v798 = vld [vmem:[#allocation5 + $0xaa8] sm:$0xff]
        %v799 = vld [vmem:[#allocation5 + $0xab0] sm:$0xff]
        %v800 = vld [vmem:[#allocation5 + $0xab8] sm:$0xff]
        %v801 = vld [vmem:[#allocation5 + $0xac0] sm:$0xff]
        %v802 = vld [vmem:[#allocation5 + $0xac8] sm:$0xff]
        %v803 = vld [vmem:[#allocation5 + $0xad0] sm:$0xff]
        %v804 = vld [vmem:[#allocation5 + $0xad8] sm:$0xff]
        %v805 = vld [vmem:[#allocation5 + $0xae0] sm:$0xff]
        %v806 = vld [vmem:[#allocation5 + $0xae8] sm:$0xff]
        %v807 = vld [vmem:[#allocation5 + $0xaf0] sm:$0xff]
        %v808 = vld [vmem:[#allocation5 + $0xaf8] sm:$0xff]
        %v809 = vld [vmem:[#allocation5 + $0xb00] sm:$0xff]
        %v810 = vld [vmem:[#allocation5 + $0xb08] sm:$0xff]
        %v811 = vld [vmem:[#allocation5 + $0xb10] sm:$0xff]
        %v812 = vld [vmem:[#allocation5 + $0xb18] sm:$0xff]
        %v813 = vld [vmem:[#allocation5 + $0xb20] sm:$0xff]
        %v814 = vld [vmem:[#allocation5 + $0xb28] sm:$0xff]
        %v815 = vld [vmem:[#allocation5 + $0xb30] sm:$0xff]
        %v816 = vld [vmem:[#allocation5 + $0xb38] sm:$0xff]
        %v817 = vld [vmem:[#allocation5 + $0xb40] sm:$0xff]
        %v818 = vld [vmem:[#allocation5 + $0xb48] sm:$0xff]
        %v819 = vld [vmem:[#allocation5 + $0xb50] sm:$0xff]
        %v820 = vld [vmem:[#allocation5 + $0xb58] sm:$0xff]
        %v821 = vld [vmem:[#allocation5 + $0xb60] sm:$0xff]
        %v822 = vld [vmem:[#allocation5 + $0xb68] sm:$0xff]
        %v823 = vld [vmem:[#allocation5 + $0xb70] sm:$0xff]
        %v824 = vld [vmem:[#allocation5 + $0xb78] sm:$0xff]
        %v825 = vld [vmem:[#allocation5 + $0xb80] sm:$0xff]
        %v826 = vld [vmem:[#allocation5 + $0xb88] sm:$0xff]
        %v827 = vld [vmem:[#allocation5 + $0xb90] sm:$0xff]
        %v828 = vld [vmem:[#allocation5 + $0xb98] sm:$0xff]
        %v829 = vld [vmem:[#allocation5 + $0xba0] sm:$0xff]
        %v830 = vld [vmem:[#allocation5 + $0xba8] sm:$0xff]
        %v831 = vld [vmem:[#allocation5 + $0xbb0] sm:$0xff]
        %v832 = vld [vmem:[#allocation5 + $0xbb8] sm:$0xff]
        %v833 = vld [vmem:[#allocation5 + $0xbc0] sm:$0xff]
        %v834 = vld [vmem:[#allocation5 + $0xbc8] sm:$0xff]
        %v835 = vld [vmem:[#allocation5 + $0xbd0] sm:$0xff]
        %v836 = vld [vmem:[#allocation5 + $0xbd8] sm:$0xff]
        %v837 = vld [vmem:[#allocation5 + $0xbe0] sm:$0xff]
        %v838 = vld [vmem:[#allocation5 + $0xbe8] sm:$0xff]
        %v839 = vld [vmem:[#allocation5 + $0xbf0] sm:$0xff]
        %v840 = vld [vmem:[#allocation5 + $0xbf8] sm:$0xff]
        %v841 = vld [vmem:[#allocation5 + $0xc00] sm:$0xff]
        %v842 = vld [vmem:[#allocation5 + $0xc08] sm:$0xff]
        %v843 = vld [vmem:[#allocation5 + $0xc10] sm:$0xff]
        %v844 = vld [vmem:[#allocation5 + $0xc18] sm:$0xff]
        %v845 = vld [vmem:[#allocation5 + $0xc20] sm:$0xff]
        %v846 = vld [vmem:[#allocation5 + $0xc28] sm:$0xff]
        %v847 = vld [vmem:[#allocation5 + $0xc30] sm:$0xff]
        %v848 = vld [vmem:[#allocation5 + $0xc38] sm:$0xff]
        %v849 = vld [vmem:[#allocation7] sm:$0xff]
        %v851 = vlaneseq
        %v852 = vshrl.u32 %v851, 7
        %v853 = vsub.s32 0, %v852
        %v854 = vrot.slane %v849, %v853
        %v855 = vlaneseq
        %v856 = vshrl.u32 %v855, 7
        %v857 = vsub.s32 1, %v856
        %v858 = vrot.slane %v849, %v857
        %v859 = vlaneseq
        %v860 = vshrl.u32 %v859, 7
        %v861 = vsub.s32 2, %v860
        %v862 = vrot.slane %v849, %v861
        %v863 = vlaneseq
        %v864 = vshrl.u32 %v863, 7
        %v865 = vsub.s32 3, %v864
        %v866 = vrot.slane %v849, %v865
        %v867 = vlaneseq
        %v868 = vshrl.u32 %v867, 7
        %v869 = vsub.s32 4, %v868
        %v870 = vrot.slane %v849, %v869
        %v871 = vlaneseq
        %v872 = vshrl.u32 %v871, 7
        %v873 = vsub.s32 5, %v872
        %v874 = vrot.slane %v849, %v873
        %v875 = vlaneseq
        %v876 = vshrl.u32 %v875, 7
        %v877 = vsub.s32 6, %v876
        %v878 = vrot.slane %v849, %v877
        %v879 = vlaneseq
        %v880 = vshrl.u32 %v879, 7
        %v881 = vsub.s32 7, %v880
        %v882 = vrot.slane %v849, %v881
        %v1283 = vunpack.c.l.b16 %v457
        %v1284 = vunpack.c.h.b16 %v457
        %v1285 = vunpack.c.l.b16 %v458
        %v1286 = vunpack.c.h.b16 %v458
        %v1287 = vunpack.c.l.b16 %v459
        %v1288 = vunpack.c.h.b16 %v459
        %v1289 = vunpack.c.l.b16 %v460
        %v1290 = vunpack.c.h.b16 %v460
        %v1291 = vunpack.c.l.b16 %v461
        %v1292 = vunpack.c.h.b16 %v461
        %v1293 = vunpack.c.l.b16 %v462
        %v1294 = vunpack.c.h.b16 %v462
        %v1295 = vunpack.c.l.b16 %v463
        %v1296 = vunpack.c.h.b16 %v463
        %v1297 = vunpack.c.l.b16 %v464
        %v1298 = vunpack.c.h.b16 %v464
        %v1299 = vunpack.c.l.b16 %v465
        %v1300 = vunpack.c.h.b16 %v465
        %v1301 = vunpack.c.l.b16 %v466
        %v1302 = vunpack.c.h.b16 %v466
        %v1303 = vunpack.c.l.b16 %v467
        %v1304 = vunpack.c.h.b16 %v467
        %v1305 = vunpack.c.l.b16 %v468
        %v1306 = vunpack.c.h.b16 %v468
        %v1307 = vunpack.c.l.b16 %v469
        %v1308 = vunpack.c.h.b16 %v469
        %v1309 = vunpack.c.l.b16 %v470
        %v1310 = vunpack.c.h.b16 %v470
        %v1311 = vunpack.c.l.b16 %v471
        %v1312 = vunpack.c.h.b16 %v471
        %v1313 = vunpack.c.l.b16 %v472
        %v1314 = vunpack.c.h.b16 %v472
        %v1315 = vunpack.c.l.b16 %v473
        %v1316 = vunpack.c.h.b16 %v473
        %v1317 = vunpack.c.l.b16 %v474
        %v1318 = vunpack.c.h.b16 %v474
        %v1319 = vunpack.c.l.b16 %v475
        %v1320 = vunpack.c.h.b16 %v475
        %v1321 = vunpack.c.l.b16 %v476
        %v1322 = vunpack.c.h.b16 %v476
        %v1323 = vunpack.c.l.b16 %v477
        %v1324 = vunpack.c.h.b16 %v477
        %v1325 = vunpack.c.l.b16 %v478
        %v1326 = vunpack.c.h.b16 %v478
        %v1327 = vunpack.c.l.b16 %v479
        %v1328 = vunpack.c.h.b16 %v479
        %v1329 = vunpack.c.l.b16 %v480
        %v1330 = vunpack.c.h.b16 %v480
        %v1331 = vunpack.c.l.b16 %v481
        %v1332 = vunpack.c.h.b16 %v481
        %v1333 = vunpack.c.l.b16 %v482
        %v1334 = vunpack.c.h.b16 %v482
        %v1335 = vunpack.c.l.b16 %v483
        %v1336 = vunpack.c.h.b16 %v483
        %v1337 = vunpack.c.l.b16 %v484
        %v1338 = vunpack.c.h.b16 %v484
        %v1339 = vunpack.c.l.b16 %v485
        %v1340 = vunpack.c.h.b16 %v485
        %v1341 = vunpack.c.l.b16 %v486
        %v1342 = vunpack.c.h.b16 %v486
        %v1343 = vunpack.c.l.b16 %v487
        %v1344 = vunpack.c.h.b16 %v487
        %v1345 = vunpack.c.l.b16 %v488
        %v1346 = vunpack.c.h.b16 %v488
        %v1347 = vunpack.c.l.b16 %v489
        %v1348 = vunpack.c.h.b16 %v489
        %v1349 = vunpack.c.l.b16 %v490
        %v1350 = vunpack.c.h.b16 %v490
        %v1351 = vunpack.c.l.b16 %v491
        %v1352 = vunpack.c.h.b16 %v491
        %v1353 = vunpack.c.l.b16 %v492
        %v1354 = vunpack.c.h.b16 %v492
        %v1355 = vunpack.c.l.b16 %v493
        %v1356 = vunpack.c.h.b16 %v493
        %v1357 = vunpack.c.l.b16 %v494
        %v1358 = vunpack.c.h.b16 %v494
        %v1359 = vunpack.c.l.b16 %v495
        %v1360 = vunpack.c.h.b16 %v495
        %v1361 = vunpack.c.l.b16 %v496
        %v1362 = vunpack.c.h.b16 %v496
        %v1363 = vunpack.c.l.b16 %v497
        %v1364 = vunpack.c.h.b16 %v497
        %v1365 = vunpack.c.l.b16 %v498
        %v1366 = vunpack.c.h.b16 %v498
        %v1367 = vunpack.c.l.b16 %v499
        %v1368 = vunpack.c.h.b16 %v499
        %v1369 = vunpack.c.l.b16 %v500
        %v1370 = vunpack.c.h.b16 %v500
        %v1371 = vunpack.c.l.b16 %v501
        %v1372 = vunpack.c.h.b16 %v501
        %v1373 = vunpack.c.l.b16 %v502
        %v1374 = vunpack.c.h.b16 %v502
        %v1375 = vunpack.c.l.b16 %v503
        %v1376 = vunpack.c.h.b16 %v503
        %v1377 = vunpack.c.l.b16 %v504
        %v1378 = vunpack.c.h.b16 %v504
        %v1379 = vunpack.c.l.b16 %v505
        %v1380 = vunpack.c.h.b16 %v505
        %v1381 = vunpack.c.l.b16 %v506
        %v1382 = vunpack.c.h.b16 %v506
        %v1383 = vunpack.c.l.b16 %v507
        %v1384 = vunpack.c.h.b16 %v507
        %v1385 = vunpack.c.l.b16 %v508
        %v1386 = vunpack.c.h.b16 %v508
        %v1387 = vunpack.c.l.b16 %v509
        %v1388 = vunpack.c.h.b16 %v509
        %v1389 = vunpack.c.l.b16 %v510
        %v1390 = vunpack.c.h.b16 %v510
        %v1391 = vunpack.c.l.b16 %v511
        %v1392 = vunpack.c.h.b16 %v511
        %v1393 = vunpack.c.l.b16 %v512
        %v1394 = vunpack.c.h.b16 %v512
        %v1395 = vunpack.c.l.b16 %v513
        %v1396 = vunpack.c.h.b16 %v513
        %v1397 = vunpack.c.l.b16 %v514
        %v1398 = vunpack.c.h.b16 %v514
        %v1399 = vunpack.c.l.b16 %v515
        %v1400 = vunpack.c.h.b16 %v515
        %v1401 = vunpack.c.l.b16 %v516
        %v1402 = vunpack.c.h.b16 %v516
        %v1403 = vunpack.c.l.b16 %v517
        %v1404 = vunpack.c.h.b16 %v517
        %v1405 = vunpack.c.l.b16 %v518
        %v1406 = vunpack.c.h.b16 %v518
        %v1407 = vunpack.c.l.b16 %v519
        %v1408 = vunpack.c.h.b16 %v519
        %v1409 = vunpack.c.l.b16 %v520
        %v1410 = vunpack.c.h.b16 %v520
        %v1411 = vunpack.c.l.b16 %v521
        %v1412 = vunpack.c.h.b16 %v521
        %v1413 = vunpack.c.l.b16 %v522
        %v1414 = vunpack.c.h.b16 %v522
        %v1415 = vunpack.c.l.b16 %v523
        %v1416 = vunpack.c.h.b16 %v523
        %v1417 = vunpack.c.l.b16 %v524
        %v1418 = vunpack.c.h.b16 %v524
        %v1419 = vunpack.c.l.b16 %v525
        %v1420 = vunpack.c.h.b16 %v525
        %v1421 = vunpack.c.l.b16 %v526
        %v1422 = vunpack.c.h.b16 %v526
        %v1423 = vunpack.c.l.b16 %v527
        %v1424 = vunpack.c.h.b16 %v527
        %v1425 = vunpack.c.l.b16 %v528
        %v1426 = vunpack.c.h.b16 %v528
        %v1427 = vunpack.c.l.b16 %v529
        %v1428 = vunpack.c.h.b16 %v529
        %v1429 = vunpack.c.l.b16 %v530
        %v1430 = vunpack.c.h.b16 %v530
        %v1431 = vunpack.c.l.b16 %v531
        %v1432 = vunpack.c.h.b16 %v531
        %v1433 = vunpack.c.l.b16 %v532
        %v1434 = vunpack.c.h.b16 %v532
        %v1435 = vunpack.c.l.b16 %v533
        %v1436 = vunpack.c.h.b16 %v533
        %v1437 = vunpack.c.l.b16 %v534
        %v1438 = vunpack.c.h.b16 %v534
        %v1439 = vunpack.c.l.b16 %v535
        %v1440 = vunpack.c.h.b16 %v535
        %v1441 = vunpack.c.l.b16 %v536
        %v1442 = vunpack.c.h.b16 %v536
        %v1443 = vunpack.c.l.b16 %v537
        %v1444 = vunpack.c.h.b16 %v537
        %v1445 = vunpack.c.l.b16 %v538
        %v1446 = vunpack.c.h.b16 %v538
        %v1447 = vunpack.c.l.b16 %v539
        %v1448 = vunpack.c.h.b16 %v539
        %v1449 = vunpack.c.l.b16 %v540
        %v1450 = vunpack.c.h.b16 %v540
        %v1451 = vunpack.c.l.b16 %v541
        %v1452 = vunpack.c.h.b16 %v541
        %v1453 = vunpack.c.l.b16 %v542
        %v1454 = vunpack.c.h.b16 %v542
        %v1455 = vunpack.c.l.b16 %v543
        %v1456 = vunpack.c.h.b16 %v543
        %v1457 = vunpack.c.l.b16 %v544
        %v1458 = vunpack.c.h.b16 %v544
        %v1459 = vunpack.c.l.b16 %v545
        %v1460 = vunpack.c.h.b16 %v545
        %v1461 = vunpack.c.l.b16 %v546
        %v1462 = vunpack.c.h.b16 %v546
        %v1463 = vunpack.c.l.b16 %v547
        %v1464 = vunpack.c.h.b16 %v547
        %v1465 = vunpack.c.l.b16 %v548
        %v1466 = vunpack.c.h.b16 %v548
        %v1467 = vunpack.c.l.b16 %v549
        %v1468 = vunpack.c.h.b16 %v549
        %v1469 = vunpack.c.l.b16 %v550
        %v1470 = vunpack.c.h.b16 %v550
        %v1471 = vunpack.c.l.b16 %v551
        %v1472 = vunpack.c.h.b16 %v551
        %v1473 = vunpack.c.l.b16 %v552
        %v1474 = vunpack.c.h.b16 %v552
        %v1475 = vunpack.c.l.b16 %v553
        %v1476 = vunpack.c.h.b16 %v553
        %v1477 = vunpack.c.l.b16 %v554
        %v1478 = vunpack.c.h.b16 %v554
        %v1479 = vunpack.c.l.b16 %v555
        %v1480 = vunpack.c.h.b16 %v555
        %v1481 = vunpack.c.l.b16 %v556
        %v1482 = vunpack.c.h.b16 %v556
        %v1483 = vunpack.c.l.b16 %v557
        %v1484 = vunpack.c.h.b16 %v557
        %v1485 = vunpack.c.l.b16 %v558
        %v1486 = vunpack.c.h.b16 %v558
        %v1487 = vunpack.c.l.b16 %v559
        %v1488 = vunpack.c.h.b16 %v559
        %v1489 = vunpack.c.l.b16 %v560
        %v1490 = vunpack.c.h.b16 %v560
        %v1491 = vunpack.c.l.b16 %v561
        %v1492 = vunpack.c.h.b16 %v561
        %v1493 = vunpack.c.l.b16 %v562
        %v1494 = vunpack.c.h.b16 %v562
        %v1495 = vunpack.c.l.b16 %v563
        %v1496 = vunpack.c.h.b16 %v563
        %v1497 = vunpack.c.l.b16 %v564
        %v1498 = vunpack.c.h.b16 %v564
        %v1499 = vunpack.c.l.b16 %v565
        %v1500 = vunpack.c.h.b16 %v565
        %v1501 = vunpack.c.l.b16 %v566
        %v1502 = vunpack.c.h.b16 %v566
        %v1503 = vunpack.c.l.b16 %v567
        %v1504 = vunpack.c.h.b16 %v567
        %v1505 = vunpack.c.l.b16 %v568
        %v1506 = vunpack.c.h.b16 %v568
        %v1507 = vunpack.c.l.b16 %v569
        %v1508 = vunpack.c.h.b16 %v569
        %v1509 = vunpack.c.l.b16 %v570
        %v1510 = vunpack.c.h.b16 %v570
        %v1511 = vunpack.c.l.b16 %v571
        %v1512 = vunpack.c.h.b16 %v571
        %v1513 = vunpack.c.l.b16 %v572
        %v1514 = vunpack.c.h.b16 %v572
        %v1515 = vunpack.c.l.b16 %v573
        %v1516 = vunpack.c.h.b16 %v573
        %v1517 = vunpack.c.l.b16 %v574
        %v1518 = vunpack.c.h.b16 %v574
        %v1519 = vunpack.c.l.b16 %v575
        %v1520 = vunpack.c.h.b16 %v575
        %v1521 = vunpack.c.l.b16 %v576
        %v1522 = vunpack.c.h.b16 %v576
        %v1523 = vunpack.c.l.b16 %v577
        %v1524 = vunpack.c.h.b16 %v577
        %v1525 = vunpack.c.l.b16 %v578
        %v1526 = vunpack.c.h.b16 %v578
        %v1527 = vunpack.c.l.b16 %v579
        %v1528 = vunpack.c.h.b16 %v579
        %v1529 = vunpack.c.l.b16 %v580
        %v1530 = vunpack.c.h.b16 %v580
        %v1531 = vunpack.c.l.b16 %v581
        %v1532 = vunpack.c.h.b16 %v581
        %v1533 = vunpack.c.l.b16 %v582
        %v1534 = vunpack.c.h.b16 %v582
        %v1535 = vunpack.c.l.b16 %v583
        %v1536 = vunpack.c.h.b16 %v583
        %v1537 = vunpack.c.l.b16 %v584
        %v1538 = vunpack.c.h.b16 %v584
        %v1539 = vunpack.c.l.b16 %v585
        %v1540 = vunpack.c.h.b16 %v585
        %v1541 = vunpack.c.l.b16 %v586
        %v1542 = vunpack.c.h.b16 %v586
        %v1543 = vunpack.c.l.b16 %v587
        %v1544 = vunpack.c.h.b16 %v587
        %v1545 = vunpack.c.l.b16 %v588
        %v1546 = vunpack.c.h.b16 %v588
        %v1547 = vunpack.c.l.b16 %v589
        %v1548 = vunpack.c.h.b16 %v589
        %v1549 = vunpack.c.l.b16 %v590
        %v1550 = vunpack.c.h.b16 %v590
        %v1551 = vunpack.c.l.b16 %v591
        %v1552 = vunpack.c.h.b16 %v591
        %v1553 = vunpack.c.l.b16 %v592
        %v1554 = vunpack.c.h.b16 %v592
        %v1555 = vunpack.c.l.b16 %v593
        %v1556 = vunpack.c.h.b16 %v593
        %v1557 = vunpack.c.l.b16 %v594
        %v1558 = vunpack.c.h.b16 %v594
        %v1559 = vunpack.c.l.b16 %v595
        %v1560 = vunpack.c.h.b16 %v595
        %v1561 = vunpack.c.l.b16 %v596
        %v1562 = vunpack.c.h.b16 %v596
        %v1563 = vunpack.c.l.b16 %v597
        %v1564 = vunpack.c.h.b16 %v597
        %v1565 = vunpack.c.l.b16 %v598
        %v1566 = vunpack.c.h.b16 %v598
        %v1567 = vunpack.c.l.b16 %v599
        %v1568 = vunpack.c.h.b16 %v599
        %v1569 = vunpack.c.l.b16 %v600
        %v1570 = vunpack.c.h.b16 %v600
        %v1571 = vunpack.c.l.b16 %v601
        %v1572 = vunpack.c.h.b16 %v601
        %v1573 = vunpack.c.l.b16 %v602
        %v1574 = vunpack.c.h.b16 %v602
        %v1575 = vunpack.c.l.b16 %v603
        %v1576 = vunpack.c.h.b16 %v603
        %v1577 = vunpack.c.l.b16 %v604
        %v1578 = vunpack.c.h.b16 %v604
        %v1579 = vunpack.c.l.b16 %v605
        %v1580 = vunpack.c.h.b16 %v605
        %v1581 = vunpack.c.l.b16 %v606
        %v1582 = vunpack.c.h.b16 %v606
        %v1583 = vunpack.c.l.b16 %v607
        %v1584 = vunpack.c.h.b16 %v607
        %v1585 = vunpack.c.l.b16 %v608
        %v1586 = vunpack.c.h.b16 %v608
        %v1587 = vunpack.c.l.b16 %v609
        %v1588 = vunpack.c.h.b16 %v609
        %v1589 = vunpack.c.l.b16 %v610
        %v1590 = vunpack.c.h.b16 %v610
        %v1591 = vunpack.c.l.b16 %v611
        %v1592 = vunpack.c.h.b16 %v611
        %v1593 = vunpack.c.l.b16 %v612
        %v1594 = vunpack.c.h.b16 %v612
        %v1595 = vunpack.c.l.b16 %v613
        %v1596 = vunpack.c.h.b16 %v613
        %v1597 = vunpack.c.l.b16 %v614
        %v1598 = vunpack.c.h.b16 %v614
        %v1599 = vunpack.c.l.b16 %v615
        %v1600 = vunpack.c.h.b16 %v615
        %v1601 = vunpack.c.l.b16 %v616
        %v1602 = vunpack.c.h.b16 %v616
        %v1603 = vunpack.c.l.b16 %v617
        %v1604 = vunpack.c.h.b16 %v617
        %v1605 = vunpack.c.l.b16 %v618
        %v1606 = vunpack.c.h.b16 %v618
        %v1607 = vunpack.c.l.b16 %v619
        %v1608 = vunpack.c.h.b16 %v619
        %v1609 = vunpack.c.l.b16 %v620
        %v1610 = vunpack.c.h.b16 %v620
        %v1611 = vunpack.c.l.b16 %v621
        %v1612 = vunpack.c.h.b16 %v621
        %v1613 = vunpack.c.l.b16 %v622
        %v1614 = vunpack.c.h.b16 %v622
        %v1615 = vunpack.c.l.b16 %v623
        %v1616 = vunpack.c.h.b16 %v623
        %v1617 = vunpack.c.l.b16 %v624
        %v1618 = vunpack.c.h.b16 %v624
        %v1619 = vunpack.c.l.b16 %v625
        %v1620 = vunpack.c.h.b16 %v625
        %v1621 = vunpack.c.l.b16 %v626
        %v1622 = vunpack.c.h.b16 %v626
        %v1623 = vunpack.c.l.b16 %v627
        %v1624 = vunpack.c.h.b16 %v627
        %v1625 = vunpack.c.l.b16 %v628
        %v1626 = vunpack.c.h.b16 %v628
        %v1627 = vunpack.c.l.b16 %v629
        %v1628 = vunpack.c.h.b16 %v629
        %v1629 = vunpack.c.l.b16 %v630
        %v1630 = vunpack.c.h.b16 %v630
        %v1631 = vunpack.c.l.b16 %v631
        %v1632 = vunpack.c.h.b16 %v631
        %v1633 = vunpack.c.l.b16 %v632
        %v1634 = vunpack.c.h.b16 %v632
        %v1635 = vunpack.c.l.b16 %v633
        %v1636 = vunpack.c.h.b16 %v633
        %v1637 = vunpack.c.l.b16 %v634
        %v1638 = vunpack.c.h.b16 %v634
        %v1639 = vunpack.c.l.b16 %v635
        %v1640 = vunpack.c.h.b16 %v635
        %v1641 = vunpack.c.l.b16 %v636
        %v1642 = vunpack.c.h.b16 %v636
        %v1643 = vunpack.c.l.b16 %v637
        %v1644 = vunpack.c.h.b16 %v637
        %v1645 = vunpack.c.l.b16 %v638
        %v1646 = vunpack.c.h.b16 %v638
        %v1647 = vunpack.c.l.b16 %v639
        %v1648 = vunpack.c.h.b16 %v639
        %v1649 = vunpack.c.l.b16 %v640
        %v1650 = vunpack.c.h.b16 %v640
        %v1651 = vunpack.c.l.b16 %v641
        %v1652 = vunpack.c.h.b16 %v641
        %v1653 = vunpack.c.l.b16 %v642
        %v1654 = vunpack.c.h.b16 %v642
        %v1655 = vunpack.c.l.b16 %v643
        %v1656 = vunpack.c.h.b16 %v643
        %v1657 = vunpack.c.l.b16 %v644
        %v1658 = vunpack.c.h.b16 %v644
        %v1659 = vunpack.c.l.b16 %v645
        %v1660 = vunpack.c.h.b16 %v645
        %v1661 = vunpack.c.l.b16 %v646
        %v1662 = vunpack.c.h.b16 %v646
        %v1663 = vunpack.c.l.b16 %v647
        %v1664 = vunpack.c.h.b16 %v647
        %v1665 = vunpack.c.l.b16 %v648
        %v1666 = vunpack.c.h.b16 %v648
        %v1667 = vunpack.c.l.b16 %v649
        %v1668 = vunpack.c.h.b16 %v649
        %v1669 = vunpack.c.l.b16 %v650
        %v1670 = vunpack.c.h.b16 %v650
        %v1671 = vunpack.c.l.b16 %v651
        %v1672 = vunpack.c.h.b16 %v651
        %v1673 = vunpack.c.l.b16 %v652
        %v1674 = vunpack.c.h.b16 %v652
        %v1675 = vunpack.c.l.b16 %v653
        %v1676 = vunpack.c.h.b16 %v653
        %v1677 = vunpack.c.l.b16 %v654
        %v1678 = vunpack.c.h.b16 %v654
        %v1679 = vunpack.c.l.b16 %v655
        %v1680 = vunpack.c.h.b16 %v655
        %v1681 = vunpack.c.l.b16 %v656
        %v1682 = vunpack.c.h.b16 %v656
        %v1683 = vunpack.c.l.b16 %v657
        %v1684 = vunpack.c.h.b16 %v657
        %v1685 = vunpack.c.l.b16 %v658
        %v1686 = vunpack.c.h.b16 %v658
        %v1687 = vunpack.c.l.b16 %v659
        %v1688 = vunpack.c.h.b16 %v659
        %v1689 = vunpack.c.l.b16 %v660
        %v1690 = vunpack.c.h.b16 %v660
        %v1691 = vunpack.c.l.b16 %v661
        %v1692 = vunpack.c.h.b16 %v661
        %v1693 = vunpack.c.l.b16 %v662
        %v1694 = vunpack.c.h.b16 %v662
        %v1695 = vunpack.c.l.b16 %v663
        %v1696 = vunpack.c.h.b16 %v663
        %v1697 = vunpack.c.l.b16 %v664
        %v1698 = vunpack.c.h.b16 %v664
        %v1699 = vunpack.c.l.b16 %v665
        %v1700 = vunpack.c.h.b16 %v665
        %v1701 = vunpack.c.l.b16 %v666
        %v1702 = vunpack.c.h.b16 %v666
        %v1703 = vunpack.c.l.b16 %v667
        %v1704 = vunpack.c.h.b16 %v667
        %v1705 = vunpack.c.l.b16 %v668
        %v1706 = vunpack.c.h.b16 %v668
        %v1707 = vunpack.c.l.b16 %v669
        %v1708 = vunpack.c.h.b16 %v669
        %v1709 = vunpack.c.l.b16 %v670
        %v1710 = vunpack.c.h.b16 %v670
        %v1711 = vunpack.c.l.b16 %v671
        %v1712 = vunpack.c.h.b16 %v671
        %v1713 = vunpack.c.l.b16 %v672
        %v1714 = vunpack.c.h.b16 %v672
        %v1715 = vunpack.c.l.b16 %v673
        %v1716 = vunpack.c.h.b16 %v673
        %v1717 = vunpack.c.l.b16 %v674
        %v1718 = vunpack.c.h.b16 %v674
        %v1719 = vunpack.c.l.b16 %v675
        %v1720 = vunpack.c.h.b16 %v675
        %v1721 = vunpack.c.l.b16 %v676
        %v1722 = vunpack.c.h.b16 %v676
        %v1723 = vunpack.c.l.b16 %v677
        %v1724 = vunpack.c.h.b16 %v677
        %v1725 = vunpack.c.l.b16 %v678
        %v1726 = vunpack.c.h.b16 %v678
        %v1727 = vunpack.c.l.b16 %v679
        %v1728 = vunpack.c.h.b16 %v679
        %v1729 = vunpack.c.l.b16 %v680
        %v1730 = vunpack.c.h.b16 %v680
        %v1731 = vunpack.c.l.b16 %v681
        %v1732 = vunpack.c.h.b16 %v681
        %v1733 = vunpack.c.l.b16 %v682
        %v1734 = vunpack.c.h.b16 %v682
        %v1735 = vunpack.c.l.b16 %v683
        %v1736 = vunpack.c.h.b16 %v683
        %v1737 = vunpack.c.l.b16 %v684
        %v1738 = vunpack.c.h.b16 %v684
        %v1739 = vunpack.c.l.b16 %v685
        %v1740 = vunpack.c.h.b16 %v685
        %v1741 = vunpack.c.l.b16 %v686
        %v1742 = vunpack.c.h.b16 %v686
        %v1743 = vunpack.c.l.b16 %v687
        %v1744 = vunpack.c.h.b16 %v687
        %v1745 = vunpack.c.l.b16 %v688
        %v1746 = vunpack.c.h.b16 %v688
        %v1747 = vunpack.c.l.b16 %v689
        %v1748 = vunpack.c.h.b16 %v689
        %v1749 = vunpack.c.l.b16 %v690
        %v1750 = vunpack.c.h.b16 %v690
        %v1751 = vunpack.c.l.b16 %v691
        %v1752 = vunpack.c.h.b16 %v691
        %v1753 = vunpack.c.l.b16 %v692
        %v1754 = vunpack.c.h.b16 %v692
        %v1755 = vunpack.c.l.b16 %v693
        %v1756 = vunpack.c.h.b16 %v693
        %v1757 = vunpack.c.l.b16 %v694
        %v1758 = vunpack.c.h.b16 %v694
        %v1759 = vunpack.c.l.b16 %v695
        %v1760 = vunpack.c.h.b16 %v695
        %v1761 = vunpack.c.l.b16 %v696
        %v1762 = vunpack.c.h.b16 %v696
        %v1763 = vunpack.c.l.b16 %v697
        %v1764 = vunpack.c.h.b16 %v697
        %v1765 = vunpack.c.l.b16 %v698
        %v1766 = vunpack.c.h.b16 %v698
        %v1767 = vunpack.c.l.b16 %v699
        %v1768 = vunpack.c.h.b16 %v699
        %v1769 = vunpack.c.l.b16 %v700
        %v1770 = vunpack.c.h.b16 %v700
        %v1771 = vunpack.c.l.b16 %v701
        %v1772 = vunpack.c.h.b16 %v701
        %v1773 = vunpack.c.l.b16 %v702
        %v1774 = vunpack.c.h.b16 %v702
        %v1775 = vunpack.c.l.b16 %v703
        %v1776 = vunpack.c.h.b16 %v703
        %v1777 = vunpack.c.l.b16 %v704
        %v1778 = vunpack.c.h.b16 %v704
        %v1779 = vunpack.c.l.b16 %v705
        %v1780 = vunpack.c.h.b16 %v705
        %v1781 = vunpack.c.l.b16 %v706
        %v1782 = vunpack.c.h.b16 %v706
        %v1783 = vunpack.c.l.b16 %v707
        %v1784 = vunpack.c.h.b16 %v707
        %v1785 = vunpack.c.l.b16 %v708
        %v1786 = vunpack.c.h.b16 %v708
        %v1787 = vunpack.c.l.b16 %v709
        %v1788 = vunpack.c.h.b16 %v709
        %v1789 = vunpack.c.l.b16 %v710
        %v1790 = vunpack.c.h.b16 %v710
        %v1791 = vunpack.c.l.b16 %v711
        %v1792 = vunpack.c.h.b16 %v711
        %v1793 = vunpack.c.l.b16 %v712
        %v1794 = vunpack.c.h.b16 %v712
        %v1795 = vunpack.c.l.b16 %v713
        %v1796 = vunpack.c.h.b16 %v713
        %v1797 = vunpack.c.l.b16 %v714
        %v1798 = vunpack.c.h.b16 %v714
        %v1799 = vunpack.c.l.b16 %v715
        %v1800 = vunpack.c.h.b16 %v715
        %v1801 = vunpack.c.l.b16 %v716
        %v1802 = vunpack.c.h.b16 %v716
        %v1803 = vunpack.c.l.b16 %v717
        %v1804 = vunpack.c.h.b16 %v717
        %v1805 = vunpack.c.l.b16 %v718
        %v1806 = vunpack.c.h.b16 %v718
        %v1807 = vunpack.c.l.b16 %v719
        %v1808 = vunpack.c.h.b16 %v719
        %v1809 = vunpack.c.l.b16 %v720
        %v1810 = vunpack.c.h.b16 %v720
        %v1811 = vunpack.c.l.b16 %v721
        %v1812 = vunpack.c.h.b16 %v721
        %v1813 = vunpack.c.l.b16 %v722
        %v1814 = vunpack.c.h.b16 %v722
        %v1815 = vunpack.c.l.b16 %v723
        %v1816 = vunpack.c.h.b16 %v723
        %v1817 = vunpack.c.l.b16 %v724
        %v1818 = vunpack.c.h.b16 %v724
        %v1819 = vunpack.c.l.b16 %v725
        %v1820 = vunpack.c.h.b16 %v725
        %v1821 = vunpack.c.l.b16 %v726
        %v1822 = vunpack.c.h.b16 %v726
        %v1823 = vunpack.c.l.b16 %v727
        %v1824 = vunpack.c.h.b16 %v727
        %v1825 = vunpack.c.l.b16 %v728
        %v1826 = vunpack.c.h.b16 %v728
        %v1827 = vunpack.c.l.b16 %v729
        %v1828 = vunpack.c.h.b16 %v729
        %v1829 = vunpack.c.l.b16 %v730
        %v1830 = vunpack.c.h.b16 %v730
        %v1831 = vunpack.c.l.b16 %v731
        %v1832 = vunpack.c.h.b16 %v731
        %v1833 = vunpack.c.l.b16 %v732
        %v1834 = vunpack.c.h.b16 %v732
        %v1835 = vunpack.c.l.b16 %v733
        %v1836 = vunpack.c.h.b16 %v733
        %v1837 = vunpack.c.l.b16 %v734
        %v1838 = vunpack.c.h.b16 %v734
        %v1839 = vunpack.c.l.b16 %v735
        %v1840 = vunpack.c.h.b16 %v735
        %v1841 = vunpack.c.l.b16 %v736
        %v1842 = vunpack.c.h.b16 %v736
        %v1843 = vunpack.c.l.b16 %v737
        %v1844 = vunpack.c.h.b16 %v737
        %v1845 = vunpack.c.l.b16 %v738
        %v1846 = vunpack.c.h.b16 %v738
        %v1847 = vunpack.c.l.b16 %v739
        %v1848 = vunpack.c.h.b16 %v739
        %v1849 = vunpack.c.l.b16 %v740
        %v1850 = vunpack.c.h.b16 %v740
        %v1851 = vunpack.c.l.b16 %v741
        %v1852 = vunpack.c.h.b16 %v741
        %v1853 = vunpack.c.l.b16 %v742
        %v1854 = vunpack.c.h.b16 %v742
        %v1855 = vunpack.c.l.b16 %v743
        %v1856 = vunpack.c.h.b16 %v743
        %v1857 = vunpack.c.l.b16 %v744
        %v1858 = vunpack.c.h.b16 %v744
        %v1859 = vunpack.c.l.b16 %v745
        %v1860 = vunpack.c.h.b16 %v745
        %v1861 = vunpack.c.l.b16 %v746
        %v1862 = vunpack.c.h.b16 %v746
        %v1863 = vunpack.c.l.b16 %v747
        %v1864 = vunpack.c.h.b16 %v747
        %v1865 = vunpack.c.l.b16 %v748
        %v1866 = vunpack.c.h.b16 %v748
        %v1867 = vunpack.c.l.b16 %v749
        %v1868 = vunpack.c.h.b16 %v749
        %v1869 = vunpack.c.l.b16 %v750
        %v1870 = vunpack.c.h.b16 %v750
        %v1871 = vunpack.c.l.b16 %v751
        %v1872 = vunpack.c.h.b16 %v751
        %v1873 = vunpack.c.l.b16 %v752
        %v1874 = vunpack.c.h.b16 %v752
        %v1875 = vunpack.c.l.b16 %v753
        %v1876 = vunpack.c.h.b16 %v753
        %v1877 = vunpack.c.l.b16 %v754
        %v1878 = vunpack.c.h.b16 %v754
        %v1879 = vunpack.c.l.b16 %v755
        %v1880 = vunpack.c.h.b16 %v755
        %v1881 = vunpack.c.l.b16 %v756
        %v1882 = vunpack.c.h.b16 %v756
        %v1883 = vunpack.c.l.b16 %v757
        %v1884 = vunpack.c.h.b16 %v757
        %v1885 = vunpack.c.l.b16 %v758
        %v1886 = vunpack.c.h.b16 %v758
        %v1887 = vunpack.c.l.b16 %v759
        %v1888 = vunpack.c.h.b16 %v759
        %v1889 = vunpack.c.l.b16 %v760
        %v1890 = vunpack.c.h.b16 %v760
        %v1891 = vunpack.c.l.b16 %v761
        %v1892 = vunpack.c.h.b16 %v761
        %v1893 = vunpack.c.l.b16 %v762
        %v1894 = vunpack.c.h.b16 %v762
        %v1895 = vunpack.c.l.b16 %v763
        %v1896 = vunpack.c.h.b16 %v763
        %v1897 = vunpack.c.l.b16 %v764
        %v1898 = vunpack.c.h.b16 %v764
        %v1899 = vunpack.c.l.b16 %v765
        %v1900 = vunpack.c.h.b16 %v765
        %v1901 = vunpack.c.l.b16 %v766
        %v1902 = vunpack.c.h.b16 %v766
        %v1903 = vunpack.c.l.b16 %v767
        %v1904 = vunpack.c.h.b16 %v767
        %v1905 = vunpack.c.l.b16 %v768
        %v1906 = vunpack.c.h.b16 %v768
        %v1907 = vunpack.c.l.b16 %v769
        %v1908 = vunpack.c.h.b16 %v769
        %v1909 = vunpack.c.l.b16 %v770
        %v1910 = vunpack.c.h.b16 %v770
        %v1911 = vunpack.c.l.b16 %v771
        %v1912 = vunpack.c.h.b16 %v771
        %v1913 = vunpack.c.l.b16 %v772
        %v1914 = vunpack.c.h.b16 %v772
        %v1915 = vunpack.c.l.b16 %v773
        %v1916 = vunpack.c.h.b16 %v773
        %v1917 = vunpack.c.l.b16 %v774
        %v1918 = vunpack.c.h.b16 %v774
        %v1919 = vunpack.c.l.b16 %v775
        %v1920 = vunpack.c.h.b16 %v775
        %v1921 = vunpack.c.l.b16 %v776
        %v1922 = vunpack.c.h.b16 %v776
        %v1923 = vunpack.c.l.b16 %v777
        %v1924 = vunpack.c.h.b16 %v777
        %v1925 = vunpack.c.l.b16 %v778
        %v1926 = vunpack.c.h.b16 %v778
        %v1927 = vunpack.c.l.b16 %v779
        %v1928 = vunpack.c.h.b16 %v779
        %v1929 = vunpack.c.l.b16 %v780
        %v1930 = vunpack.c.h.b16 %v780
        %v1931 = vunpack.c.l.b16 %v781
        %v1932 = vunpack.c.h.b16 %v781
        %v1933 = vunpack.c.l.b16 %v782
        %v1934 = vunpack.c.h.b16 %v782
        %v1935 = vunpack.c.l.b16 %v783
        %v1936 = vunpack.c.h.b16 %v783
        %v1937 = vunpack.c.l.b16 %v784
        %v1938 = vunpack.c.h.b16 %v784
        %v1939 = vunpack.c.l.b16 %v785
        %v1940 = vunpack.c.h.b16 %v785
        %v1941 = vunpack.c.l.b16 %v786
        %v1942 = vunpack.c.h.b16 %v786
        %v1943 = vunpack.c.l.b16 %v787
        %v1944 = vunpack.c.h.b16 %v787
        %v1945 = vunpack.c.l.b16 %v788
        %v1946 = vunpack.c.h.b16 %v788
        %v1947 = vunpack.c.l.b16 %v789
        %v1948 = vunpack.c.h.b16 %v789
        %v1949 = vunpack.c.l.b16 %v790
        %v1950 = vunpack.c.h.b16 %v790
        %v1951 = vunpack.c.l.b16 %v791
        %v1952 = vunpack.c.h.b16 %v791
        %v1953 = vunpack.c.l.b16 %v792
        %v1954 = vunpack.c.h.b16 %v792
        %v1955 = vunpack.c.l.b16 %v793
        %v1956 = vunpack.c.h.b16 %v793
        %v1957 = vunpack.c.l.b16 %v794
        %v1958 = vunpack.c.h.b16 %v794
        %v1959 = vunpack.c.l.b16 %v795
        %v1960 = vunpack.c.h.b16 %v795
        %v1961 = vunpack.c.l.b16 %v796
        %v1962 = vunpack.c.h.b16 %v796
        %v1963 = vunpack.c.l.b16 %v797
        %v1964 = vunpack.c.h.b16 %v797
        %v1965 = vunpack.c.l.b16 %v798
        %v1966 = vunpack.c.h.b16 %v798
        %v1967 = vunpack.c.l.b16 %v799
        %v1968 = vunpack.c.h.b16 %v799
        %v1969 = vunpack.c.l.b16 %v800
        %v1970 = vunpack.c.h.b16 %v800
        %v1971 = vunpack.c.l.b16 %v801
        %v1972 = vunpack.c.h.b16 %v801
        %v1973 = vunpack.c.l.b16 %v802
        %v1974 = vunpack.c.h.b16 %v802
        %v1975 = vunpack.c.l.b16 %v803
        %v1976 = vunpack.c.h.b16 %v803
        %v1977 = vunpack.c.l.b16 %v804
        %v1978 = vunpack.c.h.b16 %v804
        %v1979 = vunpack.c.l.b16 %v805
        %v1980 = vunpack.c.h.b16 %v805
        %v1981 = vunpack.c.l.b16 %v806
        %v1982 = vunpack.c.h.b16 %v806
        %v1983 = vunpack.c.l.b16 %v807
        %v1984 = vunpack.c.h.b16 %v807
        %v1985 = vunpack.c.l.b16 %v808
        %v1986 = vunpack.c.h.b16 %v808
        %v1987 = vunpack.c.l.b16 %v809
        %v1988 = vunpack.c.h.b16 %v809
        %v1989 = vunpack.c.l.b16 %v810
        %v1990 = vunpack.c.h.b16 %v810
        %v1991 = vunpack.c.l.b16 %v811
        %v1992 = vunpack.c.h.b16 %v811
        %v1993 = vunpack.c.l.b16 %v812
        %v1994 = vunpack.c.h.b16 %v812
        %v1995 = vunpack.c.l.b16 %v813
        %v1996 = vunpack.c.h.b16 %v813
        %v1997 = vunpack.c.l.b16 %v814
        %v1998 = vunpack.c.h.b16 %v814
        %v1999 = vunpack.c.l.b16 %v815
        %v2000 = vunpack.c.h.b16 %v815
        %v2001 = vunpack.c.l.b16 %v816
        %v2002 = vunpack.c.h.b16 %v816
        %v2003 = vunpack.c.l.b16 %v817
        %v2004 = vunpack.c.h.b16 %v817
        %v2005 = vunpack.c.l.b16 %v818
        %v2006 = vunpack.c.h.b16 %v818
        %v2007 = vunpack.c.l.b16 %v819
        %v2008 = vunpack.c.h.b16 %v819
        %v2009 = vunpack.c.l.b16 %v820
        %v2010 = vunpack.c.h.b16 %v820
        %v2011 = vunpack.c.l.b16 %v821
        %v2012 = vunpack.c.h.b16 %v821
        %v2013 = vunpack.c.l.b16 %v822
        %v2014 = vunpack.c.h.b16 %v822
        %v2015 = vunpack.c.l.b16 %v823
        %v2016 = vunpack.c.h.b16 %v823
        %v2017 = vunpack.c.l.b16 %v824
        %v2018 = vunpack.c.h.b16 %v824
        %v2019 = vunpack.c.l.b16 %v825
        %v2020 = vunpack.c.h.b16 %v825
        %v2021 = vunpack.c.l.b16 %v826
        %v2022 = vunpack.c.h.b16 %v826
        %v2023 = vunpack.c.l.b16 %v827
        %v2024 = vunpack.c.h.b16 %v827
        %v2025 = vunpack.c.l.b16 %v828
        %v2026 = vunpack.c.h.b16 %v828
        %v2027 = vunpack.c.l.b16 %v829
        %v2028 = vunpack.c.h.b16 %v829
        %v2029 = vunpack.c.l.b16 %v830
        %v2030 = vunpack.c.h.b16 %v830
        %v2031 = vunpack.c.l.b16 %v831
        %v2032 = vunpack.c.h.b16 %v831
        %v2033 = vunpack.c.l.b16 %v832
        %v2034 = vunpack.c.h.b16 %v832
        %v2035 = vunpack.c.l.b16 %v833
        %v2036 = vunpack.c.h.b16 %v833
        %v2037 = vunpack.c.l.b16 %v834
        %v2038 = vunpack.c.h.b16 %v834
        %v2039 = vunpack.c.l.b16 %v835
        %v2040 = vunpack.c.h.b16 %v835
        %v2041 = vunpack.c.l.b16 %v836
        %v2042 = vunpack.c.h.b16 %v836
        %v2043 = vunpack.c.l.b16 %v837
        %v2044 = vunpack.c.h.b16 %v837
        %v2045 = vunpack.c.l.b16 %v838
        %v2046 = vunpack.c.h.b16 %v838
        %v2047 = vunpack.c.l.b16 %v839
        %v2048 = vunpack.c.h.b16 %v839
        %v2049 = vunpack.c.l.b16 %v840
        %v2050 = vunpack.c.h.b16 %v840
        %v2051 = vunpack.c.l.b16 %v841
        %v2052 = vunpack.c.h.b16 %v841
        %v2053 = vunpack.c.l.b16 %v842
        %v2054 = vunpack.c.h.b16 %v842
        %v2055 = vunpack.c.l.b16 %v843
        %v2056 = vunpack.c.h.b16 %v843
        %v2057 = vunpack.c.l.b16 %v844
        %v2058 = vunpack.c.h.b16 %v844
        %v2059 = vunpack.c.l.b16 %v845
        %v2060 = vunpack.c.h.b16 %v845
        %v2061 = vunpack.c.l.b16 %v846
        %v2062 = vunpack.c.h.b16 %v846
        %v2063 = vunpack.c.l.b16 %v847
        %v2064 = vunpack.c.h.b16 %v847
        %v2065 = vunpack.c.l.b16 %v848
        %v2066 = vunpack.c.h.b16 %v848
        %v2067 = vpack.c.b16 %v1291, %v1283
        %v2068 = vpack.c.b16 %v1292, %v1284
        %v2069 = vpack.c.b16 %v1293, %v1285
        %v2070 = vpack.c.b16 %v1294, %v1286
        %v2071 = vpack.c.b16 %v1295, %v1287
        %v2072 = vpack.c.b16 %v1296, %v1288
        %v2073 = vpack.c.b16 %v1297, %v1289
        %v2074 = vpack.c.b16 %v1298, %v1290
        %v2075 = vpack.c.b16 %v1307, %v1299
        %v2076 = vpack.c.b16 %v1308, %v1300
        %v2077 = vpack.c.b16 %v1309, %v1301
        %v2078 = vpack.c.b16 %v1310, %v1302
        %v2079 = vpack.c.b16 %v1311, %v1303
        %v2080 = vpack.c.b16 %v1312, %v1304
        %v2081 = vpack.c.b16 %v1313, %v1305
        %v2082 = vpack.c.b16 %v1314, %v1306
        %v2083 = vpack.c.b16 %v1323, %v1315
        %v2084 = vpack.c.b16 %v1324, %v1316
        %v2085 = vpack.c.b16 %v1325, %v1317
        %v2086 = vpack.c.b16 %v1326, %v1318
        %v2087 = vpack.c.b16 %v1327, %v1319
        %v2088 = vpack.c.b16 %v1328, %v1320
        %v2089 = vpack.c.b16 %v1329, %v1321
        %v2090 = vpack.c.b16 %v1330, %v1322
        %v2091 = vpack.c.b16 %v1339, %v1331
        %v2092 = vpack.c.b16 %v1340, %v1332
        %v2093 = vpack.c.b16 %v1341, %v1333
        %v2094 = vpack.c.b16 %v1342, %v1334
        %v2095 = vpack.c.b16 %v1343, %v1335
        %v2096 = vpack.c.b16 %v1344, %v1336
        %v2097 = vpack.c.b16 %v1345, %v1337
        %v2098 = vpack.c.b16 %v1346, %v1338
        %v2099 = vpack.c.b16 %v1355, %v1347
        %v2100 = vpack.c.b16 %v1356, %v1348
        %v2101 = vpack.c.b16 %v1357, %v1349
        %v2102 = vpack.c.b16 %v1358, %v1350
        %v2103 = vpack.c.b16 %v1359, %v1351
        %v2104 = vpack.c.b16 %v1360, %v1352
        %v2105 = vpack.c.b16 %v1361, %v1353
        %v2106 = vpack.c.b16 %v1362, %v1354
        %v2107 = vpack.c.b16 %v1371, %v1363
        %v2108 = vpack.c.b16 %v1372, %v1364
        %v2109 = vpack.c.b16 %v1373, %v1365
        %v2110 = vpack.c.b16 %v1374, %v1366
        %v2111 = vpack.c.b16 %v1375, %v1367
        %v2112 = vpack.c.b16 %v1376, %v1368
        %v2113 = vpack.c.b16 %v1377, %v1369
        %v2114 = vpack.c.b16 %v1378, %v1370
        %v2115 = vpack.c.b16 %v1387, %v1379
        %v2116 = vpack.c.b16 %v1388, %v1380
        %v2117 = vpack.c.b16 %v1389, %v1381
        %v2118 = vpack.c.b16 %v1390, %v1382
        %v2119 = vpack.c.b16 %v1391, %v1383
        %v2120 = vpack.c.b16 %v1392, %v1384
        %v2121 = vpack.c.b16 %v1393, %v1385
        %v2122 = vpack.c.b16 %v1394, %v1386
        %v2123 = vpack.c.b16 %v1403, %v1395
        %v2124 = vpack.c.b16 %v1404, %v1396
        %v2125 = vpack.c.b16 %v1405, %v1397
        %v2126 = vpack.c.b16 %v1406, %v1398
        %v2127 = vpack.c.b16 %v1407, %v1399
        %v2128 = vpack.c.b16 %v1408, %v1400
        %v2129 = vpack.c.b16 %v1409, %v1401
        %v2130 = vpack.c.b16 %v1410, %v1402
        %v2131 = vpack.c.b16 %v1419, %v1411
        %v2132 = vpack.c.b16 %v1420, %v1412
        %v2133 = vpack.c.b16 %v1421, %v1413
        %v2134 = vpack.c.b16 %v1422, %v1414
        %v2135 = vpack.c.b16 %v1423, %v1415
        %v2136 = vpack.c.b16 %v1424, %v1416
        %v2137 = vpack.c.b16 %v1425, %v1417
        %v2138 = vpack.c.b16 %v1426, %v1418
        %v2139 = vpack.c.b16 %v1435, %v1427
        %v2140 = vpack.c.b16 %v1436, %v1428
        %v2141 = vpack.c.b16 %v1437, %v1429
        %v2142 = vpack.c.b16 %v1438, %v1430
        %v2143 = vpack.c.b16 %v1439, %v1431
        %v2144 = vpack.c.b16 %v1440, %v1432
        %v2145 = vpack.c.b16 %v1441, %v1433
        %v2146 = vpack.c.b16 %v1442, %v1434
        %v2147 = vpack.c.b16 %v1451, %v1443
        %v2148 = vpack.c.b16 %v1452, %v1444
        %v2149 = vpack.c.b16 %v1453, %v1445
        %v2150 = vpack.c.b16 %v1454, %v1446
        %v2151 = vpack.c.b16 %v1455, %v1447
        %v2152 = vpack.c.b16 %v1456, %v1448
        %v2153 = vpack.c.b16 %v1457, %v1449
        %v2154 = vpack.c.b16 %v1458, %v1450
        %v2155 = vpack.c.b16 %v1467, %v1459
        %v2156 = vpack.c.b16 %v1468, %v1460
        %v2157 = vpack.c.b16 %v1469, %v1461
        %v2158 = vpack.c.b16 %v1470, %v1462
        %v2159 = vpack.c.b16 %v1471, %v1463
        %v2160 = vpack.c.b16 %v1472, %v1464
        %v2161 = vpack.c.b16 %v1473, %v1465
        %v2162 = vpack.c.b16 %v1474, %v1466
        %v2163 = vpack.c.b16 %v1483, %v1475
        %v2164 = vpack.c.b16 %v1484, %v1476
        %v2165 = vpack.c.b16 %v1485, %v1477
        %v2166 = vpack.c.b16 %v1486, %v1478
        %v2167 = vpack.c.b16 %v1487, %v1479
        %v2168 = vpack.c.b16 %v1488, %v1480
        %v2169 = vpack.c.b16 %v1489, %v1481
        %v2170 = vpack.c.b16 %v1490, %v1482
        %v2171 = vpack.c.b16 %v1499, %v1491
        %v2172 = vpack.c.b16 %v1500, %v1492
        %v2173 = vpack.c.b16 %v1501, %v1493
        %v2174 = vpack.c.b16 %v1502, %v1494
        %v2175 = vpack.c.b16 %v1503, %v1495
        %v2176 = vpack.c.b16 %v1504, %v1496
        %v2177 = vpack.c.b16 %v1505, %v1497
        %v2178 = vpack.c.b16 %v1506, %v1498
        %v2179 = vpack.c.b16 %v1515, %v1507
        %v2180 = vpack.c.b16 %v1516, %v1508
        %v2181 = vpack.c.b16 %v1517, %v1509
        %v2182 = vpack.c.b16 %v1518, %v1510
        %v2183 = vpack.c.b16 %v1519, %v1511
        %v2184 = vpack.c.b16 %v1520, %v1512
        %v2185 = vpack.c.b16 %v1521, %v1513
        %v2186 = vpack.c.b16 %v1522, %v1514
        %v2187 = vpack.c.b16 %v1531, %v1523
        %v2188 = vpack.c.b16 %v1532, %v1524
        %v2189 = vpack.c.b16 %v1533, %v1525
        %v2190 = vpack.c.b16 %v1534, %v1526
        %v2191 = vpack.c.b16 %v1535, %v1527
        %v2192 = vpack.c.b16 %v1536, %v1528
        %v2193 = vpack.c.b16 %v1537, %v1529
        %v2194 = vpack.c.b16 %v1538, %v1530
        %v2195 = vpack.c.b16 %v1547, %v1539
        %v2196 = vpack.c.b16 %v1548, %v1540
        %v2197 = vpack.c.b16 %v1549, %v1541
        %v2198 = vpack.c.b16 %v1550, %v1542
        %v2199 = vpack.c.b16 %v1551, %v1543
        %v2200 = vpack.c.b16 %v1552, %v1544
        %v2201 = vpack.c.b16 %v1553, %v1545
        %v2202 = vpack.c.b16 %v1554, %v1546
        %v2203 = vpack.c.b16 %v1563, %v1555
        %v2204 = vpack.c.b16 %v1564, %v1556
        %v2205 = vpack.c.b16 %v1565, %v1557
        %v2206 = vpack.c.b16 %v1566, %v1558
        %v2207 = vpack.c.b16 %v1567, %v1559
        %v2208 = vpack.c.b16 %v1568, %v1560
        %v2209 = vpack.c.b16 %v1569, %v1561
        %v2210 = vpack.c.b16 %v1570, %v1562
        %v2211 = vpack.c.b16 %v1579, %v1571
        %v2212 = vpack.c.b16 %v1580, %v1572
        %v2213 = vpack.c.b16 %v1581, %v1573
        %v2214 = vpack.c.b16 %v1582, %v1574
        %v2215 = vpack.c.b16 %v1583, %v1575
        %v2216 = vpack.c.b16 %v1584, %v1576
        %v2217 = vpack.c.b16 %v1585, %v1577
        %v2218 = vpack.c.b16 %v1586, %v1578
        %v2219 = vpack.c.b16 %v1595, %v1587
        %v2220 = vpack.c.b16 %v1596, %v1588
        %v2221 = vpack.c.b16 %v1597, %v1589
        %v2222 = vpack.c.b16 %v1598, %v1590
        %v2223 = vpack.c.b16 %v1599, %v1591
        %v2224 = vpack.c.b16 %v1600, %v1592
        %v2225 = vpack.c.b16 %v1601, %v1593
        %v2226 = vpack.c.b16 %v1602, %v1594
        %v2227 = vpack.c.b16 %v1611, %v1603
        %v2228 = vpack.c.b16 %v1612, %v1604
        %v2229 = vpack.c.b16 %v1613, %v1605
        %v2230 = vpack.c.b16 %v1614, %v1606
        %v2231 = vpack.c.b16 %v1615, %v1607
        %v2232 = vpack.c.b16 %v1616, %v1608
        %v2233 = vpack.c.b16 %v1617, %v1609
        %v2234 = vpack.c.b16 %v1618, %v1610
        %v2235 = vpack.c.b16 %v1627, %v1619
        %v2236 = vpack.c.b16 %v1628, %v1620
        %v2237 = vpack.c.b16 %v1629, %v1621
        %v2238 = vpack.c.b16 %v1630, %v1622
        %v2239 = vpack.c.b16 %v1631, %v1623
        %v2240 = vpack.c.b16 %v1632, %v1624
        %v2241 = vpack.c.b16 %v1633, %v1625
        %v2242 = vpack.c.b16 %v1634, %v1626
        %v2243 = vpack.c.b16 %v1643, %v1635
        %v2244 = vpack.c.b16 %v1644, %v1636
        %v2245 = vpack.c.b16 %v1645, %v1637
        %v2246 = vpack.c.b16 %v1646, %v1638
        %v2247 = vpack.c.b16 %v1647, %v1639
        %v2248 = vpack.c.b16 %v1648, %v1640
        %v2249 = vpack.c.b16 %v1649, %v1641
        %v2250 = vpack.c.b16 %v1650, %v1642
        %v2251 = vpack.c.b16 %v1659, %v1651
        %v2252 = vpack.c.b16 %v1660, %v1652
        %v2253 = vpack.c.b16 %v1661, %v1653
        %v2254 = vpack.c.b16 %v1662, %v1654
        %v2255 = vpack.c.b16 %v1663, %v1655
        %v2256 = vpack.c.b16 %v1664, %v1656
        %v2257 = vpack.c.b16 %v1665, %v1657
        %v2258 = vpack.c.b16 %v1666, %v1658
        %v2259 = vpack.c.b16 %v1675, %v1667
        %v2260 = vpack.c.b16 %v1676, %v1668
        %v2261 = vpack.c.b16 %v1677, %v1669
        %v2262 = vpack.c.b16 %v1678, %v1670
        %v2263 = vpack.c.b16 %v1679, %v1671
        %v2264 = vpack.c.b16 %v1680, %v1672
        %v2265 = vpack.c.b16 %v1681, %v1673
        %v2266 = vpack.c.b16 %v1682, %v1674
        %v2267 = vpack.c.b16 %v1691, %v1683
        %v2268 = vpack.c.b16 %v1692, %v1684
        %v2269 = vpack.c.b16 %v1693, %v1685
        %v2270 = vpack.c.b16 %v1694, %v1686
        %v2271 = vpack.c.b16 %v1695, %v1687
        %v2272 = vpack.c.b16 %v1696, %v1688
        %v2273 = vpack.c.b16 %v1697, %v1689
        %v2274 = vpack.c.b16 %v1698, %v1690
        %v2275 = vpack.c.b16 %v1707, %v1699
        %v2276 = vpack.c.b16 %v1708, %v1700
        %v2277 = vpack.c.b16 %v1709, %v1701
        %v2278 = vpack.c.b16 %v1710, %v1702
        %v2279 = vpack.c.b16 %v1711, %v1703
        %v2280 = vpack.c.b16 %v1712, %v1704
        %v2281 = vpack.c.b16 %v1713, %v1705
        %v2282 = vpack.c.b16 %v1714, %v1706
        %v2283 = vpack.c.b16 %v1723, %v1715
        %v2284 = vpack.c.b16 %v1724, %v1716
        %v2285 = vpack.c.b16 %v1725, %v1717
        %v2286 = vpack.c.b16 %v1726, %v1718
        %v2287 = vpack.c.b16 %v1727, %v1719
        %v2288 = vpack.c.b16 %v1728, %v1720
        %v2289 = vpack.c.b16 %v1729, %v1721
        %v2290 = vpack.c.b16 %v1730, %v1722
        %v2291 = vpack.c.b16 %v1739, %v1731
        %v2292 = vpack.c.b16 %v1740, %v1732
        %v2293 = vpack.c.b16 %v1741, %v1733
        %v2294 = vpack.c.b16 %v1742, %v1734
        %v2295 = vpack.c.b16 %v1743, %v1735
        %v2296 = vpack.c.b16 %v1744, %v1736
        %v2297 = vpack.c.b16 %v1745, %v1737
        %v2298 = vpack.c.b16 %v1746, %v1738
        %v2299 = vpack.c.b16 %v1755, %v1747
        %v2300 = vpack.c.b16 %v1756, %v1748
        %v2301 = vpack.c.b16 %v1757, %v1749
        %v2302 = vpack.c.b16 %v1758, %v1750
        %v2303 = vpack.c.b16 %v1759, %v1751
        %v2304 = vpack.c.b16 %v1760, %v1752
        %v2305 = vpack.c.b16 %v1761, %v1753
        %v2306 = vpack.c.b16 %v1762, %v1754
        %v2307 = vpack.c.b16 %v1771, %v1763
        %v2308 = vpack.c.b16 %v1772, %v1764
        %v2309 = vpack.c.b16 %v1773, %v1765
        %v2310 = vpack.c.b16 %v1774, %v1766
        %v2311 = vpack.c.b16 %v1775, %v1767
        %v2312 = vpack.c.b16 %v1776, %v1768
        %v2313 = vpack.c.b16 %v1777, %v1769
        %v2314 = vpack.c.b16 %v1778, %v1770
        %v2315 = vpack.c.b16 %v1787, %v1779
        %v2316 = vpack.c.b16 %v1788, %v1780
        %v2317 = vpack.c.b16 %v1789, %v1781
        %v2318 = vpack.c.b16 %v1790, %v1782
        %v2319 = vpack.c.b16 %v1791, %v1783
        %v2320 = vpack.c.b16 %v1792, %v1784
        %v2321 = vpack.c.b16 %v1793, %v1785
        %v2322 = vpack.c.b16 %v1794, %v1786
        %v2323 = vpack.c.b16 %v1803, %v1795
        %v2324 = vpack.c.b16 %v1804, %v1796
        %v2325 = vpack.c.b16 %v1805, %v1797
        %v2326 = vpack.c.b16 %v1806, %v1798
        %v2327 = vpack.c.b16 %v1807, %v1799
        %v2328 = vpack.c.b16 %v1808, %v1800
        %v2329 = vpack.c.b16 %v1809, %v1801
        %v2330 = vpack.c.b16 %v1810, %v1802
        %v2331 = vpack.c.b16 %v1819, %v1811
        %v2332 = vpack.c.b16 %v1820, %v1812
        %v2333 = vpack.c.b16 %v1821, %v1813
        %v2334 = vpack.c.b16 %v1822, %v1814
        %v2335 = vpack.c.b16 %v1823, %v1815
        %v2336 = vpack.c.b16 %v1824, %v1816
        %v2337 = vpack.c.b16 %v1825, %v1817
        %v2338 = vpack.c.b16 %v1826, %v1818
        %v2339 = vpack.c.b16 %v1835, %v1827
        %v2340 = vpack.c.b16 %v1836, %v1828
        %v2341 = vpack.c.b16 %v1837, %v1829
        %v2342 = vpack.c.b16 %v1838, %v1830
        %v2343 = vpack.c.b16 %v1839, %v1831
        %v2344 = vpack.c.b16 %v1840, %v1832
        %v2345 = vpack.c.b16 %v1841, %v1833
        %v2346 = vpack.c.b16 %v1842, %v1834
        %v2347 = vpack.c.b16 %v1851, %v1843
        %v2348 = vpack.c.b16 %v1852, %v1844
        %v2349 = vpack.c.b16 %v1853, %v1845
        %v2350 = vpack.c.b16 %v1854, %v1846
        %v2351 = vpack.c.b16 %v1855, %v1847
        %v2352 = vpack.c.b16 %v1856, %v1848
        %v2353 = vpack.c.b16 %v1857, %v1849
        %v2354 = vpack.c.b16 %v1858, %v1850
        %v2355 = vpack.c.b16 %v1867, %v1859
        %v2356 = vpack.c.b16 %v1868, %v1860
        %v2357 = vpack.c.b16 %v1869, %v1861
        %v2358 = vpack.c.b16 %v1870, %v1862
        %v2359 = vpack.c.b16 %v1871, %v1863
        %v2360 = vpack.c.b16 %v1872, %v1864
        %v2361 = vpack.c.b16 %v1873, %v1865
        %v2362 = vpack.c.b16 %v1874, %v1866
        %v2363 = vpack.c.b16 %v1883, %v1875
        %v2364 = vpack.c.b16 %v1884, %v1876
        %v2365 = vpack.c.b16 %v1885, %v1877
        %v2366 = vpack.c.b16 %v1886, %v1878
        %v2367 = vpack.c.b16 %v1887, %v1879
        %v2368 = vpack.c.b16 %v1888, %v1880
        %v2369 = vpack.c.b16 %v1889, %v1881
        %v2370 = vpack.c.b16 %v1890, %v1882
        %v2371 = vpack.c.b16 %v1899, %v1891
        %v2372 = vpack.c.b16 %v1900, %v1892
        %v2373 = vpack.c.b16 %v1901, %v1893
        %v2374 = vpack.c.b16 %v1902, %v1894
        %v2375 = vpack.c.b16 %v1903, %v1895
        %v2376 = vpack.c.b16 %v1904, %v1896
        %v2377 = vpack.c.b16 %v1905, %v1897
        %v2378 = vpack.c.b16 %v1906, %v1898
        %v2379 = vpack.c.b16 %v1915, %v1907
        %v2380 = vpack.c.b16 %v1916, %v1908
        %v2381 = vpack.c.b16 %v1917, %v1909
        %v2382 = vpack.c.b16 %v1918, %v1910
        %v2383 = vpack.c.b16 %v1919, %v1911
        %v2384 = vpack.c.b16 %v1920, %v1912
        %v2385 = vpack.c.b16 %v1921, %v1913
        %v2386 = vpack.c.b16 %v1922, %v1914
        %v2387 = vpack.c.b16 %v1931, %v1923
        %v2388 = vpack.c.b16 %v1932, %v1924
        %v2389 = vpack.c.b16 %v1933, %v1925
        %v2390 = vpack.c.b16 %v1934, %v1926
        %v2391 = vpack.c.b16 %v1935, %v1927
        %v2392 = vpack.c.b16 %v1936, %v1928
        %v2393 = vpack.c.b16 %v1937, %v1929
        %v2394 = vpack.c.b16 %v1938, %v1930
        %v2395 = vpack.c.b16 %v1947, %v1939
        %v2396 = vpack.c.b16 %v1948, %v1940
        %v2397 = vpack.c.b16 %v1949, %v1941
        %v2398 = vpack.c.b16 %v1950, %v1942
        %v2399 = vpack.c.b16 %v1951, %v1943
        %v2400 = vpack.c.b16 %v1952, %v1944
        %v2401 = vpack.c.b16 %v1953, %v1945
        %v2402 = vpack.c.b16 %v1954, %v1946
        %v2403 = vpack.c.b16 %v1963, %v1955
        %v2404 = vpack.c.b16 %v1964, %v1956
        %v2405 = vpack.c.b16 %v1965, %v1957
        %v2406 = vpack.c.b16 %v1966, %v1958
        %v2407 = vpack.c.b16 %v1967, %v1959
        %v2408 = vpack.c.b16 %v1968, %v1960
        %v2409 = vpack.c.b16 %v1969, %v1961
        %v2410 = vpack.c.b16 %v1970, %v1962
        %v2411 = vpack.c.b16 %v1979, %v1971
        %v2412 = vpack.c.b16 %v1980, %v1972
        %v2413 = vpack.c.b16 %v1981, %v1973
        %v2414 = vpack.c.b16 %v1982, %v1974
        %v2415 = vpack.c.b16 %v1983, %v1975
        %v2416 = vpack.c.b16 %v1984, %v1976
        %v2417 = vpack.c.b16 %v1985, %v1977
        %v2418 = vpack.c.b16 %v1986, %v1978
        %v2419 = vpack.c.b16 %v1995, %v1987
        %v2420 = vpack.c.b16 %v1996, %v1988
        %v2421 = vpack.c.b16 %v1997, %v1989
        %v2422 = vpack.c.b16 %v1998, %v1990
        %v2423 = vpack.c.b16 %v1999, %v1991
        %v2424 = vpack.c.b16 %v2000, %v1992
        %v2425 = vpack.c.b16 %v2001, %v1993
        %v2426 = vpack.c.b16 %v2002, %v1994
        %v2427 = vpack.c.b16 %v2011, %v2003
        %v2428 = vpack.c.b16 %v2012, %v2004
        %v2429 = vpack.c.b16 %v2013, %v2005
        %v2430 = vpack.c.b16 %v2014, %v2006
        %v2431 = vpack.c.b16 %v2015, %v2007
        %v2432 = vpack.c.b16 %v2016, %v2008
        %v2433 = vpack.c.b16 %v2017, %v2009
        %v2434 = vpack.c.b16 %v2018, %v2010
        %v2435 = vpack.c.b16 %v2027, %v2019
        %v2436 = vpack.c.b16 %v2028, %v2020
        %v2437 = vpack.c.b16 %v2029, %v2021
        %v2438 = vpack.c.b16 %v2030, %v2022
        %v2439 = vpack.c.b16 %v2031, %v2023
        %v2440 = vpack.c.b16 %v2032, %v2024
        %v2441 = vpack.c.b16 %v2033, %v2025
        %v2442 = vpack.c.b16 %v2034, %v2026
        %v2443 = vpack.c.b16 %v2043, %v2035
        %v2444 = vpack.c.b16 %v2044, %v2036
        %v2445 = vpack.c.b16 %v2045, %v2037
        %v2446 = vpack.c.b16 %v2046, %v2038
        %v2447 = vpack.c.b16 %v2047, %v2039
        %v2448 = vpack.c.b16 %v2048, %v2040
        %v2449 = vpack.c.b16 %v2049, %v2041
        %v2450 = vpack.c.b16 %v2050, %v2042
        %v2451 = vpack.c.b16 %v2059, %v2051
        %v2452 = vpack.c.b16 %v2060, %v2052
        %v2453 = vpack.c.b16 %v2061, %v2053
        %v2454 = vpack.c.b16 %v2062, %v2054
        %v2455 = vpack.c.b16 %v2063, %v2055
        %v2456 = vpack.c.b16 %v2064, %v2056
        %v2457 = vpack.c.b16 %v2065, %v2057
        %v2458 = vpack.c.b16 %v2066, %v2058
        %vm2851 = vcmask 130048
        %v2853 = vsel %vm2851, %v414, 0
        %v2856 = vsel %vm2851, %v421, 0
        %v2859 = vsel %vm2851, %v428, 0
        %v2862 = vsel %vm2851, %v435, 0
        %v2865 = vsel %vm2851, %v442, 0
        %v2868 = vsel %vm2851, %v449, 0
        %v2871 = vsel %vm2851, %v456, 0
        %2873 = vmatprep.subr.bf16.mxu0 %v2068
        %2874 = vmatpush1.bf16.msra.mxu0 %v2067
        %2875 = vmatprep.subr.bf16.mxu0 %v2076
        %2876 = vmatpush1.bf16.msra.mxu0 %v2075
        %2877 = vmatprep.subr.bf16.mxu0 %v2084
        %2878 = vmatpush1.bf16.msra.mxu0 %v2083
        %2879 = vmatprep.subr.bf16.mxu0 %v2092
        %2880 = vmatpush1.bf16.msra.mxu0 %v2091
        %2881 = vmatprep.subr.bf16.mxu0 %v2100
        %2882 = vmatpush1.bf16.msra.mxu0 %v2099
        %2883 = vmatprep.subr.bf16.mxu0 %v2108
        %2884 = vmatpush1.bf16.msra.mxu0 %v2107
        %2885 = vmatprep.subr.bf16.mxu0 %v2116
        %2886 = vmatpush1.bf16.msra.mxu0 %v2115
        %2887 = vmatprep.subr.bf16.mxu0 %v2124
        %2888 = vmatpush1.bf16.msra.mxu0 %v2123
        %2889 = vmatprep.subr.bf16.mxu0 %v2132
        %2890 = vmatpush1.bf16.msra.mxu0 %v2131
        %2891 = vmatprep.subr.bf16.mxu0 %v2140
        %2892 = vmatpush1.bf16.msra.mxu0 %v2139
        %2893 = vmatprep.subr.bf16.mxu0 %v2148
        %2894 = vmatpush1.bf16.msra.mxu0 %v2147
        %2895 = vmatprep.subr.bf16.mxu0 %v2156
        %2896 = vmatpush1.bf16.msra.mxu0 %v2155
        %2897 = vmatprep.subr.bf16.mxu0 %v2164
        %2898 = vmatpush1.bf16.msra.mxu0 %v2163
        %2899 = vmatprep.subr.bf16.mxu0 %v2172
        %2900 = vmatpush1.bf16.msra.mxu0 %v2171
        %2901 = vmatprep.subr.bf16.mxu0 %v2180
        %2902 = vmatpush1.bf16.msra.mxu0 %v2179
        %2903 = vmatprep.subr.bf16.mxu0 %v2188
        %2904 = vmatpush1.bf16.msra.mxu0 %v2187
        %2905 = vmatprep.mubr.bf16.mxu0 %v409
        %2906 = vmatmul.mubr.bf16.gmra.mrb[0].mxu0 %v408
        %v2907 = vpop.f32.mrb[0].mxu0
        %v2908 = vadd.f32 %v854, %v2907
        %v2909 = vpop.f32.mrb[0].mxu0
        %v2910 = vadd.f32 %v858, %v2909
        %v2911 = vpop.f32.mrb[0].mxu0
        %v2912 = vadd.f32 %v854, %v2911
        %v2913 = vpop.f32.mrb[0].mxu0
        %v2914 = vadd.f32 %v858, %v2913
        %2915 = vmatprep.mubr.bf16.mxu0 %v416
        %2916 = vmatmul.mubr.bf16.gmra.mrb[0].mxu0 %v415
        %v2917 = vpop.f32.mrb[0].mxu0
        %v2918 = vadd.f32 %v854, %v2917
        %v2919 = vpop.f32.mrb[0].mxu0
        %v2920 = vadd.f32 %v858, %v2919
        %v2921 = vpop.f32.mrb[0].mxu0
        %v2922 = vadd.f32 %v854, %v2921
        %v2923 = vpop.f32.mrb[0].mxu0
        %v2924 = vadd.f32 %v858, %v2923
        %2925 = vmatprep.mubr.bf16.mxu0 %v423
        %2926 = vmatmul.mubr.bf16.gmra.mrb[0].mxu0 %v422
        %v2927 = vpop.f32.mrb[0].mxu0
        %v2928 = vadd.f32 %v854, %v2927
        %v2929 = vpop.f32.mrb[0].mxu0
        %v2930 = vadd.f32 %v858, %v2929
        %v2931 = vpop.f32.mrb[0].mxu0
        %v2932 = vadd.f32 %v854, %v2931
        %v2933 = vpop.f32.mrb[0].mxu0
        %v2934 = vadd.f32 %v858, %v2933
        %2935 = vmatprep.mubr.bf16.mxu0 %v430
        %2936 = vmatmul.mubr.bf16.gmra.mrb[0].mxu0 %v429
        %v2937 = vpop.f32.mrb[0].mxu0
        %v2938 = vadd.f32 %v854, %v2937
        %v2939 = vpop.f32.mrb[0].mxu0
        %v2940 = vadd.f32 %v858, %v2939
        %v2941 = vpop.f32.mrb[0].mxu0
        %v2942 = vadd.f32 %v854, %v2941
        %v2943 = vpop.f32.mrb[0].mxu0
        %v2944 = vadd.f32 %v858, %v2943
        %2945 = vmatprep.mubr.bf16.mxu0 %v437
        %2946 = vmatmul.mubr.bf16.gmra.mrb[0].mxu0 %v436
        %v2947 = vpop.f32.mrb[0].mxu0
        %v2948 = vadd.f32 %v854, %v2947
        %v2949 = vpop.f32.mrb[0].mxu0
        %v2950 = vadd.f32 %v858, %v2949
        %v2951 = vpop.f32.mrb[0].mxu0
        %v2952 = vadd.f32 %v854, %v2951
        %v2953 = vpop.f32.mrb[0].mxu0
        %v2954 = vadd.f32 %v858, %v2953
        %2955 = vmatprep.mubr.bf16.mxu0 %v444
        %2956 = vmatmul.mubr.bf16.gmra.mrb[0].mxu0 %v443
        %v2957 = vpop.f32.mrb[0].mxu0
        %v2958 = vadd.f32 %v854, %v2957
        %v2959 = vpop.f32.mrb[0].mxu0
        %v2960 = vadd.f32 %v858, %v2959
        %v2961 = vpop.f32.mrb[0].mxu0
        %v2962 = vadd.f32 %v854, %v2961
        %v2963 = vpop.f32.mrb[0].mxu0
        %v2964 = vadd.f32 %v858, %v2963
        %2965 = vmatprep.mubr.bf16.mxu0 %v451
        %2966 = vmatmul.mubr.bf16.gmra.mrb[0].mxu0 %v450
        %v2967 = vpop.f32.mrb[0].mxu0
        %v2968 = vadd.f32 %v854, %v2967
        %v2969 = vpop.f32.mrb[0].mxu0
        %v2970 = vadd.f32 %v858, %v2969
        %v2971 = vpop.f32.mrb[0].mxu0
        %v2972 = vpop.f32.mrb[0].mxu0
        %2973 = vdwg.mxu0
        %2974 = vmatprep.subr.bf16.mxu0 %v2196
        %2975 = vmatpush1.bf16.msra.mxu0 %v2195
        %2976 = vmatprep.subr.bf16.mxu0 %v2204
        %2977 = vmatpush1.bf16.msra.mxu0 %v2203
        %2978 = vmatprep.subr.bf16.mxu0 %v2212
        %2979 = vmatpush1.bf16.msra.mxu0 %v2211
        %2980 = vmatprep.subr.bf16.mxu0 %v2220
        %2981 = vmatpush1.bf16.msra.mxu0 %v2219
        %2982 = vmatprep.subr.bf16.mxu0 %v2228
        %2983 = vmatpush1.bf16.msra.mxu0 %v2227
        %2984 = vmatprep.subr.bf16.mxu0 %v2236
        %2985 = vmatpush1.bf16.msra.mxu0 %v2235
        %2986 = vmatprep.subr.bf16.mxu0 %v2244
        %2987 = vmatpush1.bf16.msra.mxu0 %v2243
        %2988 = vmatprep.subr.bf16.mxu0 %v2252
        %2989 = vmatpush1.bf16.msra.mxu0 %v2251
        %2990 = vmatprep.subr.bf16.mxu0 %v2260
        %2991 = vmatpush1.bf16.msra.mxu0 %v2259
        %2992 = vmatprep.subr.bf16.mxu0 %v2268
        %2993 = vmatpush1.bf16.msra.mxu0 %v2267
        %2994 = vmatprep.subr.bf16.mxu0 %v2276
        %2995 = vmatpush1.bf16.msra.mxu0 %v2275
        %2996 = vmatprep.subr.bf16.mxu0 %v2284
        %2997 = vmatpush1.bf16.msra.mxu0 %v2283
        %2998 = vmatprep.subr.bf16.mxu0 %v2292
        %2999 = vmatpush1.bf16.msra.mxu0 %v2291
        %3000 = vmatprep.subr.bf16.mxu0 %v2300
        %3001 = vmatpush1.bf16.msra.mxu0 %v2299
        %3002 = vmatprep.subr.bf16.mxu0 %v2308
        %3003 = vmatpush1.bf16.msra.mxu0 %v2307
        %3004 = vmatprep.subr.bf16.mxu0 %v2316
        %3005 = vmatpush1.bf16.msra.mxu0 %v2315
        %3006 = vmatprep.mubr.bf16.mxu0 %v411
        %3007 = vmatmul.mubr.bf16.gmra.mrb[0].mxu0 %v410
        %v3008 = vpop.f32.mrb[0].mxu0
        %v3009 = vadd.f32 %v2908, %v3008
        %v3010 = vpop.f32.mrb[0].mxu0
        %v3011 = vadd.f32 %v2910, %v3010
        %v3012 = vpop.f32.mrb[0].mxu0
        %v3013 = vadd.f32 %v2912, %v3012
        %v3014 = vpop.f32.mrb[0].mxu0
        %v3015 = vadd.f32 %v2914, %v3014
        %3016 = vmatprep.mubr.bf16.mxu0 %v418
        %3017 = vmatmul.mubr.bf16.gmra.mrb[0].mxu0 %v417
        %v3018 = vpop.f32.mrb[0].mxu0
        %v3019 = vadd.f32 %v2918, %v3018
        %v3020 = vpop.f32.mrb[0].mxu0
        %v3021 = vadd.f32 %v2920, %v3020
        %v3022 = vpop.f32.mrb[0].mxu0
        %v3023 = vadd.f32 %v2922, %v3022
        %v3024 = vpop.f32.mrb[0].mxu0
        %v3025 = vadd.f32 %v2924, %v3024
        %3026 = vmatprep.mubr.bf16.mxu0 %v425
        %3027 = vmatmul.mubr.bf16.gmra.mrb[0].mxu0 %v424
        %v3028 = vpop.f32.mrb[0].mxu0
        %v3029 = vadd.f32 %v2928, %v3028
        %v3030 = vpop.f32.mrb[0].mxu0
        %v3031 = vadd.f32 %v2930, %v3030
        %v3032 = vpop.f32.mrb[0].mxu0
        %v3033 = vadd.f32 %v2932, %v3032
        %v3034 = vpop.f32.mrb[0].mxu0
        %v3035 = vadd.f32 %v2934, %v3034
        %3036 = vmatprep.mubr.bf16.mxu0 %v432
        %3037 = vmatmul.mubr.bf16.gmra.mrb[0].mxu0 %v431
        %v3038 = vpop.f32.mrb[0].mxu0
        %v3039 = vadd.f32 %v2938, %v3038
        %v3040 = vpop.f32.mrb[0].mxu0
        %v3041 = vadd.f32 %v2940, %v3040
        %v3042 = vpop.f32.mrb[0].mxu0
        %v3043 = vadd.f32 %v2942, %v3042
        %v3044 = vpop.f32.mrb[0].mxu0
        %v3045 = vadd.f32 %v2944, %v3044
        %3046 = vmatprep.mubr.bf16.mxu0 %v439
        %3047 = vmatmul.mubr.bf16.gmra.mrb[0].mxu0 %v438
        %v3048 = vpop.f32.mrb[0].mxu0
        %v3049 = vadd.f32 %v2948, %v3048
        %v3050 = vpop.f32.mrb[0].mxu0
        %v3051 = vadd.f32 %v2950, %v3050
        %v3052 = vpop.f32.mrb[0].mxu0
        %v3053 = vadd.f32 %v2952, %v3052
        %v3054 = vpop.f32.mrb[0].mxu0
        %v3055 = vadd.f32 %v2954, %v3054
        %3056 = vmatprep.mubr.bf16.mxu0 %v446
        %3057 = vmatmul.mubr.bf16.gmra.mrb[0].mxu0 %v445
        %v3058 = vpop.f32.mrb[0].mxu0
        %v3059 = vadd.f32 %v2958, %v3058
        %v3060 = vpop.f32.mrb[0].mxu0
        %v3061 = vadd.f32 %v2960, %v3060
        %v3062 = vpop.f32.mrb[0].mxu0
        %v3063 = vadd.f32 %v2962, %v3062
        %v3064 = vpop.f32.mrb[0].mxu0
        %v3065 = vadd.f32 %v2964, %v3064
        %3066 = vmatprep.mubr.bf16.mxu0 %v453
        %3067 = vmatmul.mubr.bf16.gmra.mrb[0].mxu0 %v452
        %v3068 = vpop.f32.mrb[0].mxu0
        %v3069 = vadd.f32 %v2968, %v3068
        %v3070 = vpop.f32.mrb[0].mxu0
        %v3071 = vadd.f32 %v2970, %v3070
        %v3072 = vpop.f32.mrb[0].mxu0
        %v3073 = vpop.f32.mrb[0].mxu0
        %3074 = vdwg.mxu0
        %3075 = vmatprep.subr.bf16.mxu0 %v2324
        %3076 = vmatpush1.bf16.msra.mxu0 %v2323
        %3077 = vmatprep.subr.bf16.mxu0 %v2332
        %3078 = vmatpush1.bf16.msra.mxu0 %v2331
        %3079 = vmatprep.subr.bf16.mxu0 %v2340
        %3080 = vmatpush1.bf16.msra.mxu0 %v2339
        %3081 = vmatprep.subr.bf16.mxu0 %v2348
        %3082 = vmatpush1.bf16.msra.mxu0 %v2347
        %3083 = vmatprep.subr.bf16.mxu0 %v2356
        %3084 = vmatpush1.bf16.msra.mxu0 %v2355
        %3085 = vmatprep.subr.bf16.mxu0 %v2364
        %3086 = vmatpush1.bf16.msra.mxu0 %v2363
        %3087 = vmatprep.subr.bf16.mxu0 %v2372
        %3088 = vmatpush1.bf16.msra.mxu0 %v2371
        %3089 = vmatprep.subr.bf16.mxu0 %v2380
        %3090 = vmatpush1.bf16.msra.mxu0 %v2379
        %3091 = vmatprep.subr.bf16.mxu0 %v2388
        %3092 = vmatpush1.bf16.msra.mxu0 %v2387
        %3093 = vmatprep.subr.bf16.mxu0 %v2396
        %3094 = vmatpush1.bf16.msra.mxu0 %v2395
        %3095 = vmatprep.subr.bf16.mxu0 %v2404
        %3096 = vmatpush1.bf16.msra.mxu0 %v2403
        %3097 = vmatprep.subr.bf16.mxu0 %v2412
        %3098 = vmatpush1.bf16.msra.mxu0 %v2411
        %3099 = vmatprep.subr.bf16.mxu0 %v2420
        %3100 = vmatpush1.bf16.msra.mxu0 %v2419
        %3101 = vmatprep.subr.bf16.mxu0 %v2428
        %3102 = vmatpush1.bf16.msra.mxu0 %v2427
        %3103 = vmatprep.subr.bf16.mxu0 %v2436
        %3104 = vmatpush1.bf16.msra.mxu0 %v2435
        %3105 = vmatprep.subr.bf16.mxu0 %v2444
        %3106 = vmatpush1.bf16.msra.mxu0 %v2443
        %3107 = vmatprep.mubr.bf16.mxu0 %v413
        %3108 = vmatmul.mubr.bf16.gmra.mrb[0].mxu0 %v412
        %v3109 = vpop.f32.mrb[0].mxu0
        %v3110 = vadd.f32 %v3009, %v3109
        %v3111 = vpop.f32.mrb[0].mxu0
        %v3112 = vadd.f32 %v3011, %v3111
        %v3113 = vpop.f32.mrb[0].mxu0
        %v3114 = vadd.f32 %v3013, %v3113
        %v3115 = vpop.f32.mrb[0].mxu0
        %v3116 = vadd.f32 %v3015, %v3115
        %3117 = vmatprep.mubr.bf16.mxu0 %v420
        %3118 = vmatmul.mubr.bf16.gmra.mrb[0].mxu0 %v419
        %v3119 = vpop.f32.mrb[0].mxu0
        %v3120 = vadd.f32 %v3019, %v3119
        %v3121 = vpop.f32.mrb[0].mxu0
        %v3122 = vadd.f32 %v3021, %v3121
        %v3123 = vpop.f32.mrb[0].mxu0
        %v3124 = vadd.f32 %v3023, %v3123
        %v3125 = vpop.f32.mrb[0].mxu0
        %v3126 = vadd.f32 %v3025, %v3125
        %3127 = vmatprep.mubr.bf16.mxu0 %v427
        %3128 = vmatmul.mubr.bf16.gmra.mrb[0].mxu0 %v426
        %v3129 = vpop.f32.mrb[0].mxu0
        %v3130 = vadd.f32 %v3029, %v3129
        %v3131 = vpop.f32.mrb[0].mxu0
        %v3132 = vadd.f32 %v3031, %v3131
        %v3133 = vpop.f32.mrb[0].mxu0
        %v3134 = vadd.f32 %v3033, %v3133
        %v3135 = vpop.f32.mrb[0].mxu0
        %v3136 = vadd.f32 %v3035, %v3135
        %3137 = vmatprep.mubr.bf16.mxu0 %v434
        %3138 = vmatmul.mubr.bf16.gmra.mrb[0].mxu0 %v433
        %v3139 = vpop.f32.mrb[0].mxu0
        %v3140 = vadd.f32 %v3039, %v3139
        %v3141 = vpop.f32.mrb[0].mxu0
        %v3142 = vadd.f32 %v3041, %v3141
        %v3143 = vpop.f32.mrb[0].mxu0
        %v3144 = vadd.f32 %v3043, %v3143
        %v3145 = vpop.f32.mrb[0].mxu0
        %v3146 = vadd.f32 %v3045, %v3145
        %3147 = vmatprep.mubr.bf16.mxu0 %v441
        %3148 = vmatmul.mubr.bf16.gmra.mrb[0].mxu0 %v440
        %v3149 = vpop.f32.mrb[0].mxu0
        %v3150 = vadd.f32 %v3049, %v3149
        %v3151 = vpop.f32.mrb[0].mxu0
        %v3152 = vadd.f32 %v3051, %v3151
        %v3153 = vpop.f32.mrb[0].mxu0
        %v3154 = vadd.f32 %v3053, %v3153
        %v3155 = vpop.f32.mrb[0].mxu0
        %v3156 = vadd.f32 %v3055, %v3155
        %3157 = vmatprep.mubr.bf16.mxu0 %v448
        %3158 = vmatmul.mubr.bf16.gmra.mrb[0].mxu0 %v447
        %v3159 = vpop.f32.mrb[0].mxu0
        %v3160 = vadd.f32 %v3059, %v3159
        %v3161 = vpop.f32.mrb[0].mxu0
        %v3162 = vadd.f32 %v3061, %v3161
        %v3163 = vpop.f32.mrb[0].mxu0
        %v3164 = vadd.f32 %v3063, %v3163
        %v3165 = vpop.f32.mrb[0].mxu0
        %v3166 = vadd.f32 %v3065, %v3165
        %3167 = vmatprep.mubr.bf16.mxu0 %v455
        %3168 = vmatmul.mubr.bf16.gmra.mrb[0].mxu0 %v454
        %v3169 = vpop.f32.mrb[0].mxu0
        %v3170 = vadd.f32 %v3069, %v3169
        %v3171 = vpop.f32.mrb[0].mxu0
        %v3172 = vadd.f32 %v3071, %v3171
        %v3173 = vpop.f32.mrb[0].mxu0
        %v3174 = vpop.f32.mrb[0].mxu0
        %3175 = vdwg.mxu0
        %3176 = vmatprep.subr.bf16.mxu0 %v2452
        %3177 = vmatpush1.bf16.msra.mxu0 %v2451
        %3178 = vmatprep.subr.bf16.mxu0 0
        %3179 = vmatpush1.bf16.msra.mxu0 0
        %3180 = vmatprep.subr.bf16.mxu0 0
        %3181 = vmatpush1.bf16.msra.mxu0 0
        %3182 = vmatprep.subr.bf16.mxu0 0
        %3183 = vmatpush1.bf16.msra.mxu0 0
        %3184 = vmatprep.subr.bf16.mxu0 0
        %3185 = vmatpush1.bf16.msra.mxu0 0
        %3186 = vmatprep.subr.bf16.mxu0 0
        %3187 = vmatpush1.bf16.msra.mxu0 0
        %3188 = vmatprep.subr.bf16.mxu0 0
        %3189 = vmatpush1.bf16.msra.mxu0 0
        %3190 = vmatprep.subr.bf16.mxu0 0
        %3191 = vmatpush1.bf16.msra.mxu0 0
        %3192 = vmatprep.subr.bf16.mxu0 0
        %3193 = vmatpush1.bf16.msra.mxu0 0
        %3194 = vmatprep.subr.bf16.mxu0 0
        %3195 = vmatpush1.bf16.msra.mxu0 0
        %3196 = vmatprep.subr.bf16.mxu0 0
        %3197 = vmatpush1.bf16.msra.mxu0 0
        %3198 = vmatprep.subr.bf16.mxu0 0
        %3199 = vmatpush1.bf16.msra.mxu0 0
        %3200 = vmatprep.subr.bf16.mxu0 0
        %3201 = vmatpush1.bf16.msra.mxu0 0
        %3202 = vmatprep.subr.bf16.mxu0 0
        %3203 = vmatpush1.bf16.msra.mxu0 0
        %3204 = vmatprep.subr.bf16.mxu0 0
        %3205 = vmatpush1.bf16.msra.mxu0 0
        %3206 = vmatprep.subr.bf16.mxu0 0
        %3207 = vmatpush1.bf16.msra.mxu0 0
        %3208 = vmatprep.mubr.bf16.mxu0 0
        %3209 = vmatmul.mubr.bf16.gmra.mrb[0].mxu0 %v2853
        %v3210 = vpop.f32.mrb[0].mxu0
        %v3211 = vadd.f32 %v3110, %v3210
        %v3212 = vpop.f32.mrb[0].mxu0
        %v3213 = vadd.f32 %v3112, %v3212
        %v3214 = vpop.f32.mrb[0].mxu0
        %v3215 = vadd.f32 %v3114, %v3214
        %v3216 = vpop.f32.mrb[0].mxu0
        %v3217 = vadd.f32 %v3116, %v3216
        %3218 = vmatprep.mubr.bf16.mxu0 0
        %3219 = vmatmul.mubr.bf16.gmra.mrb[0].mxu0 %v2856
        %v3220 = vpop.f32.mrb[0].mxu0
        %v3221 = vadd.f32 %v3120, %v3220
        %v3222 = vpop.f32.mrb[0].mxu0
        %v3223 = vadd.f32 %v3122, %v3222
        %v3224 = vpop.f32.mrb[0].mxu0
        %v3225 = vadd.f32 %v3124, %v3224
        %v3226 = vpop.f32.mrb[0].mxu0
        %v3227 = vadd.f32 %v3126, %v3226
        %3228 = vmatprep.mubr.bf16.mxu0 0
        %3229 = vmatmul.mubr.bf16.gmra.mrb[0].mxu0 %v2859
        %v3230 = vpop.f32.mrb[0].mxu0
        %v3231 = vadd.f32 %v3130, %v3230
        %v3232 = vpop.f32.mrb[0].mxu0
        %v3233 = vadd.f32 %v3132, %v3232
        %v3234 = vpop.f32.mrb[0].mxu0
        %v3235 = vadd.f32 %v3134, %v3234
        %v3236 = vpop.f32.mrb[0].mxu0
        %v3237 = vadd.f32 %v3136, %v3236
        %3238 = vmatprep.mubr.bf16.mxu0 0
        %3239 = vmatmul.mubr.bf16.gmra.mrb[0].mxu0 %v2862
        %v3240 = vpop.f32.mrb[0].mxu0
        %v3241 = vadd.f32 %v3140, %v3240
        %v3242 = vpop.f32.mrb[0].mxu0
        %v3243 = vadd.f32 %v3142, %v3242
        %v3244 = vpop.f32.mrb[0].mxu0
        %v3245 = vadd.f32 %v3144, %v3244
        %v3246 = vpop.f32.mrb[0].mxu0
        %v3247 = vadd.f32 %v3146, %v3246
        %3248 = vmatprep.mubr.bf16.mxu0 0
        %3249 = vmatmul.mubr.bf16.gmra.mrb[0].mxu0 %v2865
        %v3250 = vpop.f32.mrb[0].mxu0
        %v3251 = vadd.f32 %v3150, %v3250
        %v3252 = vpop.f32.mrb[0].mxu0
        %v3253 = vadd.f32 %v3152, %v3252
        %v3254 = vpop.f32.mrb[0].mxu0
        %v3255 = vadd.f32 %v3154, %v3254
        %v3256 = vpop.f32.mrb[0].mxu0
        %v3257 = vadd.f32 %v3156, %v3256
        %3258 = vmatprep.mubr.bf16.mxu0 0
        %3259 = vmatmul.mubr.bf16.gmra.mrb[0].mxu0 %v2868
        %v3260 = vpop.f32.mrb[0].mxu0
        %v3261 = vadd.f32 %v3160, %v3260
        %v3262 = vpop.f32.mrb[0].mxu0
        %v3263 = vadd.f32 %v3162, %v3262
        %v3264 = vpop.f32.mrb[0].mxu0
        %v3265 = vadd.f32 %v3164, %v3264
        %v3266 = vpop.f32.mrb[0].mxu0
        %v3267 = vadd.f32 %v3166, %v3266
        %3268 = vmatprep.mubr.bf16.mxu0 0
        %3269 = vmatmul.mubr.bf16.gmra.mrb[0].mxu0 %v2871
        %v3270 = vpop.f32.mrb[0].mxu0
        %v3271 = vadd.f32 %v3170, %v3270
        %v3272 = vpop.f32.mrb[0].mxu0
        %v3273 = vadd.f32 %v3172, %v3272
        %v3274 = vpop.f32.mrb[0].mxu0
        %v3275 = vpop.f32.mrb[0].mxu0
        %3276 = vdwg.mxu0
        %3277 = vmatprep.subr.bf16.mxu0 %v2070
        %3278 = vmatpush1.bf16.msra.mxu0 %v2069
        %3279 = vmatprep.subr.bf16.mxu0 %v2078
        %3280 = vmatpush1.bf16.msra.mxu0 %v2077
        %3281 = vmatprep.subr.bf16.mxu0 %v2086
        %3282 = vmatpush1.bf16.msra.mxu0 %v2085
        %3283 = vmatprep.subr.bf16.mxu0 %v2094
        %3284 = vmatpush1.bf16.msra.mxu0 %v2093
        %3285 = vmatprep.subr.bf16.mxu0 %v2102
        %3286 = vmatpush1.bf16.msra.mxu0 %v2101
        %3287 = vmatprep.subr.bf16.mxu0 %v2110
        %3288 = vmatpush1.bf16.msra.mxu0 %v2109
        %3289 = vmatprep.subr.bf16.mxu0 %v2118
        %3290 = vmatpush1.bf16.msra.mxu0 %v2117
        %3291 = vmatprep.subr.bf16.mxu0 %v2126
        %3292 = vmatpush1.bf16.msra.mxu0 %v2125
        %3293 = vmatprep.subr.bf16.mxu0 %v2134
        %3294 = vmatpush1.bf16.msra.mxu0 %v2133
        %3295 = vmatprep.subr.bf16.mxu0 %v2142
        %3296 = vmatpush1.bf16.msra.mxu0 %v2141
        %3297 = vmatprep.subr.bf16.mxu0 %v2150
        %3298 = vmatpush1.bf16.msra.mxu0 %v2149
        %3299 = vmatprep.subr.bf16.mxu0 %v2158
        %3300 = vmatpush1.bf16.msra.mxu0 %v2157
        %3301 = vmatprep.subr.bf16.mxu0 %v2166
        %3302 = vmatpush1.bf16.msra.mxu0 %v2165
        %3303 = vmatprep.subr.bf16.mxu0 %v2174
        %3304 = vmatpush1.bf16.msra.mxu0 %v2173
        %3305 = vmatprep.subr.bf16.mxu0 %v2182
        %3306 = vmatpush1.bf16.msra.mxu0 %v2181
        %3307 = vmatprep.subr.bf16.mxu0 %v2190
        %3308 = vmatpush1.bf16.msra.mxu0 %v2189
        %3309 = vmatprep.mubr.bf16.mxu0 %v409
        %3310 = vmatmul.mubr.bf16.gmra.mrb[0].mxu0 %v408
        %v3311 = vpop.f32.mrb[0].mxu0
        %v3312 = vadd.f32 %v862, %v3311
        %v3313 = vpop.f32.mrb[0].mxu0
        %v3314 = vadd.f32 %v866, %v3313
        %v3315 = vpop.f32.mrb[0].mxu0
        %v3316 = vadd.f32 %v862, %v3315
        %v3317 = vpop.f32.mrb[0].mxu0
        %v3318 = vadd.f32 %v866, %v3317
        %3319 = vmatprep.mubr.bf16.mxu0 %v416
        %3320 = vmatmul.mubr.bf16.gmra.mrb[0].mxu0 %v415
        %v3321 = vpop.f32.mrb[0].mxu0
        %v3322 = vadd.f32 %v862, %v3321
        %v3323 = vpop.f32.mrb[0].mxu0
        %v3324 = vadd.f32 %v866, %v3323
        %v3325 = vpop.f32.mrb[0].mxu0
        %v3326 = vadd.f32 %v862, %v3325
        %v3327 = vpop.f32.mrb[0].mxu0
        %v3328 = vadd.f32 %v866, %v3327
        %3329 = vmatprep.mubr.bf16.mxu0 %v423
        %3330 = vmatmul.mubr.bf16.gmra.mrb[0].mxu0 %v422
        %v3331 = vpop.f32.mrb[0].mxu0
        %v3332 = vadd.f32 %v862, %v3331
        %v3333 = vpop.f32.mrb[0].mxu0
        %v3334 = vadd.f32 %v866, %v3333
        %v3335 = vpop.f32.mrb[0].mxu0
        %v3336 = vadd.f32 %v862, %v3335
        %v3337 = vpop.f32.mrb[0].mxu0
        %v3338 = vadd.f32 %v866, %v3337
        %3339 = vmatprep.mubr.bf16.mxu0 %v430
        %3340 = vmatmul.mubr.bf16.gmra.mrb[0].mxu0 %v429
        %v3341 = vpop.f32.mrb[0].mxu0
        %v3342 = vadd.f32 %v862, %v3341
        %v3343 = vpop.f32.mrb[0].mxu0
        %v3344 = vadd.f32 %v866, %v3343
        %v3345 = vpop.f32.mrb[0].mxu0
        %v3346 = vadd.f32 %v862, %v3345
        %v3347 = vpop.f32.mrb[0].mxu0
        %v3348 = vadd.f32 %v866, %v3347
        %3349 = vmatprep.mubr.bf16.mxu0 %v437
        %3350 = vmatmul.mubr.bf16.gmra.mrb[0].mxu0 %v436
        %v3351 = vpop.f32.mrb[0].mxu0
        %v3352 = vadd.f32 %v862, %v3351
        %v3353 = vpop.f32.mrb[0].mxu0
        %v3354 = vadd.f32 %v866, %v3353
        %v3355 = vpop.f32.mrb[0].mxu0
        %v3356 = vadd.f32 %v862, %v3355
        %v3357 = vpop.f32.mrb[0].mxu0
        %v3358 = vadd.f32 %v866, %v3357
        %3359 = vmatprep.mubr.bf16.mxu0 %v444
        %3360 = vmatmul.mubr.bf16.gmra.mrb[0].mxu0 %v443
        %v3361 = vpop.f32.mrb[0].mxu0
        %v3362 = vadd.f32 %v862, %v3361
        %v3363 = vpop.f32.mrb[0].mxu0
        %v3364 = vadd.f32 %v866, %v3363
        %v3365 = vpop.f32.mrb[0].mxu0
        %v3366 = vadd.f32 %v862, %v3365
        %v3367 = vpop.f32.mrb[0].mxu0
        %v3368 = vadd.f32 %v866, %v3367
        %3369 = vmatprep.mubr.bf16.mxu0 %v451
        %3370 = vmatmul.mubr.bf16.gmra.mrb[0].mxu0 %v450
        %v3371 = vpop.f32.mrb[0].mxu0
        %v3372 = vadd.f32 %v862, %v3371
        %v3373 = vpop.f32.mrb[0].mxu0
        %v3374 = vadd.f32 %v866, %v3373
        %v3375 = vpop.f32.mrb[0].mxu0
        %v3376 = vpop.f32.mrb[0].mxu0
        %3377 = vdwg.mxu0
        %3378 = vmatprep.subr.bf16.mxu0 %v2198
        %3379 = vmatpush1.bf16.msra.mxu0 %v2197
        %3380 = vmatprep.subr.bf16.mxu0 %v2206
        %3381 = vmatpush1.bf16.msra.mxu0 %v2205
        %3382 = vmatprep.subr.bf16.mxu0 %v2214
        %3383 = vmatpush1.bf16.msra.mxu0 %v2213
        %3384 = vmatprep.subr.bf16.mxu0 %v2222
        %3385 = vmatpush1.bf16.msra.mxu0 %v2221
        %3386 = vmatprep.subr.bf16.mxu0 %v2230
        %3387 = vmatpush1.bf16.msra.mxu0 %v2229
        %3388 = vmatprep.subr.bf16.mxu0 %v2238
        %3389 = vmatpush1.bf16.msra.mxu0 %v2237
        %3390 = vmatprep.subr.bf16.mxu0 %v2246
        %3391 = vmatpush1.bf16.msra.mxu0 %v2245
        %3392 = vmatprep.subr.bf16.mxu0 %v2254
        %3393 = vmatpush1.bf16.msra.mxu0 %v2253
        %3394 = vmatprep.subr.bf16.mxu0 %v2262
        %3395 = vmatpush1.bf16.msra.mxu0 %v2261
        %3396 = vmatprep.subr.bf16.mxu0 %v2270
        %3397 = vmatpush1.bf16.msra.mxu0 %v2269
        %3398 = vmatprep.subr.bf16.mxu0 %v2278
        %3399 = vmatpush1.bf16.msra.mxu0 %v2277
        %3400 = vmatprep.subr.bf16.mxu0 %v2286
        %3401 = vmatpush1.bf16.msra.mxu0 %v2285
        %3402 = vmatprep.subr.bf16.mxu0 %v2294
        %3403 = vmatpush1.bf16.msra.mxu0 %v2293
        %3404 = vmatprep.subr.bf16.mxu0 %v2302
        %3405 = vmatpush1.bf16.msra.mxu0 %v2301
        %3406 = vmatprep.subr.bf16.mxu0 %v2310
        %3407 = vmatpush1.bf16.msra.mxu0 %v2309
        %3408 = vmatprep.subr.bf16.mxu0 %v2318
        %3409 = vmatpush1.bf16.msra.mxu0 %v2317
        %3410 = vmatprep.mubr.bf16.mxu0 %v411
        %3411 = vmatmul.mubr.bf16.gmra.mrb[0].mxu0 %v410
        %v3412 = vpop.f32.mrb[0].mxu0
        %v3413 = vadd.f32 %v3312, %v3412
        %v3414 = vpop.f32.mrb[0].mxu0
        %v3415 = vadd.f32 %v3314, %v3414
        %v3416 = vpop.f32.mrb[0].mxu0
        %v3417 = vadd.f32 %v3316, %v3416
        %v3418 = vpop.f32.mrb[0].mxu0
        %v3419 = vadd.f32 %v3318, %v3418
        %3420 = vmatprep.mubr.bf16.mxu0 %v418
        %3421 = vmatmul.mubr.bf16.gmra.mrb[0].mxu0 %v417
        %v3422 = vpop.f32.mrb[0].mxu0
        %v3423 = vadd.f32 %v3322, %v3422
        %v3424 = vpop.f32.mrb[0].mxu0
        %v3425 = vadd.f32 %v3324, %v3424
        %v3426 = vpop.f32.mrb[0].mxu0
        %v3427 = vadd.f32 %v3326, %v3426
        %v3428 = vpop.f32.mrb[0].mxu0
        %v3429 = vadd.f32 %v3328, %v3428
        %3430 = vmatprep.mubr.bf16.mxu0 %v425
        %3431 = vmatmul.mubr.bf16.gmra.mrb[0].mxu0 %v424
        %v3432 = vpop.f32.mrb[0].mxu0
        %v3433 = vadd.f32 %v3332, %v3432
        %v3434 = vpop.f32.mrb[0].mxu0
        %v3435 = vadd.f32 %v3334, %v3434
        %v3436 = vpop.f32.mrb[0].mxu0
        %v3437 = vadd.f32 %v3336, %v3436
        %v3438 = vpop.f32.mrb[0].mxu0
        %v3439 = vadd.f32 %v3338, %v3438
        %3440 = vmatprep.mubr.bf16.mxu0 %v432
        %3441 = vmatmul.mubr.bf16.gmra.mrb[0].mxu0 %v431
        %v3442 = vpop.f32.mrb[0].mxu0
        %v3443 = vadd.f32 %v3342, %v3442
        %v3444 = vpop.f32.mrb[0].mxu0
        %v3445 = vadd.f32 %v3344, %v3444
        %v3446 = vpop.f32.mrb[0].mxu0
        %v3447 = vadd.f32 %v3346, %v3446
        %v3448 = vpop.f32.mrb[0].mxu0
        %v3449 = vadd.f32 %v3348, %v3448
        %3450 = vmatprep.mubr.bf16.mxu0 %v439
        %3451 = vmatmul.mubr.bf16.gmra.mrb[0].mxu0 %v438
        %v3452 = vpop.f32.mrb[0].mxu0
        %v3453 = vadd.f32 %v3352, %v3452
        %v3454 = vpop.f32.mrb[0].mxu0
        %v3455 = vadd.f32 %v3354, %v3454
        %v3456 = vpop.f32.mrb[0].mxu0
        %v3457 = vadd.f32 %v3356, %v3456
        %v3458 = vpop.f32.mrb[0].mxu0
        %v3459 = vadd.f32 %v3358, %v3458
        %3460 = vmatprep.mubr.bf16.mxu0 %v446
        %3461 = vmatmul.mubr.bf16.gmra.mrb[0].mxu0 %v445
        %v3462 = vpop.f32.mrb[0].mxu0
        %v3463 = vadd.f32 %v3362, %v3462
        %v3464 = vpop.f32.mrb[0].mxu0
        %v3465 = vadd.f32 %v3364, %v3464
        %v3466 = vpop.f32.mrb[0].mxu0
        %v3467 = vadd.f32 %v3366, %v3466
        %v3468 = vpop.f32.mrb[0].mxu0
        %v3469 = vadd.f32 %v3368, %v3468
        %3470 = vmatprep.mubr.bf16.mxu0 %v453
        %3471 = vmatmul.mubr.bf16.gmra.mrb[0].mxu0 %v452
        %v3472 = vpop.f32.mrb[0].mxu0
        %v3473 = vadd.f32 %v3372, %v3472
        %v3474 = vpop.f32.mrb[0].mxu0
        %v3475 = vadd.f32 %v3374, %v3474
        %v3476 = vpop.f32.mrb[0].mxu0
        %v3477 = vpop.f32.mrb[0].mxu0
        %3478 = vdwg.mxu0
        %3479 = vmatprep.subr.bf16.mxu0 %v2326
        %3480 = vmatpush1.bf16.msra.mxu0 %v2325
        %3481 = vmatprep.subr.bf16.mxu0 %v2334
        %3482 = vmatpush1.bf16.msra.mxu0 %v2333
        %3483 = vmatprep.subr.bf16.mxu0 %v2342
        %3484 = vmatpush1.bf16.msra.mxu0 %v2341
        %3485 = vmatprep.subr.bf16.mxu0 %v2350
        %3486 = vmatpush1.bf16.msra.mxu0 %v2349
        %3487 = vmatprep.subr.bf16.mxu0 %v2358
        %3488 = vmatpush1.bf16.msra.mxu0 %v2357
        %3489 = vmatprep.subr.bf16.mxu0 %v2366
        %3490 = vmatpush1.bf16.msra.mxu0 %v2365
        %3491 = vmatprep.subr.bf16.mxu0 %v2374
        %3492 = vmatpush1.bf16.msra.mxu0 %v2373
        %3493 = vmatprep.subr.bf16.mxu0 %v2382
        %3494 = vmatpush1.bf16.msra.mxu0 %v2381
        %3495 = vmatprep.subr.bf16.mxu0 %v2390
        %3496 = vmatpush1.bf16.msra.mxu0 %v2389
        %3497 = vmatprep.subr.bf16.mxu0 %v2398
        %3498 = vmatpush1.bf16.msra.mxu0 %v2397
        %3499 = vmatprep.subr.bf16.mxu0 %v2406
        %3500 = vmatpush1.bf16.msra.mxu0 %v2405
        %3501 = vmatprep.subr.bf16.mxu0 %v2414
        %3502 = vmatpush1.bf16.msra.mxu0 %v2413
        %3503 = vmatprep.subr.bf16.mxu0 %v2422
        %3504 = vmatpush1.bf16.msra.mxu0 %v2421
        %3505 = vmatprep.subr.bf16.mxu0 %v2430
        %3506 = vmatpush1.bf16.msra.mxu0 %v2429
        %3507 = vmatprep.subr.bf16.mxu0 %v2438
        %3508 = vmatpush1.bf16.msra.mxu0 %v2437
        %3509 = vmatprep.subr.bf16.mxu0 %v2446
        %3510 = vmatpush1.bf16.msra.mxu0 %v2445
        %3511 = vmatprep.mubr.bf16.mxu0 %v413
        %3512 = vmatmul.mubr.bf16.gmra.mrb[0].mxu0 %v412
        %v3513 = vpop.f32.mrb[0].mxu0
        %v3514 = vadd.f32 %v3413, %v3513
        %v3515 = vpop.f32.mrb[0].mxu0
        %v3516 = vadd.f32 %v3415, %v3515
        %v3517 = vpop.f32.mrb[0].mxu0
        %v3518 = vadd.f32 %v3417, %v3517
        %v3519 = vpop.f32.mrb[0].mxu0
        %v3520 = vadd.f32 %v3419, %v3519
        %3521 = vmatprep.mubr.bf16.mxu0 %v420
        %3522 = vmatmul.mubr.bf16.gmra.mrb[0].mxu0 %v419
        %v3523 = vpop.f32.mrb[0].mxu0
        %v3524 = vadd.f32 %v3423, %v3523
        %v3525 = vpop.f32.mrb[0].mxu0
        %v3526 = vadd.f32 %v3425, %v3525
        %v3527 = vpop.f32.mrb[0].mxu0
        %v3528 = vadd.f32 %v3427, %v3527
        %v3529 = vpop.f32.mrb[0].mxu0
        %v3530 = vadd.f32 %v3429, %v3529
        %3531 = vmatprep.mubr.bf16.mxu0 %v427
        %3532 = vmatmul.mubr.bf16.gmra.mrb[0].mxu0 %v426
        %v3533 = vpop.f32.mrb[0].mxu0
        %v3534 = vadd.f32 %v3433, %v3533
        %v3535 = vpop.f32.mrb[0].mxu0
        %v3536 = vadd.f32 %v3435, %v3535
        %v3537 = vpop.f32.mrb[0].mxu0
        %v3538 = vadd.f32 %v3437, %v3537
        %v3539 = vpop.f32.mrb[0].mxu0
        %v3540 = vadd.f32 %v3439, %v3539
        %3541 = vmatprep.mubr.bf16.mxu0 %v434
        %3542 = vmatmul.mubr.bf16.gmra.mrb[0].mxu0 %v433
        %v3543 = vpop.f32.mrb[0].mxu0
        %v3544 = vadd.f32 %v3443, %v3543
        %v3545 = vpop.f32.mrb[0].mxu0
        %v3546 = vadd.f32 %v3445, %v3545
        %v3547 = vpop.f32.mrb[0].mxu0
        %v3548 = vadd.f32 %v3447, %v3547
        %v3549 = vpop.f32.mrb[0].mxu0
        %v3550 = vadd.f32 %v3449, %v3549
        %3551 = vmatprep.mubr.bf16.mxu0 %v441
        %3552 = vmatmul.mubr.bf16.gmra.mrb[0].mxu0 %v440
        %v3553 = vpop.f32.mrb[0].mxu0
        %v3554 = vadd.f32 %v3453, %v3553
        %v3555 = vpop.f32.mrb[0].mxu0
        %v3556 = vadd.f32 %v3455, %v3555
        %v3557 = vpop.f32.mrb[0].mxu0
        %v3558 = vadd.f32 %v3457, %v3557
        %v3559 = vpop.f32.mrb[0].mxu0
        %v3560 = vadd.f32 %v3459, %v3559
        %3561 = vmatprep.mubr.bf16.mxu0 %v448
        %3562 = vmatmul.mubr.bf16.gmra.mrb[0].mxu0 %v447
        %v3563 = vpop.f32.mrb[0].mxu0
        %v3564 = vadd.f32 %v3463, %v3563
        %v3565 = vpop.f32.mrb[0].mxu0
        %v3566 = vadd.f32 %v3465, %v3565
        %v3567 = vpop.f32.mrb[0].mxu0
        %v3568 = vadd.f32 %v3467, %v3567
        %v3569 = vpop.f32.mrb[0].mxu0
        %v3570 = vadd.f32 %v3469, %v3569
        %3571 = vmatprep.mubr.bf16.mxu0 %v455
        %3572 = vmatmul.mubr.bf16.gmra.mrb[0].mxu0 %v454
        %v3573 = vpop.f32.mrb[0].mxu0
        %v3574 = vadd.f32 %v3473, %v3573
        %v3575 = vpop.f32.mrb[0].mxu0
        %v3576 = vadd.f32 %v3475, %v3575
        %v3577 = vpop.f32.mrb[0].mxu0
        %v3578 = vpop.f32.mrb[0].mxu0
        %3579 = vdwg.mxu0
        %3580 = vmatprep.subr.bf16.mxu0 %v2454
        %3581 = vmatpush1.bf16.msra.mxu0 %v2453
        %3582 = vmatprep.subr.bf16.mxu0 0
        %3583 = vmatpush1.bf16.msra.mxu0 0
        %3584 = vmatprep.subr.bf16.mxu0 0
        %3585 = vmatpush1.bf16.msra.mxu0 0
        %3586 = vmatprep.subr.bf16.mxu0 0
        %3587 = vmatpush1.bf16.msra.mxu0 0
        %3588 = vmatprep.subr.bf16.mxu0 0
        %3589 = vmatpush1.bf16.msra.mxu0 0
        %3590 = vmatprep.subr.bf16.mxu0 0
        %3591 = vmatpush1.bf16.msra.mxu0 0
        %3592 = vmatprep.subr.bf16.mxu0 0
        %3593 = vmatpush1.bf16.msra.mxu0 0
        %3594 = vmatprep.subr.bf16.mxu0 0
        %3595 = vmatpush1.bf16.msra.mxu0 0
        %3596 = vmatprep.subr.bf16.mxu0 0
        %3597 = vmatpush1.bf16.msra.mxu0 0
        %3598 = vmatprep.subr.bf16.mxu0 0
        %3599 = vmatpush1.bf16.msra.mxu0 0
        %3600 = vmatprep.subr.bf16.mxu0 0
        %3601 = vmatpush1.bf16.msra.mxu0 0
        %3602 = vmatprep.subr.bf16.mxu0 0
        %3603 = vmatpush1.bf16.msra.mxu0 0
        %3604 = vmatprep.subr.bf16.mxu0 0
        %3605 = vmatpush1.bf16.msra.mxu0 0
        %3606 = vmatprep.subr.bf16.mxu0 0
        %3607 = vmatpush1.bf16.msra.mxu0 0
        %3608 = vmatprep.subr.bf16.mxu0 0
        %3609 = vmatpush1.bf16.msra.mxu0 0
        %3610 = vmatprep.subr.bf16.mxu0 0
        %3611 = vmatpush1.bf16.msra.mxu0 0
        %3612 = vmatprep.mubr.bf16.mxu0 0
        %3613 = vmatmul.mubr.bf16.gmra.mrb[0].mxu0 %v2853
        %v3614 = vpop.f32.mrb[0].mxu0
        %v3615 = vadd.f32 %v3514, %v3614
        %v3616 = vpop.f32.mrb[0].mxu0
        %v3617 = vadd.f32 %v3516, %v3616
        %v3618 = vpop.f32.mrb[0].mxu0
        %v3619 = vadd.f32 %v3518, %v3618
        %v3620 = vpop.f32.mrb[0].mxu0
        %v3621 = vadd.f32 %v3520, %v3620
        %3622 = vmatprep.mubr.bf16.mxu0 0
        %3623 = vmatmul.mubr.bf16.gmra.mrb[0].mxu0 %v2856
        %v3624 = vpop.f32.mrb[0].mxu0
        %v3625 = vadd.f32 %v3524, %v3624
        %v3626 = vpop.f32.mrb[0].mxu0
        %v3627 = vadd.f32 %v3526, %v3626
        %v3628 = vpop.f32.mrb[0].mxu0
        %v3629 = vadd.f32 %v3528, %v3628
        %v3630 = vpop.f32.mrb[0].mxu0
        %v3631 = vadd.f32 %v3530, %v3630
        %3632 = vmatprep.mubr.bf16.mxu0 0
        %3633 = vmatmul.mubr.bf16.gmra.mrb[0].mxu0 %v2859
        %v3634 = vpop.f32.mrb[0].mxu0
        %v3635 = vadd.f32 %v3534, %v3634
        %v3636 = vpop.f32.mrb[0].mxu0
        %v3637 = vadd.f32 %v3536, %v3636
        %v3638 = vpop.f32.mrb[0].mxu0
        %v3639 = vadd.f32 %v3538, %v3638
        %v3640 = vpop.f32.mrb[0].mxu0
        %v3641 = vadd.f32 %v3540, %v3640
        %3642 = vmatprep.mubr.bf16.mxu0 0
        %3643 = vmatmul.mubr.bf16.gmra.mrb[0].mxu0 %v2862
        %v3644 = vpop.f32.mrb[0].mxu0
        %v3645 = vadd.f32 %v3544, %v3644
        %v3646 = vpop.f32.mrb[0].mxu0
        %v3647 = vadd.f32 %v3546, %v3646
        %v3648 = vpop.f32.mrb[0].mxu0
        %v3649 = vadd.f32 %v3548, %v3648
        %v3650 = vpop.f32.mrb[0].mxu0
        %v3651 = vadd.f32 %v3550, %v3650
        %3652 = vmatprep.mubr.bf16.mxu0 0
        %3653 = vmatmul.mubr.bf16.gmra.mrb[0].mxu0 %v2865
        %v3654 = vpop.f32.mrb[0].mxu0
        %v3655 = vadd.f32 %v3554, %v3654
        %v3656 = vpop.f32.mrb[0].mxu0
        %v3657 = vadd.f32 %v3556, %v3656
        %v3658 = vpop.f32.mrb[0].mxu0
        %v3659 = vadd.f32 %v3558, %v3658
        %v3660 = vpop.f32.mrb[0].mxu0
        %v3661 = vadd.f32 %v3560, %v3660
        %3662 = vmatprep.mubr.bf16.mxu0 0
        %3663 = vmatmul.mubr.bf16.gmra.mrb[0].mxu0 %v2868
        %v3664 = vpop.f32.mrb[0].mxu0
        %v3665 = vadd.f32 %v3564, %v3664
        %v3666 = vpop.f32.mrb[0].mxu0
        %v3667 = vadd.f32 %v3566, %v3666
        %v3668 = vpop.f32.mrb[0].mxu0
        %v3669 = vadd.f32 %v3568, %v3668
        %v3670 = vpop.f32.mrb[0].mxu0
        %v3671 = vadd.f32 %v3570, %v3670
        %3672 = vmatprep.mubr.bf16.mxu0 0
        %3673 = vmatmul.mubr.bf16.gmra.mrb[0].mxu0 %v2871
        %v3674 = vpop.f32.mrb[0].mxu0
        %v3675 = vadd.f32 %v3574, %v3674
        %v3676 = vpop.f32.mrb[0].mxu0
        %v3677 = vadd.f32 %v3576, %v3676
        %v3678 = vpop.f32.mrb[0].mxu0
        %v3679 = vpop.f32.mrb[0].mxu0
        %3680 = vdwg.mxu0
        %3681 = vmatprep.subr.bf16.mxu0 %v2072
        %3682 = vmatpush1.bf16.msra.mxu0 %v2071
        %3683 = vmatprep.subr.bf16.mxu0 %v2080
        %3684 = vmatpush1.bf16.msra.mxu0 %v2079
        %3685 = vmatprep.subr.bf16.mxu0 %v2088
        %3686 = vmatpush1.bf16.msra.mxu0 %v2087
        %3687 = vmatprep.subr.bf16.mxu0 %v2096
        %3688 = vmatpush1.bf16.msra.mxu0 %v2095
        %3689 = vmatprep.subr.bf16.mxu0 %v2104
        %3690 = vmatpush1.bf16.msra.mxu0 %v2103
        %3691 = vmatprep.subr.bf16.mxu0 %v2112
        %3692 = vmatpush1.bf16.msra.mxu0 %v2111
        %3693 = vmatprep.subr.bf16.mxu0 %v2120
        %3694 = vmatpush1.bf16.msra.mxu0 %v2119
        %3695 = vmatprep.subr.bf16.mxu0 %v2128
        %3696 = vmatpush1.bf16.msra.mxu0 %v2127
        %3697 = vmatprep.subr.bf16.mxu0 %v2136
        %3698 = vmatpush1.bf16.msra.mxu0 %v2135
        %3699 = vmatprep.subr.bf16.mxu0 %v2144
        %3700 = vmatpush1.bf16.msra.mxu0 %v2143
        %3701 = vmatprep.subr.bf16.mxu0 %v2152
        %3702 = vmatpush1.bf16.msra.mxu0 %v2151
        %3703 = vmatprep.subr.bf16.mxu0 %v2160
        %3704 = vmatpush1.bf16.msra.mxu0 %v2159
        %3705 = vmatprep.subr.bf16.mxu0 %v2168
        %3706 = vmatpush1.bf16.msra.mxu0 %v2167
        %3707 = vmatprep.subr.bf16.mxu0 %v2176
        %3708 = vmatpush1.bf16.msra.mxu0 %v2175
        %3709 = vmatprep.subr.bf16.mxu0 %v2184
        %3710 = vmatpush1.bf16.msra.mxu0 %v2183
        %3711 = vmatprep.subr.bf16.mxu0 %v2192
        %3712 = vmatpush1.bf16.msra.mxu0 %v2191
        %3713 = vmatprep.mubr.bf16.mxu0 %v409
        %3714 = vmatmul.mubr.bf16.gmra.mrb[0].mxu0 %v408
        %v3715 = vpop.f32.mrb[0].mxu0
        %v3716 = vadd.f32 %v870, %v3715
        %v3717 = vpop.f32.mrb[0].mxu0
        %v3718 = vadd.f32 %v874, %v3717
        %v3719 = vpop.f32.mrb[0].mxu0
        %v3720 = vadd.f32 %v870, %v3719
        %v3721 = vpop.f32.mrb[0].mxu0
        %v3722 = vadd.f32 %v874, %v3721
        %3723 = vmatprep.mubr.bf16.mxu0 %v416
        %3724 = vmatmul.mubr.bf16.gmra.mrb[0].mxu0 %v415
        %v3725 = vpop.f32.mrb[0].mxu0
        %v3726 = vadd.f32 %v870, %v3725
        %v3727 = vpop.f32.mrb[0].mxu0
        %v3728 = vadd.f32 %v874, %v3727
        %v3729 = vpop.f32.mrb[0].mxu0
        %v3730 = vadd.f32 %v870, %v3729
        %v3731 = vpop.f32.mrb[0].mxu0
        %v3732 = vadd.f32 %v874, %v3731
        %3733 = vmatprep.mubr.bf16.mxu0 %v423
        %3734 = vmatmul.mubr.bf16.gmra.mrb[0].mxu0 %v422
        %v3735 = vpop.f32.mrb[0].mxu0
        %v3736 = vadd.f32 %v870, %v3735
        %v3737 = vpop.f32.mrb[0].mxu0
        %v3738 = vadd.f32 %v874, %v3737
        %v3739 = vpop.f32.mrb[0].mxu0
        %v3740 = vadd.f32 %v870, %v3739
        %v3741 = vpop.f32.mrb[0].mxu0
        %v3742 = vadd.f32 %v874, %v3741
        %3743 = vmatprep.mubr.bf16.mxu0 %v430
        %3744 = vmatmul.mubr.bf16.gmra.mrb[0].mxu0 %v429
        %v3745 = vpop.f32.mrb[0].mxu0
        %v3746 = vadd.f32 %v870, %v3745
        %v3747 = vpop.f32.mrb[0].mxu0
        %v3748 = vadd.f32 %v874, %v3747
        %v3749 = vpop.f32.mrb[0].mxu0
        %v3750 = vadd.f32 %v870, %v3749
        %v3751 = vpop.f32.mrb[0].mxu0
        %v3752 = vadd.f32 %v874, %v3751
        %3753 = vmatprep.mubr.bf16.mxu0 %v437
        %3754 = vmatmul.mubr.bf16.gmra.mrb[0].mxu0 %v436
        %v3755 = vpop.f32.mrb[0].mxu0
        %v3756 = vadd.f32 %v870, %v3755
        %v3757 = vpop.f32.mrb[0].mxu0
        %v3758 = vadd.f32 %v874, %v3757
        %v3759 = vpop.f32.mrb[0].mxu0
        %v3760 = vadd.f32 %v870, %v3759
        %v3761 = vpop.f32.mrb[0].mxu0
        %v3762 = vadd.f32 %v874, %v3761
        %3763 = vmatprep.mubr.bf16.mxu0 %v444
        %3764 = vmatmul.mubr.bf16.gmra.mrb[0].mxu0 %v443
        %v3765 = vpop.f32.mrb[0].mxu0
        %v3766 = vadd.f32 %v870, %v3765
        %v3767 = vpop.f32.mrb[0].mxu0
        %v3768 = vadd.f32 %v874, %v3767
        %v3769 = vpop.f32.mrb[0].mxu0
        %v3770 = vadd.f32 %v870, %v3769
        %v3771 = vpop.f32.mrb[0].mxu0
        %v3772 = vadd.f32 %v874, %v3771
        %3773 = vmatprep.mubr.bf16.mxu0 %v451
        %3774 = vmatmul.mubr.bf16.gmra.mrb[0].mxu0 %v450
        %v3775 = vpop.f32.mrb[0].mxu0
        %v3776 = vadd.f32 %v870, %v3775
        %v3777 = vpop.f32.mrb[0].mxu0
        %v3778 = vadd.f32 %v874, %v3777
        %v3779 = vpop.f32.mrb[0].mxu0
        %v3780 = vpop.f32.mrb[0].mxu0
        %3781 = vdwg.mxu0
        %3782 = vmatprep.subr.bf16.mxu0 %v2200
        %3783 = vmatpush1.bf16.msra.mxu0 %v2199
        %3784 = vmatprep.subr.bf16.mxu0 %v2208
        %3785 = vmatpush1.bf16.msra.mxu0 %v2207
        %3786 = vmatprep.subr.bf16.mxu0 %v2216
        %3787 = vmatpush1.bf16.msra.mxu0 %v2215
        %3788 = vmatprep.subr.bf16.mxu0 %v2224
        %3789 = vmatpush1.bf16.msra.mxu0 %v2223
        %3790 = vmatprep.subr.bf16.mxu0 %v2232
        %3791 = vmatpush1.bf16.msra.mxu0 %v2231
        %3792 = vmatprep.subr.bf16.mxu0 %v2240
        %3793 = vmatpush1.bf16.msra.mxu0 %v2239
        %3794 = vmatprep.subr.bf16.mxu0 %v2248
        %3795 = vmatpush1.bf16.msra.mxu0 %v2247
        %3796 = vmatprep.subr.bf16.mxu0 %v2256
        %3797 = vmatpush1.bf16.msra.mxu0 %v2255
        %3798 = vmatprep.subr.bf16.mxu0 %v2264
        %3799 = vmatpush1.bf16.msra.mxu0 %v2263
        %3800 = vmatprep.subr.bf16.mxu0 %v2272
        %3801 = vmatpush1.bf16.msra.mxu0 %v2271
        %3802 = vmatprep.subr.bf16.mxu0 %v2280
        %3803 = vmatpush1.bf16.msra.mxu0 %v2279
        %3804 = vmatprep.subr.bf16.mxu0 %v2288
        %3805 = vmatpush1.bf16.msra.mxu0 %v2287
        %3806 = vmatprep.subr.bf16.mxu0 %v2296
        %3807 = vmatpush1.bf16.msra.mxu0 %v2295
        %3808 = vmatprep.subr.bf16.mxu0 %v2304
        %3809 = vmatpush1.bf16.msra.mxu0 %v2303
        %3810 = vmatprep.subr.bf16.mxu0 %v2312
        %3811 = vmatpush1.bf16.msra.mxu0 %v2311
        %3812 = vmatprep.subr.bf16.mxu0 %v2320
        %3813 = vmatpush1.bf16.msra.mxu0 %v2319
        %3814 = vmatprep.mubr.bf16.mxu0 %v411
        %3815 = vmatmul.mubr.bf16.gmra.mrb[0].mxu0 %v410
        %v3816 = vpop.f32.mrb[0].mxu0
        %v3817 = vadd.f32 %v3716, %v3816
        %v3818 = vpop.f32.mrb[0].mxu0
        %v3819 = vadd.f32 %v3718, %v3818
        %v3820 = vpop.f32.mrb[0].mxu0
        %v3821 = vadd.f32 %v3720, %v3820
        %v3822 = vpop.f32.mrb[0].mxu0
        %v3823 = vadd.f32 %v3722, %v3822
        %3824 = vmatprep.mubr.bf16.mxu0 %v418
        %3825 = vmatmul.mubr.bf16.gmra.mrb[0].mxu0 %v417
        %v3826 = vpop.f32.mrb[0].mxu0
        %v3827 = vadd.f32 %v3726, %v3826
        %v3828 = vpop.f32.mrb[0].mxu0
        %v3829 = vadd.f32 %v3728, %v3828
        %v3830 = vpop.f32.mrb[0].mxu0
        %v3831 = vadd.f32 %v3730, %v3830
        %v3832 = vpop.f32.mrb[0].mxu0
        %v3833 = vadd.f32 %v3732, %v3832
        %3834 = vmatprep.mubr.bf16.mxu0 %v425
        %3835 = vmatmul.mubr.bf16.gmra.mrb[0].mxu0 %v424
        %v3836 = vpop.f32.mrb[0].mxu0
        %v3837 = vadd.f32 %v3736, %v3836
        %v3838 = vpop.f32.mrb[0].mxu0
        %v3839 = vadd.f32 %v3738, %v3838
        %v3840 = vpop.f32.mrb[0].mxu0
        %v3841 = vadd.f32 %v3740, %v3840
        %v3842 = vpop.f32.mrb[0].mxu0
        %v3843 = vadd.f32 %v3742, %v3842
        %3844 = vmatprep.mubr.bf16.mxu0 %v432
        %3845 = vmatmul.mubr.bf16.gmra.mrb[0].mxu0 %v431
        %v3846 = vpop.f32.mrb[0].mxu0
        %v3847 = vadd.f32 %v3746, %v3846
        %v3848 = vpop.f32.mrb[0].mxu0
        %v3849 = vadd.f32 %v3748, %v3848
        %v3850 = vpop.f32.mrb[0].mxu0
        %v3851 = vadd.f32 %v3750, %v3850
        %v3852 = vpop.f32.mrb[0].mxu0
        %v3853 = vadd.f32 %v3752, %v3852
        %3854 = vmatprep.mubr.bf16.mxu0 %v439
        %3855 = vmatmul.mubr.bf16.gmra.mrb[0].mxu0 %v438
        %v3856 = vpop.f32.mrb[0].mxu0
        %v3857 = vadd.f32 %v3756, %v3856
        %v3858 = vpop.f32.mrb[0].mxu0
        %v3859 = vadd.f32 %v3758, %v3858
        %v3860 = vpop.f32.mrb[0].mxu0
        %v3861 = vadd.f32 %v3760, %v3860
        %v3862 = vpop.f32.mrb[0].mxu0
        %v3863 = vadd.f32 %v3762, %v3862
        %3864 = vmatprep.mubr.bf16.mxu0 %v446
        %3865 = vmatmul.mubr.bf16.gmra.mrb[0].mxu0 %v445
        %v3866 = vpop.f32.mrb[0].mxu0
        %v3867 = vadd.f32 %v3766, %v3866
        %v3868 = vpop.f32.mrb[0].mxu0
        %v3869 = vadd.f32 %v3768, %v3868
        %v3870 = vpop.f32.mrb[0].mxu0
        %v3871 = vadd.f32 %v3770, %v3870
        %v3872 = vpop.f32.mrb[0].mxu0
        %v3873 = vadd.f32 %v3772, %v3872
        %3874 = vmatprep.mubr.bf16.mxu0 %v453
        %3875 = vmatmul.mubr.bf16.gmra.mrb[0].mxu0 %v452
        %v3876 = vpop.f32.mrb[0].mxu0
        %v3877 = vadd.f32 %v3776, %v3876
        %v3878 = vpop.f32.mrb[0].mxu0
        %v3879 = vadd.f32 %v3778, %v3878
        %v3880 = vpop.f32.mrb[0].mxu0
        %v3881 = vpop.f32.mrb[0].mxu0
        %3882 = vdwg.mxu0
        %3883 = vmatprep.subr.bf16.mxu0 %v2328
        %3884 = vmatpush1.bf16.msra.mxu0 %v2327
        %3885 = vmatprep.subr.bf16.mxu0 %v2336
        %3886 = vmatpush1.bf16.msra.mxu0 %v2335
        %3887 = vmatprep.subr.bf16.mxu0 %v2344
        %3888 = vmatpush1.bf16.msra.mxu0 %v2343
        %3889 = vmatprep.subr.bf16.mxu0 %v2352
        %3890 = vmatpush1.bf16.msra.mxu0 %v2351
        %3891 = vmatprep.subr.bf16.mxu0 %v2360
        %3892 = vmatpush1.bf16.msra.mxu0 %v2359
        %3893 = vmatprep.subr.bf16.mxu0 %v2368
        %3894 = vmatpush1.bf16.msra.mxu0 %v2367
        %3895 = vmatprep.subr.bf16.mxu0 %v2376
        %3896 = vmatpush1.bf16.msra.mxu0 %v2375
        %3897 = vmatprep.subr.bf16.mxu0 %v2384
        %3898 = vmatpush1.bf16.msra.mxu0 %v2383
        %3899 = vmatprep.subr.bf16.mxu0 %v2392
        %3900 = vmatpush1.bf16.msra.mxu0 %v2391
        %3901 = vmatprep.subr.bf16.mxu0 %v2400
        %3902 = vmatpush1.bf16.msra.mxu0 %v2399
        %3903 = vmatprep.subr.bf16.mxu0 %v2408
        %3904 = vmatpush1.bf16.msra.mxu0 %v2407
        %3905 = vmatprep.subr.bf16.mxu0 %v2416
        %3906 = vmatpush1.bf16.msra.mxu0 %v2415
        %3907 = vmatprep.subr.bf16.mxu0 %v2424
        %3908 = vmatpush1.bf16.msra.mxu0 %v2423
        %3909 = vmatprep.subr.bf16.mxu0 %v2432
        %3910 = vmatpush1.bf16.msra.mxu0 %v2431
        %3911 = vmatprep.subr.bf16.mxu0 %v2440
        %3912 = vmatpush1.bf16.msra.mxu0 %v2439
        %3913 = vmatprep.subr.bf16.mxu0 %v2448
        %3914 = vmatpush1.bf16.msra.mxu0 %v2447
        %3915 = vmatprep.mubr.bf16.mxu0 %v413
        %3916 = vmatmul.mubr.bf16.gmra.mrb[0].mxu0 %v412
        %v3917 = vpop.f32.mrb[0].mxu0
        %v3918 = vadd.f32 %v3817, %v3917
        %v3919 = vpop.f32.mrb[0].mxu0
        %v3920 = vadd.f32 %v3819, %v3919
        %v3921 = vpop.f32.mrb[0].mxu0
        %v3922 = vadd.f32 %v3821, %v3921
        %v3923 = vpop.f32.mrb[0].mxu0
        %v3924 = vadd.f32 %v3823, %v3923
        %3925 = vmatprep.mubr.bf16.mxu0 %v420
        %3926 = vmatmul.mubr.bf16.gmra.mrb[0].mxu0 %v419
        %v3927 = vpop.f32.mrb[0].mxu0
        %v3928 = vadd.f32 %v3827, %v3927
        %v3929 = vpop.f32.mrb[0].mxu0
        %v3930 = vadd.f32 %v3829, %v3929
        %v3931 = vpop.f32.mrb[0].mxu0
        %v3932 = vadd.f32 %v3831, %v3931
        %v3933 = vpop.f32.mrb[0].mxu0
        %v3934 = vadd.f32 %v3833, %v3933
        %3935 = vmatprep.mubr.bf16.mxu0 %v427
        %3936 = vmatmul.mubr.bf16.gmra.mrb[0].mxu0 %v426
        %v3937 = vpop.f32.mrb[0].mxu0
        %v3938 = vadd.f32 %v3837, %v3937
        %v3939 = vpop.f32.mrb[0].mxu0
        %v3940 = vadd.f32 %v3839, %v3939
        %v3941 = vpop.f32.mrb[0].mxu0
        %v3942 = vadd.f32 %v3841, %v3941
        %v3943 = vpop.f32.mrb[0].mxu0
        %v3944 = vadd.f32 %v3843, %v3943
        %3945 = vmatprep.mubr.bf16.mxu0 %v434
        %3946 = vmatmul.mubr.bf16.gmra.mrb[0].mxu0 %v433
        %v3947 = vpop.f32.mrb[0].mxu0
        %v3948 = vadd.f32 %v3847, %v3947
        %v3949 = vpop.f32.mrb[0].mxu0
        %v3950 = vadd.f32 %v3849, %v3949
        %v3951 = vpop.f32.mrb[0].mxu0
        %v3952 = vadd.f32 %v3851, %v3951
        %v3953 = vpop.f32.mrb[0].mxu0
        %v3954 = vadd.f32 %v3853, %v3953
        %3955 = vmatprep.mubr.bf16.mxu0 %v441
        %3956 = vmatmul.mubr.bf16.gmra.mrb[0].mxu0 %v440
        %v3957 = vpop.f32.mrb[0].mxu0
        %v3958 = vadd.f32 %v3857, %v3957
        %v3959 = vpop.f32.mrb[0].mxu0
        %v3960 = vadd.f32 %v3859, %v3959
        %v3961 = vpop.f32.mrb[0].mxu0
        %v3962 = vadd.f32 %v3861, %v3961
        %v3963 = vpop.f32.mrb[0].mxu0
        %v3964 = vadd.f32 %v3863, %v3963
        %3965 = vmatprep.mubr.bf16.mxu0 %v448
        %3966 = vmatmul.mubr.bf16.gmra.mrb[0].mxu0 %v447
        %v3967 = vpop.f32.mrb[0].mxu0
        %v3968 = vadd.f32 %v3867, %v3967
        %v3969 = vpop.f32.mrb[0].mxu0
        %v3970 = vadd.f32 %v3869, %v3969
        %v3971 = vpop.f32.mrb[0].mxu0
        %v3972 = vadd.f32 %v3871, %v3971
        %v3973 = vpop.f32.mrb[0].mxu0
        %v3974 = vadd.f32 %v3873, %v3973
        %3975 = vmatprep.mubr.bf16.mxu0 %v455
        %3976 = vmatmul.mubr.bf16.gmra.mrb[0].mxu0 %v454
        %v3977 = vpop.f32.mrb[0].mxu0
        %v3978 = vadd.f32 %v3877, %v3977
        %v3979 = vpop.f32.mrb[0].mxu0
        %v3980 = vadd.f32 %v3879, %v3979
        %v3981 = vpop.f32.mrb[0].mxu0
        %v3982 = vpop.f32.mrb[0].mxu0
        %3983 = vdwg.mxu0
        %3984 = vmatprep.subr.bf16.mxu0 %v2456
        %3985 = vmatpush1.bf16.msra.mxu0 %v2455
        %3986 = vmatprep.subr.bf16.mxu0 0
        %3987 = vmatpush1.bf16.msra.mxu0 0
        %3988 = vmatprep.subr.bf16.mxu0 0
        %3989 = vmatpush1.bf16.msra.mxu0 0
        %3990 = vmatprep.subr.bf16.mxu0 0
        %3991 = vmatpush1.bf16.msra.mxu0 0
        %3992 = vmatprep.subr.bf16.mxu0 0
        %3993 = vmatpush1.bf16.msra.mxu0 0
        %3994 = vmatprep.subr.bf16.mxu0 0
        %3995 = vmatpush1.bf16.msra.mxu0 0
        %3996 = vmatprep.subr.bf16.mxu0 0
        %3997 = vmatpush1.bf16.msra.mxu0 0
        %3998 = vmatprep.subr.bf16.mxu0 0
        %3999 = vmatpush1.bf16.msra.mxu0 0
        %4000 = vmatprep.subr.bf16.mxu0 0
        %4001 = vmatpush1.bf16.msra.mxu0 0
        %4002 = vmatprep.subr.bf16.mxu0 0
        %4003 = vmatpush1.bf16.msra.mxu0 0
        %4004 = vmatprep.subr.bf16.mxu0 0
        %4005 = vmatpush1.bf16.msra.mxu0 0
        %4006 = vmatprep.subr.bf16.mxu0 0
        %4007 = vmatpush1.bf16.msra.mxu0 0
        %4008 = vmatprep.subr.bf16.mxu0 0
        %4009 = vmatpush1.bf16.msra.mxu0 0
        %4010 = vmatprep.subr.bf16.mxu0 0
        %4011 = vmatpush1.bf16.msra.mxu0 0
        %4012 = vmatprep.subr.bf16.mxu0 0
        %4013 = vmatpush1.bf16.msra.mxu0 0
        %4014 = vmatprep.subr.bf16.mxu0 0
        %4015 = vmatpush1.bf16.msra.mxu0 0
        %4016 = vmatprep.mubr.bf16.mxu0 0
        %4017 = vmatmul.mubr.bf16.gmra.mrb[0].mxu0 %v2853
        %v4018 = vpop.f32.mrb[0].mxu0
        %v4019 = vadd.f32 %v3918, %v4018
        %v4020 = vpop.f32.mrb[0].mxu0
        %v4021 = vadd.f32 %v3920, %v4020
        %v4022 = vpop.f32.mrb[0].mxu0
        %v4023 = vadd.f32 %v3922, %v4022
        %v4024 = vpop.f32.mrb[0].mxu0
        %v4025 = vadd.f32 %v3924, %v4024
        %4026 = vmatprep.mubr.bf16.mxu0 0
        %4027 = vmatmul.mubr.bf16.gmra.mrb[0].mxu0 %v2856
        %v4028 = vpop.f32.mrb[0].mxu0
        %v4029 = vadd.f32 %v3928, %v4028
        %v4030 = vpop.f32.mrb[0].mxu0
        %v4031 = vadd.f32 %v3930, %v4030
        %v4032 = vpop.f32.mrb[0].mxu0
        %v4033 = vadd.f32 %v3932, %v4032
        %v4034 = vpop.f32.mrb[0].mxu0
        %v4035 = vadd.f32 %v3934, %v4034
        %4036 = vmatprep.mubr.bf16.mxu0 0
        %4037 = vmatmul.mubr.bf16.gmra.mrb[0].mxu0 %v2859
        %v4038 = vpop.f32.mrb[0].mxu0
        %v4039 = vadd.f32 %v3938, %v4038
        %v4040 = vpop.f32.mrb[0].mxu0
        %v4041 = vadd.f32 %v3940, %v4040
        %v4042 = vpop.f32.mrb[0].mxu0
        %v4043 = vadd.f32 %v3942, %v4042
        %v4044 = vpop.f32.mrb[0].mxu0
        %v4045 = vadd.f32 %v3944, %v4044
        %4046 = vmatprep.mubr.bf16.mxu0 0
        %4047 = vmatmul.mubr.bf16.gmra.mrb[0].mxu0 %v2862
        %v4048 = vpop.f32.mrb[0].mxu0
        %v4049 = vadd.f32 %v3948, %v4048
        %v4050 = vpop.f32.mrb[0].mxu0
        %v4051 = vadd.f32 %v3950, %v4050
        %v4052 = vpop.f32.mrb[0].mxu0
        %v4053 = vadd.f32 %v3952, %v4052
        %v4054 = vpop.f32.mrb[0].mxu0
        %v4055 = vadd.f32 %v3954, %v4054
        %4056 = vmatprep.mubr.bf16.mxu0 0
        %4057 = vmatmul.mubr.bf16.gmra.mrb[0].mxu0 %v2865
        %v4058 = vpop.f32.mrb[0].mxu0
        %v4059 = vadd.f32 %v3958, %v4058
        %v4060 = vpop.f32.mrb[0].mxu0
        %v4061 = vadd.f32 %v3960, %v4060
        %v4062 = vpop.f32.mrb[0].mxu0
        %v4063 = vadd.f32 %v3962, %v4062
        %v4064 = vpop.f32.mrb[0].mxu0
        %v4065 = vadd.f32 %v3964, %v4064
        %4066 = vmatprep.mubr.bf16.mxu0 0
        %4067 = vmatmul.mubr.bf16.gmra.mrb[0].mxu0 %v2868
        %v4068 = vpop.f32.mrb[0].mxu0
        %v4069 = vadd.f32 %v3968, %v4068
        %v4070 = vpop.f32.mrb[0].mxu0
        %v4071 = vadd.f32 %v3970, %v4070
        %v4072 = vpop.f32.mrb[0].mxu0
        %v4073 = vadd.f32 %v3972, %v4072
        %v4074 = vpop.f32.mrb[0].mxu0
        %v4075 = vadd.f32 %v3974, %v4074
        %4076 = vmatprep.mubr.bf16.mxu0 0
        %4077 = vmatmul.mubr.bf16.gmra.mrb[0].mxu0 %v2871
        %v4078 = vpop.f32.mrb[0].mxu0
        %v4079 = vadd.f32 %v3978, %v4078
        %v4080 = vpop.f32.mrb[0].mxu0
        %v4081 = vadd.f32 %v3980, %v4080
        %v4082 = vpop.f32.mrb[0].mxu0
        %v4083 = vpop.f32.mrb[0].mxu0
        %4084 = vdwg.mxu0
        %4085 = vmatprep.subr.bf16.mxu0 %v2074
        %4086 = vmatpush1.bf16.msra.mxu0 %v2073
        %4087 = vmatprep.subr.bf16.mxu0 %v2082
        %4088 = vmatpush1.bf16.msra.mxu0 %v2081
        %4089 = vmatprep.subr.bf16.mxu0 %v2090
        %4090 = vmatpush1.bf16.msra.mxu0 %v2089
        %4091 = vmatprep.subr.bf16.mxu0 %v2098
        %4092 = vmatpush1.bf16.msra.mxu0 %v2097
        %4093 = vmatprep.subr.bf16.mxu0 %v2106
        %4094 = vmatpush1.bf16.msra.mxu0 %v2105
        %4095 = vmatprep.subr.bf16.mxu0 %v2114
        %4096 = vmatpush1.bf16.msra.mxu0 %v2113
        %4097 = vmatprep.subr.bf16.mxu0 %v2122
        %4098 = vmatpush1.bf16.msra.mxu0 %v2121
        %4099 = vmatprep.subr.bf16.mxu0 %v2130
        %4100 = vmatpush1.bf16.msra.mxu0 %v2129
        %4101 = vmatprep.subr.bf16.mxu0 %v2138
        %4102 = vmatpush1.bf16.msra.mxu0 %v2137
        %4103 = vmatprep.subr.bf16.mxu0 %v2146
        %4104 = vmatpush1.bf16.msra.mxu0 %v2145
        %4105 = vmatprep.subr.bf16.mxu0 %v2154
        %4106 = vmatpush1.bf16.msra.mxu0 %v2153
        %4107 = vmatprep.subr.bf16.mxu0 %v2162
        %4108 = vmatpush1.bf16.msra.mxu0 %v2161
        %4109 = vmatprep.subr.bf16.mxu0 %v2170
        %4110 = vmatpush1.bf16.msra.mxu0 %v2169
        %4111 = vmatprep.subr.bf16.mxu0 %v2178
        %4112 = vmatpush1.bf16.msra.mxu0 %v2177
        %4113 = vmatprep.subr.bf16.mxu0 %v2186
        %4114 = vmatpush1.bf16.msra.mxu0 %v2185
        %4115 = vmatprep.subr.bf16.mxu0 %v2194
        %4116 = vmatpush1.bf16.msra.mxu0 %v2193
        %4117 = vmatprep.mubr.bf16.mxu0 %v409
        %4118 = vmatmul.mubr.bf16.gmra.mrb[0].mxu0 %v408
        %v4119 = vpop.f32.mrb[0].mxu0
        %v4120 = vadd.f32 %v878, %v4119
        %v4121 = vpop.f32.mrb[0].mxu0
        %v4122 = vadd.f32 %v882, %v4121
        %v4123 = vpop.f32.mrb[0].mxu0
        %v4124 = vadd.f32 %v878, %v4123
        %v4125 = vpop.f32.mrb[0].mxu0
        %v4126 = vadd.f32 %v882, %v4125
        %4127 = vmatprep.mubr.bf16.mxu0 %v416
        %4128 = vmatmul.mubr.bf16.gmra.mrb[0].mxu0 %v415
        %v4129 = vpop.f32.mrb[0].mxu0
        %v4130 = vadd.f32 %v878, %v4129
        %v4131 = vpop.f32.mrb[0].mxu0
        %v4132 = vadd.f32 %v882, %v4131
        %v4133 = vpop.f32.mrb[0].mxu0
        %v4134 = vadd.f32 %v878, %v4133
        %v4135 = vpop.f32.mrb[0].mxu0
        %v4136 = vadd.f32 %v882, %v4135
        %4137 = vmatprep.mubr.bf16.mxu0 %v423
        %4138 = vmatmul.mubr.bf16.gmra.mrb[0].mxu0 %v422
        %v4139 = vpop.f32.mrb[0].mxu0
        %v4140 = vadd.f32 %v878, %v4139
        %v4141 = vpop.f32.mrb[0].mxu0
        %v4142 = vadd.f32 %v882, %v4141
        %v4143 = vpop.f32.mrb[0].mxu0
        %v4144 = vadd.f32 %v878, %v4143
        %v4145 = vpop.f32.mrb[0].mxu0
        %v4146 = vadd.f32 %v882, %v4145
        %4147 = vmatprep.mubr.bf16.mxu0 %v430
        %4148 = vmatmul.mubr.bf16.gmra.mrb[0].mxu0 %v429
        %v4149 = vpop.f32.mrb[0].mxu0
        %v4150 = vadd.f32 %v878, %v4149
        %v4151 = vpop.f32.mrb[0].mxu0
        %v4152 = vadd.f32 %v882, %v4151
        %v4153 = vpop.f32.mrb[0].mxu0
        %v4154 = vadd.f32 %v878, %v4153
        %v4155 = vpop.f32.mrb[0].mxu0
        %v4156 = vadd.f32 %v882, %v4155
        %4157 = vmatprep.mubr.bf16.mxu0 %v437
        %4158 = vmatmul.mubr.bf16.gmra.mrb[0].mxu0 %v436
        %v4159 = vpop.f32.mrb[0].mxu0
        %v4160 = vadd.f32 %v878, %v4159
        %v4161 = vpop.f32.mrb[0].mxu0
        %v4162 = vadd.f32 %v882, %v4161
        %v4163 = vpop.f32.mrb[0].mxu0
        %v4164 = vadd.f32 %v878, %v4163
        %v4165 = vpop.f32.mrb[0].mxu0
        %v4166 = vadd.f32 %v882, %v4165
        %4167 = vmatprep.mubr.bf16.mxu0 %v444
        %4168 = vmatmul.mubr.bf16.gmra.mrb[0].mxu0 %v443
        %v4169 = vpop.f32.mrb[0].mxu0
        %v4170 = vadd.f32 %v878, %v4169
        %v4171 = vpop.f32.mrb[0].mxu0
        %v4172 = vadd.f32 %v882, %v4171
        %v4173 = vpop.f32.mrb[0].mxu0
        %v4174 = vadd.f32 %v878, %v4173
        %v4175 = vpop.f32.mrb[0].mxu0
        %v4176 = vadd.f32 %v882, %v4175
        %4177 = vmatprep.mubr.bf16.mxu0 %v451
        %4178 = vmatmul.mubr.bf16.gmra.mrb[0].mxu0 %v450
        %v4179 = vpop.f32.mrb[0].mxu0
        %v4180 = vadd.f32 %v878, %v4179
        %v4181 = vpop.f32.mrb[0].mxu0
        %v4182 = vadd.f32 %v882, %v4181
        %v4183 = vpop.f32.mrb[0].mxu0
        %v4184 = vpop.f32.mrb[0].mxu0
        %4185 = vdwg.mxu0
        %4186 = vmatprep.subr.bf16.mxu0 %v2202
        %4187 = vmatpush1.bf16.msra.mxu0 %v2201
        %4188 = vmatprep.subr.bf16.mxu0 %v2210
        %4189 = vmatpush1.bf16.msra.mxu0 %v2209
        %4190 = vmatprep.subr.bf16.mxu0 %v2218
        %4191 = vmatpush1.bf16.msra.mxu0 %v2217
        %4192 = vmatprep.subr.bf16.mxu0 %v2226
        %4193 = vmatpush1.bf16.msra.mxu0 %v2225
        %4194 = vmatprep.subr.bf16.mxu0 %v2234
        %4195 = vmatpush1.bf16.msra.mxu0 %v2233
        %4196 = vmatprep.subr.bf16.mxu0 %v2242
        %4197 = vmatpush1.bf16.msra.mxu0 %v2241
        %4198 = vmatprep.subr.bf16.mxu0 %v2250
        %4199 = vmatpush1.bf16.msra.mxu0 %v2249
        %4200 = vmatprep.subr.bf16.mxu0 %v2258
        %4201 = vmatpush1.bf16.msra.mxu0 %v2257
        %4202 = vmatprep.subr.bf16.mxu0 %v2266
        %4203 = vmatpush1.bf16.msra.mxu0 %v2265
        %4204 = vmatprep.subr.bf16.mxu0 %v2274
        %4205 = vmatpush1.bf16.msra.mxu0 %v2273
        %4206 = vmatprep.subr.bf16.mxu0 %v2282
        %4207 = vmatpush1.bf16.msra.mxu0 %v2281
        %4208 = vmatprep.subr.bf16.mxu0 %v2290
        %4209 = vmatpush1.bf16.msra.mxu0 %v2289
        %4210 = vmatprep.subr.bf16.mxu0 %v2298
        %4211 = vmatpush1.bf16.msra.mxu0 %v2297
        %4212 = vmatprep.subr.bf16.mxu0 %v2306
        %4213 = vmatpush1.bf16.msra.mxu0 %v2305
        %4214 = vmatprep.subr.bf16.mxu0 %v2314
        %4215 = vmatpush1.bf16.msra.mxu0 %v2313
        %4216 = vmatprep.subr.bf16.mxu0 %v2322
        %4217 = vmatpush1.bf16.msra.mxu0 %v2321
        %4218 = vmatprep.mubr.bf16.mxu0 %v411
        %4219 = vmatmul.mubr.bf16.gmra.mrb[0].mxu0 %v410
        %v4220 = vpop.f32.mrb[0].mxu0
        %v4221 = vadd.f32 %v4120, %v4220
        %v4222 = vpop.f32.mrb[0].mxu0
        %v4223 = vadd.f32 %v4122, %v4222
        %v4224 = vpop.f32.mrb[0].mxu0
        %v4225 = vadd.f32 %v4124, %v4224
        %v4226 = vpop.f32.mrb[0].mxu0
        %v4227 = vadd.f32 %v4126, %v4226
        %4228 = vmatprep.mubr.bf16.mxu0 %v418
        %4229 = vmatmul.mubr.bf16.gmra.mrb[0].mxu0 %v417
        %v4230 = vpop.f32.mrb[0].mxu0
        %v4231 = vadd.f32 %v4130, %v4230
        %v4232 = vpop.f32.mrb[0].mxu0
        %v4233 = vadd.f32 %v4132, %v4232
        %v4234 = vpop.f32.mrb[0].mxu0
        %v4235 = vadd.f32 %v4134, %v4234
        %v4236 = vpop.f32.mrb[0].mxu0
        %v4237 = vadd.f32 %v4136, %v4236
        %4238 = vmatprep.mubr.bf16.mxu0 %v425
        %4239 = vmatmul.mubr.bf16.gmra.mrb[0].mxu0 %v424
        %v4240 = vpop.f32.mrb[0].mxu0
        %v4241 = vadd.f32 %v4140, %v4240
        %v4242 = vpop.f32.mrb[0].mxu0
        %v4243 = vadd.f32 %v4142, %v4242
        %v4244 = vpop.f32.mrb[0].mxu0
        %v4245 = vadd.f32 %v4144, %v4244
        %v4246 = vpop.f32.mrb[0].mxu0
        %v4247 = vadd.f32 %v4146, %v4246
        %4248 = vmatprep.mubr.bf16.mxu0 %v432
        %4249 = vmatmul.mubr.bf16.gmra.mrb[0].mxu0 %v431
        %v4250 = vpop.f32.mrb[0].mxu0
        %v4251 = vadd.f32 %v4150, %v4250
        %v4252 = vpop.f32.mrb[0].mxu0
        %v4253 = vadd.f32 %v4152, %v4252
        %v4254 = vpop.f32.mrb[0].mxu0
        %v4255 = vadd.f32 %v4154, %v4254
        %v4256 = vpop.f32.mrb[0].mxu0
        %v4257 = vadd.f32 %v4156, %v4256
        %4258 = vmatprep.mubr.bf16.mxu0 %v439
        %4259 = vmatmul.mubr.bf16.gmra.mrb[0].mxu0 %v438
        %v4260 = vpop.f32.mrb[0].mxu0
        %v4261 = vadd.f32 %v4160, %v4260
        %v4262 = vpop.f32.mrb[0].mxu0
        %v4263 = vadd.f32 %v4162, %v4262
        %v4264 = vpop.f32.mrb[0].mxu0
        %v4265 = vadd.f32 %v4164, %v4264
        %v4266 = vpop.f32.mrb[0].mxu0
        %v4267 = vadd.f32 %v4166, %v4266
        %4268 = vmatprep.mubr.bf16.mxu0 %v446
        %4269 = vmatmul.mubr.bf16.gmra.mrb[0].mxu0 %v445
        %v4270 = vpop.f32.mrb[0].mxu0
        %v4271 = vadd.f32 %v4170, %v4270
        %v4272 = vpop.f32.mrb[0].mxu0
        %v4273 = vadd.f32 %v4172, %v4272
        %v4274 = vpop.f32.mrb[0].mxu0
        %v4275 = vadd.f32 %v4174, %v4274
        %v4276 = vpop.f32.mrb[0].mxu0
        %v4277 = vadd.f32 %v4176, %v4276
        %4278 = vmatprep.mubr.bf16.mxu0 %v453
        %4279 = vmatmul.mubr.bf16.gmra.mrb[0].mxu0 %v452
        %v4280 = vpop.f32.mrb[0].mxu0
        %v4281 = vadd.f32 %v4180, %v4280
        %v4282 = vpop.f32.mrb[0].mxu0
        %v4283 = vadd.f32 %v4182, %v4282
        %v4284 = vpop.f32.mrb[0].mxu0
        %v4285 = vpop.f32.mrb[0].mxu0
        %4286 = vdwg.mxu0
        %4287 = vmatprep.subr.bf16.mxu0 %v2330
        %4288 = vmatpush1.bf16.msra.mxu0 %v2329
        %4289 = vmatprep.subr.bf16.mxu0 %v2338
        %4290 = vmatpush1.bf16.msra.mxu0 %v2337
        %4291 = vmatprep.subr.bf16.mxu0 %v2346
        %4292 = vmatpush1.bf16.msra.mxu0 %v2345
        %4293 = vmatprep.subr.bf16.mxu0 %v2354
        %4294 = vmatpush1.bf16.msra.mxu0 %v2353
        %4295 = vmatprep.subr.bf16.mxu0 %v2362
        %4296 = vmatpush1.bf16.msra.mxu0 %v2361
        %4297 = vmatprep.subr.bf16.mxu0 %v2370
        %4298 = vmatpush1.bf16.msra.mxu0 %v2369
        %4299 = vmatprep.subr.bf16.mxu0 %v2378
        %4300 = vmatpush1.bf16.msra.mxu0 %v2377
        %4301 = vmatprep.subr.bf16.mxu0 %v2386
        %4302 = vmatpush1.bf16.msra.mxu0 %v2385
        %4303 = vmatprep.subr.bf16.mxu0 %v2394
        %4304 = vmatpush1.bf16.msra.mxu0 %v2393
        %4305 = vmatprep.subr.bf16.mxu0 %v2402
        %4306 = vmatpush1.bf16.msra.mxu0 %v2401
        %4307 = vmatprep.subr.bf16.mxu0 %v2410
        %4308 = vmatpush1.bf16.msra.mxu0 %v2409
        %4309 = vmatprep.subr.bf16.mxu0 %v2418
        %4310 = vmatpush1.bf16.msra.mxu0 %v2417
        %4311 = vmatprep.subr.bf16.mxu0 %v2426
        %4312 = vmatpush1.bf16.msra.mxu0 %v2425
        %4313 = vmatprep.subr.bf16.mxu0 %v2434
        %4314 = vmatpush1.bf16.msra.mxu0 %v2433
        %4315 = vmatprep.subr.bf16.mxu0 %v2442
        %4316 = vmatpush1.bf16.msra.mxu0 %v2441
        %4317 = vmatprep.subr.bf16.mxu0 %v2450
        %4318 = vmatpush1.bf16.msra.mxu0 %v2449
        %4319 = vmatprep.mubr.bf16.mxu0 %v413
        %4320 = vmatmul.mubr.bf16.gmra.mrb[0].mxu0 %v412
        %v4321 = vpop.f32.mrb[0].mxu0
        %v4322 = vadd.f32 %v4221, %v4321
        %v4323 = vpop.f32.mrb[0].mxu0
        %v4324 = vadd.f32 %v4223, %v4323
        %v4325 = vpop.f32.mrb[0].mxu0
        %v4326 = vadd.f32 %v4225, %v4325
        %v4327 = vpop.f32.mrb[0].mxu0
        %v4328 = vadd.f32 %v4227, %v4327
        %4329 = vmatprep.mubr.bf16.mxu0 %v420
        %4330 = vmatmul.mubr.bf16.gmra.mrb[0].mxu0 %v419
        %v4331 = vpop.f32.mrb[0].mxu0
        %v4332 = vadd.f32 %v4231, %v4331
        %v4333 = vpop.f32.mrb[0].mxu0
        %v4334 = vadd.f32 %v4233, %v4333
        %v4335 = vpop.f32.mrb[0].mxu0
        %v4336 = vadd.f32 %v4235, %v4335
        %v4337 = vpop.f32.mrb[0].mxu0
        %v4338 = vadd.f32 %v4237, %v4337
        %4339 = vmatprep.mubr.bf16.mxu0 %v427
        %4340 = vmatmul.mubr.bf16.gmra.mrb[0].mxu0 %v426
        %v4341 = vpop.f32.mrb[0].mxu0
        %v4342 = vadd.f32 %v4241, %v4341
        %v4343 = vpop.f32.mrb[0].mxu0
        %v4344 = vadd.f32 %v4243, %v4343
        %v4345 = vpop.f32.mrb[0].mxu0
        %v4346 = vadd.f32 %v4245, %v4345
        %v4347 = vpop.f32.mrb[0].mxu0
        %v4348 = vadd.f32 %v4247, %v4347
        %4349 = vmatprep.mubr.bf16.mxu0 %v434
        %4350 = vmatmul.mubr.bf16.gmra.mrb[0].mxu0 %v433
        %v4351 = vpop.f32.mrb[0].mxu0
        %v4352 = vadd.f32 %v4251, %v4351
        %v4353 = vpop.f32.mrb[0].mxu0
        %v4354 = vadd.f32 %v4253, %v4353
        %v4355 = vpop.f32.mrb[0].mxu0
        %v4356 = vadd.f32 %v4255, %v4355
        %v4357 = vpop.f32.mrb[0].mxu0
        %v4358 = vadd.f32 %v4257, %v4357
        %4359 = vmatprep.mubr.bf16.mxu0 %v441
        %4360 = vmatmul.mubr.bf16.gmra.mrb[0].mxu0 %v440
        %v4361 = vpop.f32.mrb[0].mxu0
        %v4362 = vadd.f32 %v4261, %v4361
        %v4363 = vpop.f32.mrb[0].mxu0
        %v4364 = vadd.f32 %v4263, %v4363
        %v4365 = vpop.f32.mrb[0].mxu0
        %v4366 = vadd.f32 %v4265, %v4365
        %v4367 = vpop.f32.mrb[0].mxu0
        %v4368 = vadd.f32 %v4267, %v4367
        %4369 = vmatprep.mubr.bf16.mxu0 %v448
        %4370 = vmatmul.mubr.bf16.gmra.mrb[0].mxu0 %v447
        %v4371 = vpop.f32.mrb[0].mxu0
        %v4372 = vadd.f32 %v4271, %v4371
        %v4373 = vpop.f32.mrb[0].mxu0
        %v4374 = vadd.f32 %v4273, %v4373
        %v4375 = vpop.f32.mrb[0].mxu0
        %v4376 = vadd.f32 %v4275, %v4375
        %v4377 = vpop.f32.mrb[0].mxu0
        %v4378 = vadd.f32 %v4277, %v4377
        %4379 = vmatprep.mubr.bf16.mxu0 %v455
        %4380 = vmatmul.mubr.bf16.gmra.mrb[0].mxu0 %v454
        %v4381 = vpop.f32.mrb[0].mxu0
        %v4382 = vadd.f32 %v4281, %v4381
        %v4383 = vpop.f32.mrb[0].mxu0
        %v4384 = vadd.f32 %v4283, %v4383
        %v4385 = vpop.f32.mrb[0].mxu0
        %v4386 = vpop.f32.mrb[0].mxu0
        %4387 = vdwg.mxu0
        %4388 = vmatprep.subr.bf16.mxu0 %v2458
        %4389 = vmatpush1.bf16.msra.mxu0 %v2457
        %4390 = vmatprep.subr.bf16.mxu0 0
        %4391 = vmatpush1.bf16.msra.mxu0 0
        %4392 = vmatprep.subr.bf16.mxu0 0
        %4393 = vmatpush1.bf16.msra.mxu0 0
        %4394 = vmatprep.subr.bf16.mxu0 0
        %4395 = vmatpush1.bf16.msra.mxu0 0
        %4396 = vmatprep.subr.bf16.mxu0 0
        %4397 = vmatpush1.bf16.msra.mxu0 0
        %4398 = vmatprep.subr.bf16.mxu0 0
        %4399 = vmatpush1.bf16.msra.mxu0 0
        %4400 = vmatprep.subr.bf16.mxu0 0
        %4401 = vmatpush1.bf16.msra.mxu0 0
        %4402 = vmatprep.subr.bf16.mxu0 0
        %4403 = vmatpush1.bf16.msra.mxu0 0
        %4404 = vmatprep.subr.bf16.mxu0 0
        %4405 = vmatpush1.bf16.msra.mxu0 0
        %4406 = vmatprep.subr.bf16.mxu0 0
        %4407 = vmatpush1.bf16.msra.mxu0 0
        %4408 = vmatprep.subr.bf16.mxu0 0
        %4409 = vmatpush1.bf16.msra.mxu0 0
        %4410 = vmatprep.subr.bf16.mxu0 0
        %4411 = vmatpush1.bf16.msra.mxu0 0
        %4412 = vmatprep.subr.bf16.mxu0 0
        %4413 = vmatpush1.bf16.msra.mxu0 0
        %4414 = vmatprep.subr.bf16.mxu0 0
        %4415 = vmatpush1.bf16.msra.mxu0 0
        %4416 = vmatprep.subr.bf16.mxu0 0
        %4417 = vmatpush1.bf16.msra.mxu0 0
        %4418 = vmatprep.subr.bf16.mxu0 0
        %4419 = vmatpush1.bf16.msra.mxu0 0
        %4420 = vmatprep.mubr.bf16.mxu0 0
        %4421 = vmatmul.mubr.bf16.gmra.mrb[0].mxu0 %v2853
        %v4422 = vpop.f32.mrb[0].mxu0
        %v4423 = vadd.f32 %v4322, %v4422
        %v4424 = vpop.f32.mrb[0].mxu0
        %v4425 = vadd.f32 %v4324, %v4424
        %v4426 = vpop.f32.mrb[0].mxu0
        %v4427 = vadd.f32 %v4326, %v4426
        %v4428 = vpop.f32.mrb[0].mxu0
        %v4429 = vadd.f32 %v4328, %v4428
        %4430 = vmatprep.mubr.bf16.mxu0 0
        %4431 = vmatmul.mubr.bf16.gmra.mrb[0].mxu0 %v2856
        %v4432 = vpop.f32.mrb[0].mxu0
        %v4433 = vadd.f32 %v4332, %v4432
        %v4434 = vpop.f32.mrb[0].mxu0
        %v4435 = vadd.f32 %v4334, %v4434
        %v4436 = vpop.f32.mrb[0].mxu0
        %v4437 = vadd.f32 %v4336, %v4436
        %v4438 = vpop.f32.mrb[0].mxu0
        %v4439 = vadd.f32 %v4338, %v4438
        %4440 = vmatprep.mubr.bf16.mxu0 0
        %4441 = vmatmul.mubr.bf16.gmra.mrb[0].mxu0 %v2859
        %v4442 = vpop.f32.mrb[0].mxu0
        %v4443 = vadd.f32 %v4342, %v4442
        %v4444 = vpop.f32.mrb[0].mxu0
        %v4445 = vadd.f32 %v4344, %v4444
        %v4446 = vpop.f32.mrb[0].mxu0
        %v4447 = vadd.f32 %v4346, %v4446
        %v4448 = vpop.f32.mrb[0].mxu0
        %v4449 = vadd.f32 %v4348, %v4448
        %4450 = vmatprep.mubr.bf16.mxu0 0
        %4451 = vmatmul.mubr.bf16.gmra.mrb[0].mxu0 %v2862
        %v4452 = vpop.f32.mrb[0].mxu0
        %v4453 = vadd.f32 %v4352, %v4452
        %v4454 = vpop.f32.mrb[0].mxu0
        %v4455 = vadd.f32 %v4354, %v4454
        %v4456 = vpop.f32.mrb[0].mxu0
        %v4457 = vadd.f32 %v4356, %v4456
        %v4458 = vpop.f32.mrb[0].mxu0
        %v4459 = vadd.f32 %v4358, %v4458
        %4460 = vmatprep.mubr.bf16.mxu0 0
        %4461 = vmatmul.mubr.bf16.gmra.mrb[0].mxu0 %v2865
        %v4462 = vpop.f32.mrb[0].mxu0
        %v4463 = vadd.f32 %v4362, %v4462
        %v4464 = vpop.f32.mrb[0].mxu0
        %v4465 = vadd.f32 %v4364, %v4464
        %v4466 = vpop.f32.mrb[0].mxu0
        %v4467 = vadd.f32 %v4366, %v4466
        %v4468 = vpop.f32.mrb[0].mxu0
        %v4469 = vadd.f32 %v4368, %v4468
        %4470 = vmatprep.mubr.bf16.mxu0 0
        %4471 = vmatmul.mubr.bf16.gmra.mrb[0].mxu0 %v2868
        %v4472 = vpop.f32.mrb[0].mxu0
        %v4473 = vadd.f32 %v4372, %v4472
        %v4474 = vpop.f32.mrb[0].mxu0
        %v4475 = vadd.f32 %v4374, %v4474
        %v4476 = vpop.f32.mrb[0].mxu0
        %v4477 = vadd.f32 %v4376, %v4476
        %v4478 = vpop.f32.mrb[0].mxu0
        %v4479 = vadd.f32 %v4378, %v4478
        %4480 = vmatprep.mubr.bf16.mxu0 0
        %4481 = vmatmul.mubr.bf16.gmra.mrb[0].mxu0 %v2871
        %v4482 = vpop.f32.mrb[0].mxu0
        %v4483 = vadd.f32 %v4382, %v4482
        %v4484 = vpop.f32.mrb[0].mxu0
        %v4485 = vadd.f32 %v4384, %v4484
        %v4486 = vpop.f32.mrb[0].mxu0
        %v4487 = vpop.f32.mrb[0].mxu0
        %4488 = vdwg.mxu0
        %v4489 = vmax.f32 %v3211, 0.0
        %v4490 = vmax.f32 %v3213, 0.0
        %v4491 = vmax.f32 %v3615, 0.0
        %v4492 = vmax.f32 %v3617, 0.0
        %v4493 = vmax.f32 %v4019, 0.0
        %v4494 = vmax.f32 %v4021, 0.0
        %v4495 = vmax.f32 %v4423, 0.0
        %v4496 = vmax.f32 %v4425, 0.0
        %v4497 = vmax.f32 %v3215, 0.0
        %v4498 = vmax.f32 %v3217, 0.0
        %v4499 = vmax.f32 %v3619, 0.0
        %v4500 = vmax.f32 %v3621, 0.0
        %v4501 = vmax.f32 %v4023, 0.0
        %v4502 = vmax.f32 %v4025, 0.0
        %v4503 = vmax.f32 %v4427, 0.0
        %v4504 = vmax.f32 %v4429, 0.0
        %v4505 = vmax.f32 %v3221, 0.0
        %v4506 = vmax.f32 %v3223, 0.0
        %v4507 = vmax.f32 %v3625, 0.0
        %v4508 = vmax.f32 %v3627, 0.0
        %v4509 = vmax.f32 %v4029, 0.0
        %v4510 = vmax.f32 %v4031, 0.0
        %v4511 = vmax.f32 %v4433, 0.0
        %v4512 = vmax.f32 %v4435, 0.0
        %v4513 = vmax.f32 %v3225, 0.0
        %v4514 = vmax.f32 %v3227, 0.0
        %v4515 = vmax.f32 %v3629, 0.0
        %v4516 = vmax.f32 %v3631, 0.0
        %v4517 = vmax.f32 %v4033, 0.0
        %v4518 = vmax.f32 %v4035, 0.0
        %v4519 = vmax.f32 %v4437, 0.0
        %v4520 = vmax.f32 %v4439, 0.0
        %v4521 = vmax.f32 %v3231, 0.0
        %v4522 = vmax.f32 %v3233, 0.0
        %v4523 = vmax.f32 %v3635, 0.0
        %v4524 = vmax.f32 %v3637, 0.0
        %v4525 = vmax.f32 %v4039, 0.0
        %v4526 = vmax.f32 %v4041, 0.0
        %v4527 = vmax.f32 %v4443, 0.0
        %v4528 = vmax.f32 %v4445, 0.0
        %v4529 = vmax.f32 %v3235, 0.0
        %v4530 = vmax.f32 %v3237, 0.0
        %v4531 = vmax.f32 %v3639, 0.0
        %v4532 = vmax.f32 %v3641, 0.0
        %v4533 = vmax.f32 %v4043, 0.0
        %v4534 = vmax.f32 %v4045, 0.0
        %v4535 = vmax.f32 %v4447, 0.0
        %v4536 = vmax.f32 %v4449, 0.0
        %v4537 = vmax.f32 %v3241, 0.0
        %v4538 = vmax.f32 %v3243, 0.0
        %v4539 = vmax.f32 %v3645, 0.0
        %v4540 = vmax.f32 %v3647, 0.0
        %v4541 = vmax.f32 %v4049, 0.0
        %v4542 = vmax.f32 %v4051, 0.0
        %v4543 = vmax.f32 %v4453, 0.0
        %v4544 = vmax.f32 %v4455, 0.0
        %v4545 = vmax.f32 %v3245, 0.0
        %v4546 = vmax.f32 %v3247, 0.0
        %v4547 = vmax.f32 %v3649, 0.0
        %v4548 = vmax.f32 %v3651, 0.0
        %v4549 = vmax.f32 %v4053, 0.0
        %v4550 = vmax.f32 %v4055, 0.0
        %v4551 = vmax.f32 %v4457, 0.0
        %v4552 = vmax.f32 %v4459, 0.0
        %v4553 = vmax.f32 %v3251, 0.0
        %v4554 = vmax.f32 %v3253, 0.0
        %v4555 = vmax.f32 %v3655, 0.0
        %v4556 = vmax.f32 %v3657, 0.0
        %v4557 = vmax.f32 %v4059, 0.0
        %v4558 = vmax.f32 %v4061, 0.0
        %v4559 = vmax.f32 %v4463, 0.0
        %v4560 = vmax.f32 %v4465, 0.0
        %v4561 = vmax.f32 %v3255, 0.0
        %v4562 = vmax.f32 %v3257, 0.0
        %v4563 = vmax.f32 %v3659, 0.0
        %v4564 = vmax.f32 %v3661, 0.0
        %v4565 = vmax.f32 %v4063, 0.0
        %v4566 = vmax.f32 %v4065, 0.0
        %v4567 = vmax.f32 %v4467, 0.0
        %v4568 = vmax.f32 %v4469, 0.0
        %v4569 = vmax.f32 %v3261, 0.0
        %v4570 = vmax.f32 %v3263, 0.0
        %v4571 = vmax.f32 %v3665, 0.0
        %v4572 = vmax.f32 %v3667, 0.0
        %v4573 = vmax.f32 %v4069, 0.0
        %v4574 = vmax.f32 %v4071, 0.0
        %v4575 = vmax.f32 %v4473, 0.0
        %v4576 = vmax.f32 %v4475, 0.0
        %v4577 = vmax.f32 %v3265, 0.0
        %v4578 = vmax.f32 %v3267, 0.0
        %v4579 = vmax.f32 %v3669, 0.0
        %v4580 = vmax.f32 %v3671, 0.0
        %v4581 = vmax.f32 %v4073, 0.0
        %v4582 = vmax.f32 %v4075, 0.0
        %v4583 = vmax.f32 %v4477, 0.0
        %v4584 = vmax.f32 %v4479, 0.0
        %v4585 = vmax.f32 %v3271, 0.0
        %v4586 = vmax.f32 %v3273, 0.0
        %v4587 = vmax.f32 %v3675, 0.0
        %v4588 = vmax.f32 %v3677, 0.0
        %v4589 = vmax.f32 %v4079, 0.0
        %v4590 = vmax.f32 %v4081, 0.0
        %v4591 = vmax.f32 %v4483, 0.0
        %v4592 = vmax.f32 %v4485, 0.0
        %v4593 = vpack.c.bf16 %v4497, %v4489
        %v4594 = vpack.c.bf16 %v4498, %v4490
        %v4595 = vpack.c.bf16 %v4499, %v4491
        %v4596 = vpack.c.bf16 %v4500, %v4492
        %v4597 = vpack.c.bf16 %v4501, %v4493
        %v4598 = vpack.c.bf16 %v4502, %v4494
        %v4599 = vpack.c.bf16 %v4503, %v4495
        %v4600 = vpack.c.bf16 %v4504, %v4496
        %v4601 = vpack.c.bf16 %v4513, %v4505
        %v4602 = vpack.c.bf16 %v4514, %v4506
        %v4603 = vpack.c.bf16 %v4515, %v4507
        %v4604 = vpack.c.bf16 %v4516, %v4508
        %v4605 = vpack.c.bf16 %v4517, %v4509
        %v4606 = vpack.c.bf16 %v4518, %v4510
        %v4607 = vpack.c.bf16 %v4519, %v4511
        %v4608 = vpack.c.bf16 %v4520, %v4512
        %v4609 = vpack.c.bf16 %v4529, %v4521
        %v4610 = vpack.c.bf16 %v4530, %v4522
        %v4611 = vpack.c.bf16 %v4531, %v4523
        %v4612 = vpack.c.bf16 %v4532, %v4524
        %v4613 = vpack.c.bf16 %v4533, %v4525
        %v4614 = vpack.c.bf16 %v4534, %v4526
        %v4615 = vpack.c.bf16 %v4535, %v4527
        %v4616 = vpack.c.bf16 %v4536, %v4528
        %v4617 = vpack.c.bf16 %v4545, %v4537
        %v4618 = vpack.c.bf16 %v4546, %v4538
        %v4619 = vpack.c.bf16 %v4547, %v4539
        %v4620 = vpack.c.bf16 %v4548, %v4540
        %v4621 = vpack.c.bf16 %v4549, %v4541
        %v4622 = vpack.c.bf16 %v4550, %v4542
        %v4623 = vpack.c.bf16 %v4551, %v4543
        %v4624 = vpack.c.bf16 %v4552, %v4544
        %v4625 = vpack.c.bf16 %v4561, %v4553
        %v4626 = vpack.c.bf16 %v4562, %v4554
        %v4627 = vpack.c.bf16 %v4563, %v4555
        %v4628 = vpack.c.bf16 %v4564, %v4556
        %v4629 = vpack.c.bf16 %v4565, %v4557
        %v4630 = vpack.c.bf16 %v4566, %v4558
        %v4631 = vpack.c.bf16 %v4567, %v4559
        %v4632 = vpack.c.bf16 %v4568, %v4560
        %v4633 = vpack.c.bf16 %v4577, %v4569
        %v4634 = vpack.c.bf16 %v4578, %v4570
        %v4635 = vpack.c.bf16 %v4579, %v4571
        %v4636 = vpack.c.bf16 %v4580, %v4572
        %v4637 = vpack.c.bf16 %v4581, %v4573
        %v4638 = vpack.c.bf16 %v4582, %v4574
        %v4639 = vpack.c.bf16 %v4583, %v4575
        %v4640 = vpack.c.bf16 %v4584, %v4576
        %v4641 = vpack.c.bf16 %v4585, %v4585
        %v4642 = vpack.c.bf16 %v4586, %v4586
        %v4643 = vpack.c.bf16 %v4587, %v4587
        %v4644 = vpack.c.bf16 %v4588, %v4588
        %v4645 = vpack.c.bf16 %v4589, %v4589
        %v4646 = vpack.c.bf16 %v4590, %v4590
        %v4647 = vpack.c.bf16 %v4591, %v4591
        %v4648 = vpack.c.bf16 %v4592, %v4592
        %v4649 = vld [vmem:[#allocation8] sm:$0xf]
        %v4650 = vld [vmem:[#allocation8 + $0x4] sm:$0xf]
        %v4651 = vld [vmem:[#allocation8 + $0x8] sm:$0xf]
        %v4652 = vld [vmem:[#allocation8 + $0xc] sm:$0xf]
        %v4653 = vld [vmem:[#allocation8 + $0x10] sm:$0xf]
        %v4654 = vld [vmem:[#allocation8 + $0x14] sm:$0xf]
        %v4655 = vld [vmem:[#allocation8 + $0x18] sm:$0xf]
        %v4656 = vld [vmem:[#allocation8 + $0x1c] sm:$0xf]
        %v4657 = vld [vmem:[#allocation8 + $0x20] sm:$0xf]
        %v4658 = vld [vmem:[#allocation8 + $0x24] sm:$0xf]
        %v4659 = vld [vmem:[#allocation8 + $0x28] sm:$0xf]
        %v4660 = vld [vmem:[#allocation8 + $0x2c] sm:$0xf]
        %v4661 = vld [vmem:[#allocation8 + $0x30] sm:$0xf]
        %v4662 = vld [vmem:[#allocation8 + $0x34] sm:$0xf]
        %v4663 = vld [vmem:[#allocation8 + $0x38] sm:$0xf]
        %v4664 = vld [vmem:[#allocation8 + $0x3c] sm:$0xf]
        %v4665 = vld [vmem:[#allocation8 + $0x40] sm:$0xf]
        %v4666 = vld [vmem:[#allocation8 + $0x44] sm:$0xf]
        %v4667 = vld [vmem:[#allocation8 + $0x48] sm:$0xf]
        %v4668 = vld [vmem:[#allocation8 + $0x4c] sm:$0xf]
        %v4669 = vld [vmem:[#allocation8 + $0x50] sm:$0xf]
        %v4670 = vld [vmem:[#allocation8 + $0x54] sm:$0xf]
        %v4671 = vld [vmem:[#allocation8 + $0x58] sm:$0xf]
        %v4672 = vld [vmem:[#allocation8 + $0x5c] sm:$0xf]
        %v4673 = vld [vmem:[#allocation8 + $0x60] sm:$0xf]
        %v4674 = vld [vmem:[#allocation8 + $0x64] sm:$0xf]
        %v4675 = vld [vmem:[#allocation8 + $0x68] sm:$0xf]
        %v4676 = vld [vmem:[#allocation8 + $0x6c] sm:$0xf]
        %v4677 = vld [vmem:[#allocation8 + $0x70] sm:$0xf]
        %v4678 = vld [vmem:[#allocation8 + $0x74] sm:$0xf]
        %v4679 = vld [vmem:[#allocation8 + $0x78] sm:$0xf]
        %v4680 = vld [vmem:[#allocation8 + $0x7c] sm:$0xf]
        %v4681 = vld [vmem:[#allocation8 + $0x80] sm:$0xf]
        %v4682 = vld [vmem:[#allocation8 + $0x84] sm:$0xf]
        %v4683 = vld [vmem:[#allocation8 + $0x88] sm:$0xf]
        %v4684 = vld [vmem:[#allocation8 + $0x8c] sm:$0xf]
        %v4685 = vld [vmem:[#allocation8 + $0x90] sm:$0xf]
        %v4686 = vld [vmem:[#allocation8 + $0x94] sm:$0xf]
        %v4687 = vld [vmem:[#allocation8 + $0x98] sm:$0xf]
        %v4688 = vld [vmem:[#allocation8 + $0x9c] sm:$0xf]
        %v4689 = vld [vmem:[#allocation8 + $0xa0] sm:$0xf]
        %v4690 = vld [vmem:[#allocation8 + $0xa4] sm:$0xf]
        %v4691 = vld [vmem:[#allocation8 + $0xa8] sm:$0xf]
        %v4692 = vld [vmem:[#allocation8 + $0xac] sm:$0xf]
        %v4693 = vld [vmem:[#allocation8 + $0xb0] sm:$0xf]
        %v4694 = vld [vmem:[#allocation8 + $0xb4] sm:$0xf]
        %v4695 = vld [vmem:[#allocation8 + $0xb8] sm:$0xf]
        %v4696 = vld [vmem:[#allocation8 + $0xbc] sm:$0xf]
        %v4697 = vld [vmem:[#allocation8 + $0xc0] sm:$0xf]
        %v4698 = vld [vmem:[#allocation8 + $0xc4] sm:$0xf]
        %v4699 = vld [vmem:[#allocation8 + $0xc8] sm:$0xf]
        %v4700 = vld [vmem:[#allocation8 + $0xcc] sm:$0xf]
        %v4701 = vld [vmem:[#allocation8 + $0xd0] sm:$0xf]
        %v4702 = vld [vmem:[#allocation8 + $0xd4] sm:$0xf]
        %v4703 = vld [vmem:[#allocation8 + $0xd8] sm:$0xf]
        %v4704 = vld [vmem:[#allocation8 + $0xdc] sm:$0xf]
        %v4705 = vld [vmem:[#allocation8 + $0xe0] sm:$0xf]
        %v4706 = vld [vmem:[#allocation8 + $0xe4] sm:$0xf]
        %v4707 = vld [vmem:[#allocation8 + $0xe8] sm:$0xf]
        %v4708 = vld [vmem:[#allocation8 + $0xec] sm:$0xf]
        %v4709 = vld [vmem:[#allocation8 + $0xf0] sm:$0xf]
        %v4710 = vld [vmem:[#allocation8 + $0xf4] sm:$0xf]
        %v4711 = vld [vmem:[#allocation8 + $0xf8] sm:$0xf]
        %v4712 = vld [vmem:[#allocation8 + $0xfc] sm:$0xf]
        %v4713 = vld [vmem:[#allocation8 + $0x100] sm:$0xf]
        %v4714 = vld [vmem:[#allocation8 + $0x104] sm:$0xf]
        %v4715 = vld [vmem:[#allocation8 + $0x108] sm:$0xf]
        %v4716 = vld [vmem:[#allocation8 + $0x10c] sm:$0xf]
        %v4717 = vld [vmem:[#allocation8 + $0x110] sm:$0xf]
        %v4718 = vld [vmem:[#allocation8 + $0x114] sm:$0xf]
        %v4719 = vld [vmem:[#allocation8 + $0x118] sm:$0xf]
        %v4720 = vld [vmem:[#allocation8 + $0x11c] sm:$0xf]
        %v4721 = vld [vmem:[#allocation8 + $0x120] sm:$0xf]
        %v4722 = vld [vmem:[#allocation8 + $0x124] sm:$0xf]
        %v4723 = vld [vmem:[#allocation8 + $0x128] sm:$0xf]
        %v4724 = vld [vmem:[#allocation8 + $0x12c] sm:$0xf]
        %v4725 = vld [vmem:[#allocation8 + $0x130] sm:$0xf]
        %v4726 = vld [vmem:[#allocation8 + $0x134] sm:$0xf]
        %v4727 = vld [vmem:[#allocation8 + $0x138] sm:$0xf]
        %v4728 = vld [vmem:[#allocation8 + $0x13c] sm:$0xf]
        %v4729 = vld [vmem:[#allocation8 + $0x140] sm:$0xf]
        %v4730 = vld [vmem:[#allocation8 + $0x144] sm:$0xf]
        %v4731 = vld [vmem:[#allocation8 + $0x148] sm:$0xf]
        %v4732 = vld [vmem:[#allocation8 + $0x14c] sm:$0xf]
        %v4733 = vld [vmem:[#allocation8 + $0x150] sm:$0xf]
        %v4734 = vld [vmem:[#allocation8 + $0x154] sm:$0xf]
        %v4735 = vld [vmem:[#allocation8 + $0x158] sm:$0xf]
        %v4736 = vld [vmem:[#allocation8 + $0x15c] sm:$0xf]
        %v4737 = vld [vmem:[#allocation8 + $0x160] sm:$0xf]
        %v4738 = vld [vmem:[#allocation8 + $0x164] sm:$0xf]
        %v4739 = vld [vmem:[#allocation8 + $0x168] sm:$0xf]
        %v4740 = vld [vmem:[#allocation8 + $0x16c] sm:$0xf]
        %v4741 = vld [vmem:[#allocation8 + $0x170] sm:$0xf]
        %v4742 = vld [vmem:[#allocation8 + $0x174] sm:$0xf]
        %v4743 = vld [vmem:[#allocation8 + $0x178] sm:$0xf]
        %v4744 = vld [vmem:[#allocation8 + $0x17c] sm:$0xf]
        %v4745 = vld [vmem:[#allocation8 + $0x180] sm:$0xf]
        %v4746 = vld [vmem:[#allocation8 + $0x184] sm:$0xf]
        %v4747 = vld [vmem:[#allocation8 + $0x188] sm:$0xf]
        %v4748 = vld [vmem:[#allocation8 + $0x18c] sm:$0xf]
        %v4749 = vld [vmem:[#allocation8 + $0x190] sm:$0xf]
        %v4750 = vld [vmem:[#allocation8 + $0x194] sm:$0xf]
        %v4751 = vld [vmem:[#allocation8 + $0x198] sm:$0xf]
        %v4752 = vld [vmem:[#allocation8 + $0x19c] sm:$0xf]
        %v4753 = vld [vmem:[#allocation8 + $0x1a0] sm:$0xf]
        %v4754 = vld [vmem:[#allocation8 + $0x1a4] sm:$0xf]
        %v4755 = vld [vmem:[#allocation8 + $0x1a8] sm:$0xf]
        %v4756 = vld [vmem:[#allocation8 + $0x1ac] sm:$0xf]
        %v4757 = vld [vmem:[#allocation8 + $0x1b0] sm:$0xf]
        %v4758 = vld [vmem:[#allocation8 + $0x1b4] sm:$0xf]
        %v4759 = vld [vmem:[#allocation8 + $0x1b8] sm:$0xf]
        %v4760 = vld [vmem:[#allocation8 + $0x1bc] sm:$0xf]
        %v4761 = vld [vmem:[#allocation8 + $0x1c0] sm:$0xf]
        %v4762 = vld [vmem:[#allocation8 + $0x1c4] sm:$0xf]
        %v4763 = vld [vmem:[#allocation8 + $0x1c8] sm:$0xf]
        %v4764 = vld [vmem:[#allocation8 + $0x1cc] sm:$0xf]
        %v4765 = vld [vmem:[#allocation8 + $0x1d0] sm:$0xf]
        %v4766 = vld [vmem:[#allocation8 + $0x1d4] sm:$0xf]
        %v4767 = vld [vmem:[#allocation8 + $0x1d8] sm:$0xf]
        %v4768 = vld [vmem:[#allocation8 + $0x1dc] sm:$0xf]
        %v4769 = vld [vmem:[#allocation8 + $0x1e0] sm:$0xf]
        %v4770 = vld [vmem:[#allocation8 + $0x1e4] sm:$0xf]
        %v4771 = vld [vmem:[#allocation8 + $0x1e8] sm:$0xf]
        %v4772 = vld [vmem:[#allocation8 + $0x1ec] sm:$0xf]
        %v4773 = vld [vmem:[#allocation8 + $0x1f0] sm:$0xf]
        %v4774 = vld [vmem:[#allocation8 + $0x1f4] sm:$0xf]
        %v4775 = vld [vmem:[#allocation8 + $0x1f8] sm:$0xf]
        %v4776 = vld [vmem:[#allocation8 + $0x1fc] sm:$0xf]
        %v4777 = vld [vmem:[#allocation10] sm:$0x1]
        %v4779 = vlaneseq
        %v4780 = vshrl.u32 %v4779, 7
        %v4781 = vsub.s32 0, %v4780
        %v4782 = vrot.slane %v4777, %v4781
        %v4912 = vunpack.c.l.b16 %v4649
        %v4913 = vunpack.c.l.b16 %v4650
        %v4914 = vunpack.c.l.b16 %v4651
        %v4915 = vunpack.c.l.b16 %v4652
        %v4916 = vunpack.c.l.b16 %v4653
        %v4917 = vunpack.c.l.b16 %v4654
        %v4918 = vunpack.c.l.b16 %v4655
        %v4919 = vunpack.c.l.b16 %v4656
        %v4920 = vunpack.c.l.b16 %v4657
        %v4921 = vunpack.c.l.b16 %v4658
        %v4922 = vunpack.c.l.b16 %v4659
        %v4923 = vunpack.c.l.b16 %v4660
        %v4924 = vunpack.c.l.b16 %v4661
        %v4925 = vunpack.c.l.b16 %v4662
        %v4926 = vunpack.c.l.b16 %v4663
        %v4927 = vunpack.c.l.b16 %v4664
        %v4928 = vunpack.c.l.b16 %v4665
        %v4929 = vunpack.c.l.b16 %v4666
        %v4930 = vunpack.c.l.b16 %v4667
        %v4931 = vunpack.c.l.b16 %v4668
        %v4932 = vunpack.c.l.b16 %v4669
        %v4933 = vunpack.c.l.b16 %v4670
        %v4934 = vunpack.c.l.b16 %v4671
        %v4935 = vunpack.c.l.b16 %v4672
        %v4936 = vunpack.c.l.b16 %v4673
        %v4937 = vunpack.c.l.b16 %v4674
        %v4938 = vunpack.c.l.b16 %v4675
        %v4939 = vunpack.c.l.b16 %v4676
        %v4940 = vunpack.c.l.b16 %v4677
        %v4941 = vunpack.c.l.b16 %v4678
        %v4942 = vunpack.c.l.b16 %v4679
        %v4943 = vunpack.c.l.b16 %v4680
        %v4944 = vunpack.c.l.b16 %v4681
        %v4945 = vunpack.c.l.b16 %v4682
        %v4946 = vunpack.c.l.b16 %v4683
        %v4947 = vunpack.c.l.b16 %v4684
        %v4948 = vunpack.c.l.b16 %v4685
        %v4949 = vunpack.c.l.b16 %v4686
        %v4950 = vunpack.c.l.b16 %v4687
        %v4951 = vunpack.c.l.b16 %v4688
        %v4952 = vunpack.c.l.b16 %v4689
        %v4953 = vunpack.c.l.b16 %v4690
        %v4954 = vunpack.c.l.b16 %v4691
        %v4955 = vunpack.c.l.b16 %v4692
        %v4956 = vunpack.c.l.b16 %v4693
        %v4957 = vunpack.c.l.b16 %v4694
        %v4958 = vunpack.c.l.b16 %v4695
        %v4959 = vunpack.c.l.b16 %v4696
        %v4960 = vunpack.c.l.b16 %v4697
        %v4961 = vunpack.c.l.b16 %v4698
        %v4962 = vunpack.c.l.b16 %v4699
        %v4963 = vunpack.c.l.b16 %v4700
        %v4964 = vunpack.c.l.b16 %v4701
        %v4965 = vunpack.c.l.b16 %v4702
        %v4966 = vunpack.c.l.b16 %v4703
        %v4967 = vunpack.c.l.b16 %v4704
        %v4968 = vunpack.c.l.b16 %v4705
        %v4969 = vunpack.c.l.b16 %v4706
        %v4970 = vunpack.c.l.b16 %v4707
        %v4971 = vunpack.c.l.b16 %v4708
        %v4972 = vunpack.c.l.b16 %v4709
        %v4973 = vunpack.c.l.b16 %v4710
        %v4974 = vunpack.c.l.b16 %v4711
        %v4975 = vunpack.c.l.b16 %v4712
        %v4976 = vunpack.c.l.b16 %v4713
        %v4977 = vunpack.c.l.b16 %v4714
        %v4978 = vunpack.c.l.b16 %v4715
        %v4979 = vunpack.c.l.b16 %v4716
        %v4980 = vunpack.c.l.b16 %v4717
        %v4981 = vunpack.c.l.b16 %v4718
        %v4982 = vunpack.c.l.b16 %v4719
        %v4983 = vunpack.c.l.b16 %v4720
        %v4984 = vunpack.c.l.b16 %v4721
        %v4985 = vunpack.c.l.b16 %v4722
        %v4986 = vunpack.c.l.b16 %v4723
        %v4987 = vunpack.c.l.b16 %v4724
        %v4988 = vunpack.c.l.b16 %v4725
        %v4989 = vunpack.c.l.b16 %v4726
        %v4990 = vunpack.c.l.b16 %v4727
        %v4991 = vunpack.c.l.b16 %v4728
        %v4992 = vunpack.c.l.b16 %v4729
        %v4993 = vunpack.c.l.b16 %v4730
        %v4994 = vunpack.c.l.b16 %v4731
        %v4995 = vunpack.c.l.b16 %v4732
        %v4996 = vunpack.c.l.b16 %v4733
        %v4997 = vunpack.c.l.b16 %v4734
        %v4998 = vunpack.c.l.b16 %v4735
        %v4999 = vunpack.c.l.b16 %v4736
        %v5000 = vunpack.c.l.b16 %v4737
        %v5001 = vunpack.c.l.b16 %v4738
        %v5002 = vunpack.c.l.b16 %v4739
        %v5003 = vunpack.c.l.b16 %v4740
        %v5004 = vunpack.c.l.b16 %v4741
        %v5005 = vunpack.c.l.b16 %v4742
        %v5006 = vunpack.c.l.b16 %v4743
        %v5007 = vunpack.c.l.b16 %v4744
        %v5008 = vunpack.c.l.b16 %v4745
        %v5009 = vunpack.c.l.b16 %v4746
        %v5010 = vunpack.c.l.b16 %v4747
        %v5011 = vunpack.c.l.b16 %v4748
        %v5012 = vunpack.c.l.b16 %v4749
        %v5013 = vunpack.c.l.b16 %v4750
        %v5014 = vunpack.c.l.b16 %v4751
        %v5015 = vunpack.c.l.b16 %v4752
        %v5016 = vunpack.c.l.b16 %v4753
        %v5017 = vunpack.c.l.b16 %v4754
        %v5018 = vunpack.c.l.b16 %v4755
        %v5019 = vunpack.c.l.b16 %v4756
        %v5020 = vunpack.c.l.b16 %v4757
        %v5021 = vunpack.c.l.b16 %v4758
        %v5022 = vunpack.c.l.b16 %v4759
        %v5023 = vunpack.c.l.b16 %v4760
        %v5024 = vunpack.c.l.b16 %v4761
        %v5025 = vunpack.c.l.b16 %v4762
        %v5026 = vunpack.c.l.b16 %v4763
        %v5027 = vunpack.c.l.b16 %v4764
        %v5028 = vunpack.c.l.b16 %v4765
        %v5029 = vunpack.c.l.b16 %v4766
        %v5030 = vunpack.c.l.b16 %v4767
        %v5031 = vunpack.c.l.b16 %v4768
        %v5032 = vunpack.c.l.b16 %v4769
        %v5033 = vunpack.c.l.b16 %v4770
        %v5034 = vunpack.c.l.b16 %v4771
        %v5035 = vunpack.c.l.b16 %v4772
        %v5036 = vunpack.c.l.b16 %v4773
        %v5037 = vunpack.c.l.b16 %v4774
        %v5038 = vunpack.c.l.b16 %v4775
        %v5039 = vunpack.c.l.b16 %v4776
        %v5040 = vpack.c.b16 %v4913, %v4912
        %v5041 = vpack.c.b16 %v4915, %v4914
        %v5042 = vpack.c.b16 %v4917, %v4916
        %v5043 = vpack.c.b16 %v4919, %v4918
        %v5044 = vpack.c.b16 %v4921, %v4920
        %v5045 = vpack.c.b16 %v4923, %v4922
        %v5046 = vpack.c.b16 %v4925, %v4924
        %v5047 = vpack.c.b16 %v4927, %v4926
        %v5048 = vpack.c.b16 %v4929, %v4928
        %v5049 = vpack.c.b16 %v4931, %v4930
        %v5050 = vpack.c.b16 %v4933, %v4932
        %v5051 = vpack.c.b16 %v4935, %v4934
        %v5052 = vpack.c.b16 %v4937, %v4936
        %v5053 = vpack.c.b16 %v4939, %v4938
        %v5054 = vpack.c.b16 %v4941, %v4940
        %v5055 = vpack.c.b16 %v4943, %v4942
        %v5056 = vpack.c.b16 %v4945, %v4944
        %v5057 = vpack.c.b16 %v4947, %v4946
        %v5058 = vpack.c.b16 %v4949, %v4948
        %v5059 = vpack.c.b16 %v4951, %v4950
        %v5060 = vpack.c.b16 %v4953, %v4952
        %v5061 = vpack.c.b16 %v4955, %v4954
        %v5062 = vpack.c.b16 %v4957, %v4956
        %v5063 = vpack.c.b16 %v4959, %v4958
        %v5064 = vpack.c.b16 %v4961, %v4960
        %v5065 = vpack.c.b16 %v4963, %v4962
        %v5066 = vpack.c.b16 %v4965, %v4964
        %v5067 = vpack.c.b16 %v4967, %v4966
        %v5068 = vpack.c.b16 %v4969, %v4968
        %v5069 = vpack.c.b16 %v4971, %v4970
        %v5070 = vpack.c.b16 %v4973, %v4972
        %v5071 = vpack.c.b16 %v4975, %v4974
        %v5072 = vpack.c.b16 %v4977, %v4976
        %v5073 = vpack.c.b16 %v4979, %v4978
        %v5074 = vpack.c.b16 %v4981, %v4980
        %v5075 = vpack.c.b16 %v4983, %v4982
        %v5076 = vpack.c.b16 %v4985, %v4984
        %v5077 = vpack.c.b16 %v4987, %v4986
        %v5078 = vpack.c.b16 %v4989, %v4988
        %v5079 = vpack.c.b16 %v4991, %v4990
        %v5080 = vpack.c.b16 %v4993, %v4992
        %v5081 = vpack.c.b16 %v4995, %v4994
        %v5082 = vpack.c.b16 %v4997, %v4996
        %v5083 = vpack.c.b16 %v4999, %v4998
        %v5084 = vpack.c.b16 %v5001, %v5000
        %v5085 = vpack.c.b16 %v5003, %v5002
        %v5086 = vpack.c.b16 %v5005, %v5004
        %v5087 = vpack.c.b16 %v5007, %v5006
        %v5088 = vpack.c.b16 %v5009, %v5008
        %v5089 = vpack.c.b16 %v5011, %v5010
        %v5090 = vpack.c.b16 %v5013, %v5012
        %v5091 = vpack.c.b16 %v5015, %v5014
        %v5092 = vpack.c.b16 %v5017, %v5016
        %v5093 = vpack.c.b16 %v5019, %v5018
        %v5094 = vpack.c.b16 %v5021, %v5020
        %v5095 = vpack.c.b16 %v5023, %v5022
        %v5096 = vpack.c.b16 %v5025, %v5024
        %v5097 = vpack.c.b16 %v5027, %v5026
        %v5098 = vpack.c.b16 %v5029, %v5028
        %v5099 = vpack.c.b16 %v5031, %v5030
        %v5100 = vpack.c.b16 %v5033, %v5032
        %v5101 = vpack.c.b16 %v5035, %v5034
        %v5102 = vpack.c.b16 %v5037, %v5036
        %v5103 = vpack.c.b16 %v5039, %v5038
        %5168 = vmatprep.subr.bf16.mxu0 0
        %5169 = vmatpush1.bf16.msra.mxu0 %v5040
        %5170 = vmatprep.subr.bf16.mxu0 0
        %5171 = vmatpush1.bf16.msra.mxu0 %v5041
        %5172 = vmatprep.subr.bf16.mxu0 0
        %5173 = vmatpush1.bf16.msra.mxu0 %v5042
        %5174 = vmatprep.subr.bf16.mxu0 0
        %5175 = vmatpush1.bf16.msra.mxu0 %v5043
        %5176 = vmatprep.subr.bf16.mxu0 0
        %5177 = vmatpush1.bf16.msra.mxu0 %v5044
        %5178 = vmatprep.subr.bf16.mxu0 0
        %5179 = vmatpush1.bf16.msra.mxu0 %v5045
        %5180 = vmatprep.subr.bf16.mxu0 0
        %5181 = vmatpush1.bf16.msra.mxu0 %v5046
        %5182 = vmatprep.subr.bf16.mxu0 0
        %5183 = vmatpush1.bf16.msra.mxu0 %v5047
        %5184 = vmatprep.subr.bf16.mxu0 0
        %5185 = vmatpush1.bf16.msra.mxu0 %v5048
        %5186 = vmatprep.subr.bf16.mxu0 0
        %5187 = vmatpush1.bf16.msra.mxu0 %v5049
        %5188 = vmatprep.subr.bf16.mxu0 0
        %5189 = vmatpush1.bf16.msra.mxu0 %v5050
        %5190 = vmatprep.subr.bf16.mxu0 0
        %5191 = vmatpush1.bf16.msra.mxu0 %v5051
        %5192 = vmatprep.subr.bf16.mxu0 0
        %5193 = vmatpush1.bf16.msra.mxu0 %v5052
        %5194 = vmatprep.subr.bf16.mxu0 0
        %5195 = vmatpush1.bf16.msra.mxu0 %v5053
        %5196 = vmatprep.subr.bf16.mxu0 0
        %5197 = vmatpush1.bf16.msra.mxu0 %v5054
        %5198 = vmatprep.subr.bf16.mxu0 0
        %5199 = vmatpush1.bf16.msra.mxu0 %v5055
        %5200 = vmatprep.mubr.bf16.mxu0 %v4594
        %5201 = vmatmul.mubr.bf16.gmra.mrb[0].mxu0 %v4593
        %v5202 = vpop.f32.mrb[0].mxu0
        %v5203 = vadd.f32 %v4782, %v5202
        %v5204 = vpop.f32.mrb[0].mxu0
        %v5205 = vpop.f32.mrb[0].mxu0
        %v5206 = vadd.f32 %v4782, %v5205
        %v5207 = vpop.f32.mrb[0].mxu0
        %5208 = vmatprep.mubr.bf16.mxu0 %v4602
        %5209 = vmatmul.mubr.bf16.gmra.mrb[0].mxu0 %v4601
        %v5210 = vpop.f32.mrb[0].mxu0
        %v5211 = vadd.f32 %v4782, %v5210
        %v5212 = vpop.f32.mrb[0].mxu0
        %v5213 = vpop.f32.mrb[0].mxu0
        %v5214 = vadd.f32 %v4782, %v5213
        %v5215 = vpop.f32.mrb[0].mxu0
        %5216 = vmatprep.mubr.bf16.mxu0 %v4610
        %5217 = vmatmul.mubr.bf16.gmra.mrb[0].mxu0 %v4609
        %v5218 = vpop.f32.mrb[0].mxu0
        %v5219 = vadd.f32 %v4782, %v5218
        %v5220 = vpop.f32.mrb[0].mxu0
        %v5221 = vpop.f32.mrb[0].mxu0
        %v5222 = vadd.f32 %v4782, %v5221
        %v5223 = vpop.f32.mrb[0].mxu0
        %5224 = vmatprep.mubr.bf16.mxu0 %v4618
        %5225 = vmatmul.mubr.bf16.gmra.mrb[0].mxu0 %v4617
        %v5226 = vpop.f32.mrb[0].mxu0
        %v5227 = vadd.f32 %v4782, %v5226
        %v5228 = vpop.f32.mrb[0].mxu0
        %v5229 = vpop.f32.mrb[0].mxu0
        %v5230 = vadd.f32 %v4782, %v5229
        %v5231 = vpop.f32.mrb[0].mxu0
        %5232 = vmatprep.mubr.bf16.mxu0 %v4626
        %5233 = vmatmul.mubr.bf16.gmra.mrb[0].mxu0 %v4625
        %v5234 = vpop.f32.mrb[0].mxu0
        %v5235 = vadd.f32 %v4782, %v5234
        %v5236 = vpop.f32.mrb[0].mxu0
        %v5237 = vpop.f32.mrb[0].mxu0
        %v5238 = vadd.f32 %v4782, %v5237
        %v5239 = vpop.f32.mrb[0].mxu0
        %5240 = vmatprep.mubr.bf16.mxu0 %v4634
        %5241 = vmatmul.mubr.bf16.gmra.mrb[0].mxu0 %v4633
        %v5242 = vpop.f32.mrb[0].mxu0
        %v5243 = vadd.f32 %v4782, %v5242
        %v5244 = vpop.f32.mrb[0].mxu0
        %v5245 = vpop.f32.mrb[0].mxu0
        %v5246 = vadd.f32 %v4782, %v5245
        %v5247 = vpop.f32.mrb[0].mxu0
        %5248 = vmatprep.mubr.bf16.mxu0 %v4642
        %5249 = vmatmul.mubr.bf16.gmra.mrb[0].mxu0 %v4641
        %v5250 = vpop.f32.mrb[0].mxu0
        %v5251 = vadd.f32 %v4782, %v5250
        %v5252 = vpop.f32.mrb[0].mxu0
        %v5253 = vpop.f32.mrb[0].mxu0
        %v5254 = vpop.f32.mrb[0].mxu0
        %5255 = vdwg.mxu0
        %5256 = vmatprep.subr.bf16.mxu0 0
        %5257 = vmatpush1.bf16.msra.mxu0 %v5056
        %5258 = vmatprep.subr.bf16.mxu0 0
        %5259 = vmatpush1.bf16.msra.mxu0 %v5057
        %5260 = vmatprep.subr.bf16.mxu0 0
        %5261 = vmatpush1.bf16.msra.mxu0 %v5058
        %5262 = vmatprep.subr.bf16.mxu0 0
        %5263 = vmatpush1.bf16.msra.mxu0 %v5059
        %5264 = vmatprep.subr.bf16.mxu0 0
        %5265 = vmatpush1.bf16.msra.mxu0 %v5060
        %5266 = vmatprep.subr.bf16.mxu0 0
        %5267 = vmatpush1.bf16.msra.mxu0 %v5061
        %5268 = vmatprep.subr.bf16.mxu0 0
        %5269 = vmatpush1.bf16.msra.mxu0 %v5062
        %5270 = vmatprep.subr.bf16.mxu0 0
        %5271 = vmatpush1.bf16.msra.mxu0 %v5063
        %5272 = vmatprep.subr.bf16.mxu0 0
        %5273 = vmatpush1.bf16.msra.mxu0 %v5064
        %5274 = vmatprep.subr.bf16.mxu0 0
        %5275 = vmatpush1.bf16.msra.mxu0 %v5065
        %5276 = vmatprep.subr.bf16.mxu0 0
        %5277 = vmatpush1.bf16.msra.mxu0 %v5066
        %5278 = vmatprep.subr.bf16.mxu0 0
        %5279 = vmatpush1.bf16.msra.mxu0 %v5067
        %5280 = vmatprep.subr.bf16.mxu0 0
        %5281 = vmatpush1.bf16.msra.mxu0 %v5068
        %5282 = vmatprep.subr.bf16.mxu0 0
        %5283 = vmatpush1.bf16.msra.mxu0 %v5069
        %5284 = vmatprep.subr.bf16.mxu0 0
        %5285 = vmatpush1.bf16.msra.mxu0 %v5070
        %5286 = vmatprep.subr.bf16.mxu0 0
        %5287 = vmatpush1.bf16.msra.mxu0 %v5071
        %5288 = vmatprep.mubr.bf16.mxu0 %v4596
        %5289 = vmatmul.mubr.bf16.gmra.mrb[0].mxu0 %v4595
        %v5290 = vpop.f32.mrb[0].mxu0
        %v5291 = vadd.f32 %v5203, %v5290
        %v5292 = vpop.f32.mrb[0].mxu0
        %v5293 = vpop.f32.mrb[0].mxu0
        %v5294 = vadd.f32 %v5206, %v5293
        %v5295 = vpop.f32.mrb[0].mxu0
        %5296 = vmatprep.mubr.bf16.mxu0 %v4604
        %5297 = vmatmul.mubr.bf16.gmra.mrb[0].mxu0 %v4603
        %v5298 = vpop.f32.mrb[0].mxu0
        %v5299 = vadd.f32 %v5211, %v5298
        %v5300 = vpop.f32.mrb[0].mxu0
        %v5301 = vpop.f32.mrb[0].mxu0
        %v5302 = vadd.f32 %v5214, %v5301
        %v5303 = vpop.f32.mrb[0].mxu0
        %5304 = vmatprep.mubr.bf16.mxu0 %v4612
        %5305 = vmatmul.mubr.bf16.gmra.mrb[0].mxu0 %v4611
        %v5306 = vpop.f32.mrb[0].mxu0
        %v5307 = vadd.f32 %v5219, %v5306
        %v5308 = vpop.f32.mrb[0].mxu0
        %v5309 = vpop.f32.mrb[0].mxu0
        %v5310 = vadd.f32 %v5222, %v5309
        %v5311 = vpop.f32.mrb[0].mxu0
        %5312 = vmatprep.mubr.bf16.mxu0 %v4620
        %5313 = vmatmul.mubr.bf16.gmra.mrb[0].mxu0 %v4619
        %v5314 = vpop.f32.mrb[0].mxu0
        %v5315 = vadd.f32 %v5227, %v5314
        %v5316 = vpop.f32.mrb[0].mxu0
        %v5317 = vpop.f32.mrb[0].mxu0
        %v5318 = vadd.f32 %v5230, %v5317
        %v5319 = vpop.f32.mrb[0].mxu0
        %5320 = vmatprep.mubr.bf16.mxu0 %v4628
        %5321 = vmatmul.mubr.bf16.gmra.mrb[0].mxu0 %v4627
        %v5322 = vpop.f32.mrb[0].mxu0
        %v5323 = vadd.f32 %v5235, %v5322
        %v5324 = vpop.f32.mrb[0].mxu0
        %v5325 = vpop.f32.mrb[0].mxu0
        %v5326 = vadd.f32 %v5238, %v5325
        %v5327 = vpop.f32.mrb[0].mxu0
        %5328 = vmatprep.mubr.bf16.mxu0 %v4636
        %5329 = vmatmul.mubr.bf16.gmra.mrb[0].mxu0 %v4635
        %v5330 = vpop.f32.mrb[0].mxu0
        %v5331 = vadd.f32 %v5243, %v5330
        %v5332 = vpop.f32.mrb[0].mxu0
        %v5333 = vpop.f32.mrb[0].mxu0
        %v5334 = vadd.f32 %v5246, %v5333
        %v5335 = vpop.f32.mrb[0].mxu0
        %5336 = vmatprep.mubr.bf16.mxu0 %v4644
        %5337 = vmatmul.mubr.bf16.gmra.mrb[0].mxu0 %v4643
        %v5338 = vpop.f32.mrb[0].mxu0
        %v5339 = vadd.f32 %v5251, %v5338
        %v5340 = vpop.f32.mrb[0].mxu0
        %v5341 = vpop.f32.mrb[0].mxu0
        %v5342 = vpop.f32.mrb[0].mxu0
        %5343 = vdwg.mxu0
        %5344 = vmatprep.subr.bf16.mxu0 0
        %5345 = vmatpush1.bf16.msra.mxu0 %v5072
        %5346 = vmatprep.subr.bf16.mxu0 0
        %5347 = vmatpush1.bf16.msra.mxu0 %v5073
        %5348 = vmatprep.subr.bf16.mxu0 0
        %5349 = vmatpush1.bf16.msra.mxu0 %v5074
        %5350 = vmatprep.subr.bf16.mxu0 0
        %5351 = vmatpush1.bf16.msra.mxu0 %v5075
        %5352 = vmatprep.subr.bf16.mxu0 0
        %5353 = vmatpush1.bf16.msra.mxu0 %v5076
        %5354 = vmatprep.subr.bf16.mxu0 0
        %5355 = vmatpush1.bf16.msra.mxu0 %v5077
        %5356 = vmatprep.subr.bf16.mxu0 0
        %5357 = vmatpush1.bf16.msra.mxu0 %v5078
        %5358 = vmatprep.subr.bf16.mxu0 0
        %5359 = vmatpush1.bf16.msra.mxu0 %v5079
        %5360 = vmatprep.subr.bf16.mxu0 0
        %5361 = vmatpush1.bf16.msra.mxu0 %v5080
        %5362 = vmatprep.subr.bf16.mxu0 0
        %5363 = vmatpush1.bf16.msra.mxu0 %v5081
        %5364 = vmatprep.subr.bf16.mxu0 0
        %5365 = vmatpush1.bf16.msra.mxu0 %v5082
        %5366 = vmatprep.subr.bf16.mxu0 0
        %5367 = vmatpush1.bf16.msra.mxu0 %v5083
        %5368 = vmatprep.subr.bf16.mxu0 0
        %5369 = vmatpush1.bf16.msra.mxu0 %v5084
        %5370 = vmatprep.subr.bf16.mxu0 0
        %5371 = vmatpush1.bf16.msra.mxu0 %v5085
        %5372 = vmatprep.subr.bf16.mxu0 0
        %5373 = vmatpush1.bf16.msra.mxu0 %v5086
        %5374 = vmatprep.subr.bf16.mxu0 0
        %5375 = vmatpush1.bf16.msra.mxu0 %v5087
        %5376 = vmatprep.mubr.bf16.mxu0 %v4598
        %5377 = vmatmul.mubr.bf16.gmra.mrb[0].mxu0 %v4597
        %v5378 = vpop.f32.mrb[0].mxu0
        %v5379 = vadd.f32 %v5291, %v5378
        %v5380 = vpop.f32.mrb[0].mxu0
        %v5381 = vpop.f32.mrb[0].mxu0
        %v5382 = vadd.f32 %v5294, %v5381
        %v5383 = vpop.f32.mrb[0].mxu0
        %5384 = vmatprep.mubr.bf16.mxu0 %v4606
        %5385 = vmatmul.mubr.bf16.gmra.mrb[0].mxu0 %v4605
        %v5386 = vpop.f32.mrb[0].mxu0
        %v5387 = vadd.f32 %v5299, %v5386
        %v5388 = vpop.f32.mrb[0].mxu0
        %v5389 = vpop.f32.mrb[0].mxu0
        %v5390 = vadd.f32 %v5302, %v5389
        %v5391 = vpop.f32.mrb[0].mxu0
        %5392 = vmatprep.mubr.bf16.mxu0 %v4614
        %5393 = vmatmul.mubr.bf16.gmra.mrb[0].mxu0 %v4613
        %v5394 = vpop.f32.mrb[0].mxu0
        %v5395 = vadd.f32 %v5307, %v5394
        %v5396 = vpop.f32.mrb[0].mxu0
        %v5397 = vpop.f32.mrb[0].mxu0
        %v5398 = vadd.f32 %v5310, %v5397
        %v5399 = vpop.f32.mrb[0].mxu0
        %5400 = vmatprep.mubr.bf16.mxu0 %v4622
        %5401 = vmatmul.mubr.bf16.gmra.mrb[0].mxu0 %v4621
        %v5402 = vpop.f32.mrb[0].mxu0
        %v5403 = vadd.f32 %v5315, %v5402
        %v5404 = vpop.f32.mrb[0].mxu0
        %v5405 = vpop.f32.mrb[0].mxu0
        %v5406 = vadd.f32 %v5318, %v5405
        %v5407 = vpop.f32.mrb[0].mxu0
        %5408 = vmatprep.mubr.bf16.mxu0 %v4630
        %5409 = vmatmul.mubr.bf16.gmra.mrb[0].mxu0 %v4629
        %v5410 = vpop.f32.mrb[0].mxu0
        %v5411 = vadd.f32 %v5323, %v5410
        %v5412 = vpop.f32.mrb[0].mxu0
        %v5413 = vpop.f32.mrb[0].mxu0
        %v5414 = vadd.f32 %v5326, %v5413
        %v5415 = vpop.f32.mrb[0].mxu0
        %5416 = vmatprep.mubr.bf16.mxu0 %v4638
        %5417 = vmatmul.mubr.bf16.gmra.mrb[0].mxu0 %v4637
        %v5418 = vpop.f32.mrb[0].mxu0
        %v5419 = vadd.f32 %v5331, %v5418
        %v5420 = vpop.f32.mrb[0].mxu0
        %v5421 = vpop.f32.mrb[0].mxu0
        %v5422 = vadd.f32 %v5334, %v5421
        %v5423 = vpop.f32.mrb[0].mxu0
        %5424 = vmatprep.mubr.bf16.mxu0 %v4646
        %5425 = vmatmul.mubr.bf16.gmra.mrb[0].mxu0 %v4645
        %v5426 = vpop.f32.mrb[0].mxu0
        %v5427 = vadd.f32 %v5339, %v5426
        %v5428 = vpop.f32.mrb[0].mxu0
        %v5429 = vpop.f32.mrb[0].mxu0
        %v5430 = vpop.f32.mrb[0].mxu0
        %5431 = vdwg.mxu0
        %5432 = vmatprep.subr.bf16.mxu0 0
        %5433 = vmatpush1.bf16.msra.mxu0 %v5088
        %5434 = vmatprep.subr.bf16.mxu0 0
        %5435 = vmatpush1.bf16.msra.mxu0 %v5089
        %5436 = vmatprep.subr.bf16.mxu0 0
        %5437 = vmatpush1.bf16.msra.mxu0 %v5090
        %5438 = vmatprep.subr.bf16.mxu0 0
        %5439 = vmatpush1.bf16.msra.mxu0 %v5091
        %5440 = vmatprep.subr.bf16.mxu0 0
        %5441 = vmatpush1.bf16.msra.mxu0 %v5092
        %5442 = vmatprep.subr.bf16.mxu0 0
        %5443 = vmatpush1.bf16.msra.mxu0 %v5093
        %5444 = vmatprep.subr.bf16.mxu0 0
        %5445 = vmatpush1.bf16.msra.mxu0 %v5094
        %5446 = vmatprep.subr.bf16.mxu0 0
        %5447 = vmatpush1.bf16.msra.mxu0 %v5095
        %5448 = vmatprep.subr.bf16.mxu0 0
        %5449 = vmatpush1.bf16.msra.mxu0 %v5096
        %5450 = vmatprep.subr.bf16.mxu0 0
        %5451 = vmatpush1.bf16.msra.mxu0 %v5097
        %5452 = vmatprep.subr.bf16.mxu0 0
        %5453 = vmatpush1.bf16.msra.mxu0 %v5098
        %5454 = vmatprep.subr.bf16.mxu0 0
        %5455 = vmatpush1.bf16.msra.mxu0 %v5099
        %5456 = vmatprep.subr.bf16.mxu0 0
        %5457 = vmatpush1.bf16.msra.mxu0 %v5100
        %5458 = vmatprep.subr.bf16.mxu0 0
        %5459 = vmatpush1.bf16.msra.mxu0 %v5101
        %5460 = vmatprep.subr.bf16.mxu0 0
        %5461 = vmatpush1.bf16.msra.mxu0 %v5102
        %5462 = vmatprep.subr.bf16.mxu0 0
        %5463 = vmatpush1.bf16.msra.mxu0 %v5103
        %5464 = vmatprep.mubr.bf16.mxu0 %v4600
        %5465 = vmatmul.mubr.bf16.gmra.mrb[0].mxu0 %v4599
        %v5466 = vpop.f32.mrb[0].mxu0
        %v5467 = vadd.f32 %v5379, %v5466
        %v5468 = vpop.f32.mrb[0].mxu0
        %v5469 = vpop.f32.mrb[0].mxu0
        %v5470 = vadd.f32 %v5382, %v5469
        %v5471 = vpop.f32.mrb[0].mxu0
        %5472 = vmatprep.mubr.bf16.mxu0 %v4608
        %5473 = vmatmul.mubr.bf16.gmra.mrb[0].mxu0 %v4607
        %v5474 = vpop.f32.mrb[0].mxu0
        %v5475 = vadd.f32 %v5387, %v5474
        %v5476 = vpop.f32.mrb[0].mxu0
        %v5477 = vpop.f32.mrb[0].mxu0
        %v5478 = vadd.f32 %v5390, %v5477
        %v5479 = vpop.f32.mrb[0].mxu0
        %5480 = vmatprep.mubr.bf16.mxu0 %v4616
        %5481 = vmatmul.mubr.bf16.gmra.mrb[0].mxu0 %v4615
        %v5482 = vpop.f32.mrb[0].mxu0
        %v5483 = vadd.f32 %v5395, %v5482
        %v5484 = vpop.f32.mrb[0].mxu0
        %v5485 = vpop.f32.mrb[0].mxu0
        %v5486 = vadd.f32 %v5398, %v5485
        %v5487 = vpop.f32.mrb[0].mxu0
        %5488 = vmatprep.mubr.bf16.mxu0 %v4624
        %5489 = vmatmul.mubr.bf16.gmra.mrb[0].mxu0 %v4623
        %v5490 = vpop.f32.mrb[0].mxu0
        %v5491 = vadd.f32 %v5403, %v5490
        %v5492 = vpop.f32.mrb[0].mxu0
        %v5493 = vpop.f32.mrb[0].mxu0
        %v5494 = vadd.f32 %v5406, %v5493
        %v5495 = vpop.f32.mrb[0].mxu0
        %5496 = vmatprep.mubr.bf16.mxu0 %v4632
        %5497 = vmatmul.mubr.bf16.gmra.mrb[0].mxu0 %v4631
        %v5498 = vpop.f32.mrb[0].mxu0
        %v5499 = vadd.f32 %v5411, %v5498
        %v5500 = vpop.f32.mrb[0].mxu0
        %v5501 = vpop.f32.mrb[0].mxu0
        %v5502 = vadd.f32 %v5414, %v5501
        %v5503 = vpop.f32.mrb[0].mxu0
        %5504 = vmatprep.mubr.bf16.mxu0 %v4640
        %5505 = vmatmul.mubr.bf16.gmra.mrb[0].mxu0 %v4639
        %v5506 = vpop.f32.mrb[0].mxu0
        %v5507 = vadd.f32 %v5419, %v5506
        %v5508 = vpop.f32.mrb[0].mxu0
        %v5509 = vpop.f32.mrb[0].mxu0
        %v5510 = vadd.f32 %v5422, %v5509
        %v5511 = vpop.f32.mrb[0].mxu0
        %5512 = vmatprep.mubr.bf16.mxu0 %v4648
        %5513 = vmatmul.mubr.bf16.gmra.mrb[0].mxu0 %v4647
        %v5514 = vpop.f32.mrb[0].mxu0
        %v5515 = vadd.f32 %v5427, %v5514
        %v5516 = vpop.f32.mrb[0].mxu0
        %v5517 = vpop.f32.mrb[0].mxu0
        %v5518 = vpop.f32.mrb[0].mxu0
        %5519 = vdwg.mxu0
        %5520 = vst [vmem:[%s304] sm:$0xff] %v5467
        %5521 = vst [vmem:[%s304 + $0x8] sm:$0xff] %v5470
        %5522 = vst [vmem:[%s304 + $0x10] sm:$0xff] %v5475
        %5523 = vst [vmem:[%s304 + $0x18] sm:$0xff] %v5478
        %5524 = vst [vmem:[%s304 + $0x20] sm:$0xff] %v5483
        %5525 = vst [vmem:[%s304 + $0x28] sm:$0xff] %v5486
        %5526 = vst [vmem:[%s304 + $0x30] sm:$0xff] %v5491
        %5527 = vst [vmem:[%s304 + $0x38] sm:$0xff] %v5494
        %5528 = vst [vmem:[%s304 + $0x40] sm:$0xff] %v5499
        %5529 = vst [vmem:[%s304 + $0x48] sm:$0xff] %v5502
        %5530 = vst [vmem:[%s304 + $0x50] sm:$0xff] %v5507
        %5531 = vst [vmem:[%s304 + $0x58] sm:$0xff] %v5510
        %5532 = vst [vmem:[%s304 + $0x60] sm:$0xff] %v5515
        %s5533 = sand.u32 %s142, 1
        %s5534 = scalar_lea.sflag [#allocation4], %s5533
        %s5535 = sand.u32 %s142, 1
        %s5536 = smul.addr %s5535, 104
        %s5537 = scalar_lea.vmem [#allocation11], %s5536
        // Predicated region
        $region61: #{tpu_custom_call.1} parent=39 // pred_check
          %p5538 = pneg %p152
        $region62: #{tpu_custom_call.1} parent=39 // pred_check_branch
          %5540 = sbr.rel (%p5538) target = $region64
        $region63: #{tpu_custom_call.1} parent=39 // pred_region
          %s5541 = smul.u32 13, %s24
          %s5542 = ssub.s32 25, %s5541
          %p5543 = scmp.lt.s32.totalorder %s5542, 13
          %s5544 = scalar_select %p5543, %s5542, 13
          %s5545 = smul.u32 128, %s5544
          %s5547 = ssub.s32 1664, %s5545
          %5548 = vsyncadd %s5534, %s5547
          %p5549 = scmp.ne.s32.totalorder 0, %s5545
          %s5550 = smul.addr %s5541, 128
          %s5551 = scalar_lea.hbm %s5, %s5550
          %s5552 = smul.u32 8, %s5544
          %s5553 = sshll.u32 %s5537, 4
          %s5554 = int_to_ptr.vmem [resolvable:$true] %s5553
          %s5555 = sshll.u32 %s5552, 4
          %5559 = dma.vmem_to_hbm [thread:$0]  (%p5549), %s5554, %s5555, %s5551, %s5534, 128, 128, 8
        $region64: #{tpu_custom_call.1} parent=39 // pred_fallthru
          _
      $region40: #{tpu_custom_call.1} parent=5 // pred_fallthru
        _
      %p5560 = scmp.le.s32.totalorder 2, %s19
      // Predicated region
      $region65: #{tpu_custom_call.1} parent=5 // pred_check
        %p5561 = pneg %p5560
      $region66: #{tpu_custom_call.1} parent=5 // pred_check_branch
        %5563 = sbr.rel (%p5561) target = $region68
      $region67: #{tpu_custom_call.1} parent=5 // pred_region
        %s5564 = ssub.s32 %s19, 2
        // Predicated region
        $region69: #{tpu_custom_call.1} parent=67 // pred_check
          %p5565 = pneg %p158
        $region70: #{tpu_custom_call.1} parent=67 // pred_check_branch
          %5567 = sbr.rel (%p5565) target = $region72
        $region71: #{tpu_custom_call.1} parent=67 // pred_region
          %s5568 = sand.u32 %s143, 1
          %s5569 = scalar_lea.sflag [#allocation4], %s5568
          %s5570 = sand.u32 %s143, 1
          %s5571 = smul.addr %s5570, 104
          %s5572 = scalar_lea.vmem [#allocation11], %s5571
          %5573 = dma.done %s5569, 1664
        $region72: #{tpu_custom_call.1} parent=67 // pred_fallthru
          _
      $region68: #{tpu_custom_call.1} parent=5 // pred_fallthru
        _
    $region6: #{tpu_custom_call.1} parent=1 // loop_footer
      %s23 = sadd.s32 1, %s19
    $region7: #{tpu_custom_call.1} parent=1 // loop_footer_branch
      %18 = sbr.rel target = $region3
    $region8: #{tpu_custom_call.1} parent=1 // loop_exit
      _
    %5574 = vsyncpa [#allocation3], 1
    %s5575 = scalar_lea.sflag [#allocation3], 1
    %5576 = vsyncpa %s5575, 1
    %5577 = vsyncpa [#allocation6], 1
    %5578 = vsyncpa [#allocation9], 1
    %5579 = vsyncpa [#allocation4], 1
    %s5580 = scalar_lea.sflag [#allocation4], 1
    %5581 = vsyncpa %s5580, 1

</llo_original>
